<compile_context>
chip_gen: v7x
topology: tpu7x:2x2x1
jax: 0.10.0
libtpu: 0.0.40
codegen_flags: <defaults>
</compile_context>

<pallas_src>
import functools
import math

import jax
import jax.numpy as jnp
from jax.experimental import pallas as pl
from jax.experimental.pallas import tpu as pltpu


# ----------------------------------------------------------------------------
# Pallas kernel: fused 3x3 conv (9 accumulating matmuls) + folded BN + ReLU
# ----------------------------------------------------------------------------
def _conv3x3_bn_relu_kernel(x_ref, w_ref, b_ref, o_ref, acc_ref, *,
                            wout, col_starts, rows):
    # x_ref  : (3, tile_m, W_cat, Cin)   dy-shifted, phase-split input rows
    # w_ref  : (3, 3, Cin, Cout_pad)     BN-scale-folded weights
    # b_ref  : (1, Cout_pad)             folded BN bias (f32)
    # o_ref  : (tile_m * wout, Cout_pad) lane-dense output tile
    # acc_ref: VMEM f32 accumulator, same shape as o_ref
    first = True
    for dy in range(3):
        for dx in range(3):
            xs = x_ref[dy, :, pl.ds(col_starts[dx], wout), :]   # (tile_m, wout, Cin)
            xs = xs.reshape(rows, xs.shape[-1])                  # (tile_m*wout, Cin)
            part = jnp.dot(xs, w_ref[dy, dx],
                           preferred_element_type=jnp.float32)
            if first:
                acc_ref[...] = part
                first = False
            else:
                acc_ref[...] += part
    y = acc_ref[...] + b_ref[...]
    o_ref[...] = jnp.maximum(y, 0.0).astype(o_ref.dtype)


def _fused_conv3x3_bn_relu(x_rows, w_eff, bias2d, *, wout, col_starts,
                           max_tile_m=256, vmem_budget=32 * 1024 * 1024):
    """x_rows: (3, M, W_cat, Cin); w_eff: (3,3,Cin,Cout_pad); bias2d: (1,Cout_pad)."""
    _, M, w_cat, cin = x_rows.shape
    cout_pad = w_eff.shape[-1]
    itemsize = jnp.dtype(x_rows.dtype).itemsize

    # tile_m granularity so tile_m*wout stays a multiple of 8 (sublane tiling)
    unit = 8 // math.gcd(wout, 8)

    def vmem_est(tm):
        return (2 * 3 * tm * w_cat * cin * itemsize          # input, double-buffered
                + 2 * tm * wout * cout_pad * 4                # output, double-buffered
                + tm * wout * cout_pad * 4                    # f32 accumulator
                + 2 * 9 * cin * cout_pad * itemsize           # weights
                + 2 * cout_pad * 4)                           # bias

    # Target >= 2 grid steps (dual-TensorCore on v7x / pipelining) when M allows.
    tile_m = min(max_tile_m, pl.cdiv(M, 2))
    tile_m = max(unit, (tile_m // unit) * unit)
    while tile_m > unit and vmem_est(tile_m) > vmem_budget:
        tile_m = max(unit, ((tile_m // 2) // unit) * unit)
    if tile_m >= M:
        tile_m = M

    n_tiles = pl.cdiv(M, tile_m)
    rows = tile_m * wout

    kernel = functools.partial(
        _conv3x3_bn_relu_kernel,
        wout=wout, col_starts=tuple(int(c) for c in col_starts), rows=rows)

    out = pl.pallas_call(
        kernel,
        out_shape=jax.ShapeDtypeStruct((M * wout, cout_pad), jnp.float32),
        grid_spec=pltpu.PrefetchScalarGridSpec(
            num_scalar_prefetch=0,
            grid=(n_tiles,),
            in_specs=[
                pl.BlockSpec((3, tile_m, w_cat, cin), lambda i: (0, i, 0, 0)),
                pl.BlockSpec((3, 3, cin, cout_pad), lambda i: (0, 0, 0, 0)),
                pl.BlockSpec((1, cout_pad), lambda i: (0, 0)),
            ],
            out_specs=pl.BlockSpec((rows, cout_pad), lambda i: (i, 0)),
            scratch_shapes=[pltpu.VMEM((rows, cout_pad), jnp.float32)],
        ),
        compiler_params=pltpu.CompilerParams(
            dimension_semantics=("parallel",),
            vmem_limit_bytes=48 * 1024 * 1024,
        ),
    )(x_rows, w_eff, bias2d)
    return out


# ----------------------------------------------------------------------------
# ConvBlock = Conv2d(3x3, bias=False) + BatchNorm2d (folded, eval) + ReLU
# ----------------------------------------------------------------------------
def init_conv_block(key, in_chan, out_chan, ks=3):
    kw, kg, kb, km, kv = jax.random.split(key, 5)
    fan_in = in_chan * ks * ks
    std = (2.0 / fan_in) ** 0.5  # kaiming_normal_, fan_in, gain=sqrt(2)
    w = jax.random.normal(kw, (out_chan, in_chan, ks, ks), jnp.float32) * std
    gamma = 1.0 + 0.1 * jax.random.normal(kg, (out_chan,), jnp.float32)
    beta = 0.1 * jax.random.normal(kb, (out_chan,), jnp.float32)
    mean = 0.1 * jax.random.normal(km, (out_chan,), jnp.float32)
    var = 1.0 + 0.1 * jnp.abs(jax.random.normal(kv, (out_chan,), jnp.float32))
    return dict(w=w, gamma=gamma, beta=beta, mean=mean, var=var, eps=1e-5)


def conv_block_forward(x_nchw, p, *, stride, compute_dtype=jnp.float32):
    # NCHW -> NHWC (channels on lanes); optional bf16 cast before materializing
    # the dy-shifted copies so the extra HBM bytes are already halved.
    x = jnp.transpose(x_nchw, (0, 2, 3, 1)).astype(compute_dtype)
    n, h, wd, cin = x.shape
    hout = (h + 2 - 3) // stride + 1
    wout = (wd + 2 - 3) // stride + 1
    wd_pad = wd + 2

    x_pad = jnp.pad(x, ((0, 0), (1, 1), (1, 1), (0, 0)))

    # Gather the 3 kernel-row shifts (dy) with the conv stride applied to rows,
    # and phase-split the W axis so every in-kernel tap slice is contiguous
    # (no strided reads inside the kernel, even for stride=2).
    slabs = []
    for dy in range(3):
        r = x_pad[:, dy: dy + stride * (hout - 1) + 1: stride, :, :]
        r = jnp.concatenate([r[:, :, ph::stride, :] for ph in range(stride)], axis=2)
        slabs.append(r)
    x_rows = jnp.stack(slabs, axis=0).reshape(3, n * hout, -1, cin)

    phase_w = [(wd_pad - ph + stride - 1) // stride for ph in range(stride)]
    offs = [0]
    for ph in range(stride - 1):
        offs.append(offs[-1] + phase_w[ph])
    col_starts = [offs[dx % stride] + dx // stride for dx in range(3)]

    # Fold BN (inference / running-stats, i.e. the fuse_conv_bn form) into the
    # weights, and pad Cout to a multiple of 128 for lane-dense stores.
    cout = p["w"].shape[0]
    scale = p["gamma"] / jnp.sqrt(p["var"] + p["eps"])
    bias = p["beta"] - p["mean"] * scale
    w_eff = jnp.transpose(p["w"], (2, 3, 1, 0)) * scale[None, None, None, :]
    cout_pad = ((cout + 127) // 128) * 128
    pad_c = cout_pad - cout
    w_eff = jnp.pad(w_eff, ((0, 0), (0, 0), (0, 0), (0, pad_c))).astype(compute_dtype)
    bias2d = jnp.pad(bias, (0, pad_c)).reshape(1, cout_pad).astype(jnp.float32)

    out_flat = _fused_conv3x3_bn_relu(
        x_rows, w_eff, bias2d, wout=wout, col_starts=col_starts)
    out = out_flat[:, :cout].reshape(n, hout, wout, cout)
    return jnp.transpose(out, (0, 3, 1, 2)).astype(jnp.float32)  # back to NCHW


def _conv_block_ref(x_nchw, p, *, stride, quantize_dtype=None):
    """Pure-JAX reference of ConvBlock (optionally with bf16-rounded operands)."""
    scale = p["gamma"] / jnp.sqrt(p["var"] + p["eps"])
    bias = p["beta"] - p["mean"] * scale
    w = p["w"]
    x = x_nchw
    if quantize_dtype is not None:
        # Same rounding as the kernel path: scale folded into w, then bf16.
        w = (w * scale[:, None, None, None]).astype(quantize_dtype).astype(jnp.float32)
        x = x.astype(quantize_dtype).astype(jnp.float32)
        scale_eff = jnp.ones_like(scale)
    else:
        scale_eff = scale
    y = jax.lax.conv_general_dilated(
        x, w, window_strides=(stride, stride),
        padding=((1, 1), (1, 1)),
        dimension_numbers=("NCHW", "OIHW", "NCHW"))
    y = y * scale_eff[None, :, None, None] + bias[None, :, None, None]
    return jnp.maximum(y, 0.0)


# ----------------------------------------------------------------------------
# TransModule
# ----------------------------------------------------------------------------
def init_trans_module(key, in_chans, out_chans):
    in_chans = [4 * c for c in in_chans]
    out_chans = [4 * c for c in out_chans]
    keys = jax.random.split(key, len(in_chans) + 1)
    layers = []
    for i, (ic, oc) in enumerate(zip(in_chans, out_chans)):
        layers.append(None if ic == oc else init_conv_block(keys[i], ic, oc))
    trans_down = init_conv_block(keys[-1], in_chans[-1], out_chans[-1])
    return dict(layers=layers, trans_down=trans_down, n_branches=len(in_chans))


def trans_module_forward(params, xs, *, compute_dtype=jnp.float32):
    outs = []
    for ind in range(params["n_branches"]):
        p = params["layers"][ind]
        if p is None:  # nn.Identity()
            outs.append(xs[ind])
        else:
            outs.append(conv_block_forward(xs[ind], p, stride=1,
                                           compute_dtype=compute_dtype))
    outs.append(conv_block_forward(xs[-1], params["trans_down"], stride=2,
                                   compute_dtype=compute_dtype))
    return tuple(outs)


def trans_module_ref(params, xs, *, quantize_dtype=None):
    outs = []
    for ind in range(params["n_branches"]):
        p = params["layers"][ind]
        outs.append(xs[ind] if p is None
                    else _conv_block_ref(xs[ind], p, stride=1,
                                         quantize_dtype=quantize_dtype))
    outs.append(_conv_block_ref(xs[-1], params["trans_down"], stride=2,
                                quantize_dtype=quantize_dtype))
    return tuple(outs)


# ----------------------------------------------------------------------------
if __name__ == "__main__":
    key = jax.random.PRNGKey(0)

    # Small config (module multiplies channels by 4): Cin=32 -> Cout 24 / 48.
    in_chans = [8]
    out_chans = [6, 12]
    N, H, W = 2, 16, 16

    params = init_trans_module(key, in_chans, out_chans)

    x0 = jax.random.normal(
        jax.random.fold_in(key, 123),
        (N, 4 * in_chans[0], H, W), dtype=jnp.float32)
    xs = (x0,)

    # ---- f32 path (exact module semantics) ---------------------------------
    outs = jax.block_until_ready(trans_module_forward(params, xs))

    # Shape checks (PyTorch semantics: stride-1 keeps HxW, stride-2 halves it).
    assert outs[0].shape == (N, 4 * out_chans[0], H, W), outs[0].shape
    assert outs[1].shape == (N, 4 * out_chans[1], H // 2, W // 2), outs[1].shape

    refs = trans_module_ref(params, xs)
    for o, r in zip(outs, refs):
        err = float(jnp.max(jnp.abs(o - r)))
        assert jnp.allclose(o, r, rtol=1e-4, atol=1e-3), err

    # ---- bf16-operand path (v6e/v7x DMA-byte halving, f32 accumulate) ------
    outs_bf = jax.block_until_ready(
        trans_module_forward(params, xs, compute_dtype=jnp.bfloat16))
    refs_bf = trans_module_ref(params, xs, quantize_dtype=jnp.bfloat16)
    for o, r in zip(outs_bf, refs_bf):
        err = float(jnp.max(jnp.abs(o - r)))
        assert jnp.allclose(o, r, rtol=1e-2, atol=1e-2), err

    print("KERNEL_OK")
</pallas_src>

<mosaic_0001>
module attributes {stable_mosaic.version = 11 : i64} {
  func.func @_conv3x3_bn_relu_kernel(%arg0: i32, %arg1: memref<3x16x18x32xf32, #tpu.memory_space<vmem>>, %arg2: memref<3x3x32x128xf32, #tpu.memory_space<vmem>>, %arg3: memref<1x128xf32, #tpu.memory_space<vmem>>, %arg4: memref<256x128xf32, #tpu.memory_space<vmem>>, %arg5: memref<256x128xf32, #tpu.memory_space<vmem>>) attributes {dimension_semantics = [#tpu.dimension_semantics<parallel>], iteration_bounds = array<i64: 2>, scalar_prefetch = 0 : i64, scratch_operands = 1 : i64, tpu.core_type = #tpu.core_type<tc>, window_params = [{transform_indices = @transform_0, window_bounds = array<i64: 3, 16, 18, 32>}, {pipeline_mode = #tpu.pipeline_mode<synchronous>, transform_indices = @transform_1, window_bounds = array<i64: 3, 3, 32, 128>}, {pipeline_mode = #tpu.pipeline_mode<synchronous>, transform_indices = @transform_2, window_bounds = array<i64: 1, 128>}, {transform_indices = @transform_3, window_bounds = array<i64: 256, 128>}]} {
    %c0 = arith.constant 0 : index
    %c0_0 = arith.constant 0 : index
    %c0_1 = arith.constant 0 : index
    %c0_2 = arith.constant 0 : index
    %0 = vector.load %arg1[%c0, %c0_0, %c0_1, %c0_2] : memref<3x16x18x32xf32, #tpu.memory_space<vmem>>, vector<1x16x16x32xf32>
    %1 = vector.shape_cast %0 : vector<1x16x16x32xf32> to vector<16x16x32xf32>
    %2 = vector.shape_cast %1 : vector<16x16x32xf32> to vector<256x32xf32>
    %c0_3 = arith.constant 0 : index
    %c0_4 = arith.constant 0 : index
    %c0_5 = arith.constant 0 : index
    %c0_6 = arith.constant 0 : index
    %3 = vector.load %arg2[%c0_3, %c0_4, %c0_5, %c0_6] : memref<3x3x32x128xf32, #tpu.memory_space<vmem>>, vector<1x1x32x128xf32>
    %4 = vector.shape_cast %3 : vector<1x1x32x128xf32> to vector<32x128xf32>
    %cst = arith.constant dense<0.000000e+00> : vector<256x128xf32>
    %5 = tpu.matmul %2, %4, %cst {dimension_numbers = #tpu.dot_dimension_numbers<[1], [0], [0], [1], [0, 0, 1, 1], [], []>} : vector<256x32xf32>, vector<32x128xf32>, vector<256x128xf32> -> vector<256x128xf32>
    %c0_7 = arith.constant 0 : index
    %c0_8 = arith.constant 0 : index
    %6 = vector.load %arg5[%c0_7, %c0_8] : memref<256x128xf32, #tpu.memory_space<vmem>>, vector<256x128xf32>
    tpu.vector_store %arg5[%c0_7, %c0_8], %5 {strides = array<i32>} : memref<256x128xf32, #tpu.memory_space<vmem>>, vector<256x128xf32>,
    %c0_9 = arith.constant 0 : index
    %c0_10 = arith.constant 0 : index
    %c1 = arith.constant 1 : index
    %c0_11 = arith.constant 0 : index
    %7 = vector.load %arg1[%c0_9, %c0_10, %c1, %c0_11] : memref<3x16x18x32xf32, #tpu.memory_space<vmem>>, vector<1x16x16x32xf32>
    %8 = vector.shape_cast %7 : vector<1x16x16x32xf32> to vector<16x16x32xf32>
    %9 = vector.shape_cast %8 : vector<16x16x32xf32> to vector<256x32xf32>
    %c0_12 = arith.constant 0 : index
    %c1_13 = arith.constant 1 : index
    %c0_14 = arith.constant 0 : index
    %c0_15 = arith.constant 0 : index
    %10 = vector.load %arg2[%c0_12, %c1_13, %c0_14, %c0_15] : memref<3x3x32x128xf32, #tpu.memory_space<vmem>>, vector<1x1x32x128xf32>
    %11 = vector.shape_cast %10 : vector<1x1x32x128xf32> to vector<32x128xf32>
    %cst_16 = arith.constant dense<0.000000e+00> : vector<256x128xf32>
    %12 = tpu.matmul %9, %11, %cst_16 {dimension_numbers = #tpu.dot_dimension_numbers<[1], [0], [0], [1], [0, 0, 1, 1], [], []>} : vector<256x32xf32>, vector<32x128xf32>, vector<256x128xf32> -> vector<256x128xf32>
    %c0_17 = arith.constant 0 : index
    %c0_18 = arith.constant 0 : index
    %13 = vector.load %arg5[%c0_17, %c0_18] : memref<256x128xf32, #tpu.memory_space<vmem>>, vector<256x128xf32>
    %14 = arith.addf %13, %12 : vector<256x128xf32>
    %c0_19 = arith.constant 0 : index
    %c0_20 = arith.constant 0 : index
    %15 = vector.load %arg5[%c0_19, %c0_20] : memref<256x128xf32, #tpu.memory_space<vmem>>, vector<256x128xf32>
    tpu.vector_store %arg5[%c0_19, %c0_20], %14 {strides = array<i32>} : memref<256x128xf32, #tpu.memory_space<vmem>>, vector<256x128xf32>,
    %c0_21 = arith.constant 0 : index
    %c0_22 = arith.constant 0 : index
    %c2 = arith.constant 2 : index
    %c0_23 = arith.constant 0 : index
    %16 = vector.load %arg1[%c0_21, %c0_22, %c2, %c0_23] : memref<3x16x18x32xf32, #tpu.memory_space<vmem>>, vector<1x16x16x32xf32>
    %17 = vector.shape_cast %16 : vector<1x16x16x32xf32> to vector<16x16x32xf32>
    %18 = vector.shape_cast %17 : vector<16x16x32xf32> to vector<256x32xf32>
    %c0_24 = arith.constant 0 : index
    %c2_25 = arith.constant 2 : index
    %c0_26 = arith.constant 0 : index
    %c0_27 = arith.constant 0 : index
    %19 = vector.load %arg2[%c0_24, %c2_25, %c0_26, %c0_27] : memref<3x3x32x128xf32, #tpu.memory_space<vmem>>, vector<1x1x32x128xf32>
    %20 = vector.shape_cast %19 : vector<1x1x32x128xf32> to vector<32x128xf32>
    %cst_28 = arith.constant dense<0.000000e+00> : vector<256x128xf32>
    %21 = tpu.matmul %18, %20, %cst_28 {dimension_numbers = #tpu.dot_dimension_numbers<[1], [0], [0], [1], [0, 0, 1, 1], [], []>} : vector<256x32xf32>, vector<32x128xf32>, vector<256x128xf32> -> vector<256x128xf32>
    %c0_29 = arith.constant 0 : index
    %c0_30 = arith.constant 0 : index
    %22 = vector.load %arg5[%c0_29, %c0_30] : memref<256x128xf32, #tpu.memory_space<vmem>>, vector<256x128xf32>
    %23 = arith.addf %22, %21 : vector<256x128xf32>
    %c0_31 = arith.constant 0 : index
    %c0_32 = arith.constant 0 : index
    %24 = vector.load %arg5[%c0_31, %c0_32] : memref<256x128xf32, #tpu.memory_space<vmem>>, vector<256x128xf32>
    tpu.vector_store %arg5[%c0_31, %c0_32], %23 {strides = array<i32>} : memref<256x128xf32, #tpu.memory_space<vmem>>, vector<256x128xf32>,
    %c1_33 = arith.constant 1 : index
    %c0_34 = arith.constant 0 : index
    %c0_35 = arith.constant 0 : index
    %c0_36 = arith.constant 0 : index
    %25 = vector.load %arg1[%c1_33, %c0_34, %c0_35, %c0_36] : memref<3x16x18x32xf32, #tpu.memory_space<vmem>>, vector<1x16x16x32xf32>
    %26 = vector.shape_cast %25 : vector<1x16x16x32xf32> to vector<16x16x32xf32>
    %27 = vector.shape_cast %26 : vector<16x16x32xf32> to vector<256x32xf32>
    %c1_37 = arith.constant 1 : index
    %c0_38 = arith.constant 0 : index
    %c0_39 = arith.constant 0 : index
    %c0_40 = arith.constant 0 : index
    %28 = vector.load %arg2[%c1_37, %c0_38, %c0_39, %c0_40] : memref<3x3x32x128xf32, #tpu.memory_space<vmem>>, vector<1x1x32x128xf32>
    %29 = vector.shape_cast %28 : vector<1x1x32x128xf32> to vector<32x128xf32>
    %cst_41 = arith.constant dense<0.000000e+00> : vector<256x128xf32>
    %30 = tpu.matmul %27, %29, %cst_41 {dimension_numbers = #tpu.dot_dimension_numbers<[1], [0], [0], [1], [0, 0, 1, 1], [], []>} : vector<256x32xf32>, vector<32x128xf32>, vector<256x128xf32> -> vector<256x128xf32>
    %c0_42 = arith.constant 0 : index
    %c0_43 = arith.constant 0 : index
    %31 = vector.load %arg5[%c0_42, %c0_43] : memref<256x128xf32, #tpu.memory_space<vmem>>, vector<256x128xf32>
    %32 = arith.addf %31, %30 : vector<256x128xf32>
    %c0_44 = arith.constant 0 : index
    %c0_45 = arith.constant 0 : index
    %33 = vector.load %arg5[%c0_44, %c0_45] : memref<256x128xf32, #tpu.memory_space<vmem>>, vector<256x128xf32>
    tpu.vector_store %arg5[%c0_44, %c0_45], %32 {strides = array<i32>} : memref<256x128xf32, #tpu.memory_space<vmem>>, vector<256x128xf32>,
    %c1_46 = arith.constant 1 : index
    %c0_47 = arith.constant 0 : index
    %c1_48 = arith.constant 1 : index
    %c0_49 = arith.constant 0 : index
    %34 = vector.load %arg1[%c1_46, %c0_47, %c1_48, %c0_49] : memref<3x16x18x32xf32, #tpu.memory_space<vmem>>, vector<1x16x16x32xf32>
    %35 = vector.shape_cast %34 : vector<1x16x16x32xf32> to vector<16x16x32xf32>
    %36 = vector.shape_cast %35 : vector<16x16x32xf32> to vector<256x32xf32>
    %c1_50 = arith.constant 1 : index
    %c1_51 = arith.constant 1 : index
    %c0_52 = arith.constant 0 : index
    %c0_53 = arith.constant 0 : index
    %37 = vector.load %arg2[%c1_50, %c1_51, %c0_52, %c0_53] : memref<3x3x32x128xf32, #tpu.memory_space<vmem>>, vector<1x1x32x128xf32>
    %38 = vector.shape_cast %37 : vector<1x1x32x128xf32> to vector<32x128xf32>
    %cst_54 = arith.constant dense<0.000000e+00> : vector<256x128xf32>
    %39 = tpu.matmul %36, %38, %cst_54 {dimension_numbers = #tpu.dot_dimension_numbers<[1], [0], [0], [1], [0, 0, 1, 1], [], []>} : vector<256x32xf32>, vector<32x128xf32>, vector<256x128xf32> -> vector<256x128xf32>
    %c0_55 = arith.constant 0 : index
    %c0_56 = arith.constant 0 : index
    %40 = vector.load %arg5[%c0_55, %c0_56] : memref<256x128xf32, #tpu.memory_space<vmem>>, vector<256x128xf32>
    %41 = arith.addf %40, %39 : vector<256x128xf32>
    %c0_57 = arith.constant 0 : index
    %c0_58 = arith.constant 0 : index
    %42 = vector.load %arg5[%c0_57, %c0_58] : memref<256x128xf32, #tpu.memory_space<vmem>>, vector<256x128xf32>
    tpu.vector_store %arg5[%c0_57, %c0_58], %41 {strides = array<i32>} : memref<256x128xf32, #tpu.memory_space<vmem>>, vector<256x128xf32>,
    %c1_59 = arith.constant 1 : index
    %c0_60 = arith.constant 0 : index
    %c2_61 = arith.constant 2 : index
    %c0_62 = arith.constant 0 : index
    %43 = vector.load %arg1[%c1_59, %c0_60, %c2_61, %c0_62] : memref<3x16x18x32xf32, #tpu.memory_space<vmem>>, vector<1x16x16x32xf32>
    %44 = vector.shape_cast %43 : vector<1x16x16x32xf32> to vector<16x16x32xf32>
    %45 = vector.shape_cast %44 : vector<16x16x32xf32> to vector<256x32xf32>
    %c1_63 = arith.constant 1 : index
    %c2_64 = arith.constant 2 : index
    %c0_65 = arith.constant 0 : index
    %c0_66 = arith.constant 0 : index
    %46 = vector.load %arg2[%c1_63, %c2_64, %c0_65, %c0_66] : memref<3x3x32x128xf32, #tpu.memory_space<vmem>>, vector<1x1x32x128xf32>
    %47 = vector.shape_cast %46 : vector<1x1x32x128xf32> to vector<32x128xf32>
    %cst_67 = arith.constant dense<0.000000e+00> : vector<256x128xf32>
    %48 = tpu.matmul %45, %47, %cst_67 {dimension_numbers = #tpu.dot_dimension_numbers<[1], [0], [0], [1], [0, 0, 1, 1], [], []>} : vector<256x32xf32>, vector<32x128xf32>, vector<256x128xf32> -> vector<256x128xf32>
    %c0_68 = arith.constant 0 : index
    %c0_69 = arith.constant 0 : index
    %49 = vector.load %arg5[%c0_68, %c0_69] : memref<256x128xf32, #tpu.memory_space<vmem>>, vector<256x128xf32>
    %50 = arith.addf %49, %48 : vector<256x128xf32>
    %c0_70 = arith.constant 0 : index
    %c0_71 = arith.constant 0 : index
    %51 = vector.load %arg5[%c0_70, %c0_71] : memref<256x128xf32, #tpu.memory_space<vmem>>, vector<256x128xf32>
    tpu.vector_store %arg5[%c0_70, %c0_71], %50 {strides = array<i32>} : memref<256x128xf32, #tpu.memory_space<vmem>>, vector<256x128xf32>,
    %c2_72 = arith.constant 2 : index
    %c0_73 = arith.constant 0 : index
    %c0_74 = arith.constant 0 : index
    %c0_75 = arith.constant 0 : index
    %52 = vector.load %arg1[%c2_72, %c0_73, %c0_74, %c0_75] : memref<3x16x18x32xf32, #tpu.memory_space<vmem>>, vector<1x16x16x32xf32>
    %53 = vector.shape_cast %52 : vector<1x16x16x32xf32> to vector<16x16x32xf32>
    %54 = vector.shape_cast %53 : vector<16x16x32xf32> to vector<256x32xf32>
    %c2_76 = arith.constant 2 : index
    %c0_77 = arith.constant 0 : index
    %c0_78 = arith.constant 0 : index
    %c0_79 = arith.constant 0 : index
    %55 = vector.load %arg2[%c2_76, %c0_77, %c0_78, %c0_79] : memref<3x3x32x128xf32, #tpu.memory_space<vmem>>, vector<1x1x32x128xf32>
    %56 = vector.shape_cast %55 : vector<1x1x32x128xf32> to vector<32x128xf32>
    %cst_80 = arith.constant dense<0.000000e+00> : vector<256x128xf32>
    %57 = tpu.matmul %54, %56, %cst_80 {dimension_numbers = #tpu.dot_dimension_numbers<[1], [0], [0], [1], [0, 0, 1, 1], [], []>} : vector<256x32xf32>, vector<32x128xf32>, vector<256x128xf32> -> vector<256x128xf32>
    %c0_81 = arith.constant 0 : index
    %c0_82 = arith.constant 0 : index
    %58 = vector.load %arg5[%c0_81, %c0_82] : memref<256x128xf32, #tpu.memory_space<vmem>>, vector<256x128xf32>
    %59 = arith.addf %58, %57 : vector<256x128xf32>
    %c0_83 = arith.constant 0 : index
    %c0_84 = arith.constant 0 : index
    %60 = vector.load %arg5[%c0_83, %c0_84] : memref<256x128xf32, #tpu.memory_space<vmem>>, vector<256x128xf32>
    tpu.vector_store %arg5[%c0_83, %c0_84], %59 {strides = array<i32>} : memref<256x128xf32, #tpu.memory_space<vmem>>, vector<256x128xf32>,
    %c2_85 = arith.constant 2 : index
    %c0_86 = arith.constant 0 : index
    %c1_87 = arith.constant 1 : index
    %c0_88 = arith.constant 0 : index
    %61 = vector.load %arg1[%c2_85, %c0_86, %c1_87, %c0_88] : memref<3x16x18x32xf32, #tpu.memory_space<vmem>>, vector<1x16x16x32xf32>
    %62 = vector.shape_cast %61 : vector<1x16x16x32xf32> to vector<16x16x32xf32>
    %63 = vector.shape_cast %62 : vector<16x16x32xf32> to vector<256x32xf32>
    %c2_89 = arith.constant 2 : index
    %c1_90 = arith.constant 1 : index
    %c0_91 = arith.constant 0 : index
    %c0_92 = arith.constant 0 : index
    %64 = vector.load %arg2[%c2_89, %c1_90, %c0_91, %c0_92] : memref<3x3x32x128xf32, #tpu.memory_space<vmem>>, vector<1x1x32x128xf32>
    %65 = vector.shape_cast %64 : vector<1x1x32x128xf32> to vector<32x128xf32>
    %cst_93 = arith.constant dense<0.000000e+00> : vector<256x128xf32>
    %66 = tpu.matmul %63, %65, %cst_93 {dimension_numbers = #tpu.dot_dimension_numbers<[1], [0], [0], [1], [0, 0, 1, 1], [], []>} : vector<256x32xf32>, vector<32x128xf32>, vector<256x128xf32> -> vector<256x128xf32>
    %c0_94 = arith.constant 0 : index
    %c0_95 = arith.constant 0 : index
    %67 = vector.load %arg5[%c0_94, %c0_95] : memref<256x128xf32, #tpu.memory_space<vmem>>, vector<256x128xf32>
    %68 = arith.addf %67, %66 : vector<256x128xf32>
    %c0_96 = arith.constant 0 : index
    %c0_97 = arith.constant 0 : index
    %69 = vector.load %arg5[%c0_96, %c0_97] : memref<256x128xf32, #tpu.memory_space<vmem>>, vector<256x128xf32>
    tpu.vector_store %arg5[%c0_96, %c0_97], %68 {strides = array<i32>} : memref<256x128xf32, #tpu.memory_space<vmem>>, vector<256x128xf32>,
    %c2_98 = arith.constant 2 : index
    %c0_99 = arith.constant 0 : index
    %c2_100 = arith.constant 2 : index
    %c0_101 = arith.constant 0 : index
    %70 = vector.load %arg1[%c2_98, %c0_99, %c2_100, %c0_101] : memref<3x16x18x32xf32, #tpu.memory_space<vmem>>, vector<1x16x16x32xf32>
    %71 = vector.shape_cast %70 : vector<1x16x16x32xf32> to vector<16x16x32xf32>
    %72 = vector.shape_cast %71 : vector<16x16x32xf32> to vector<256x32xf32>
    %c2_102 = arith.constant 2 : index
    %c2_103 = arith.constant 2 : index
    %c0_104 = arith.constant 0 : index
    %c0_105 = arith.constant 0 : index
    %73 = vector.load %arg2[%c2_102, %c2_103, %c0_104, %c0_105] : memref<3x3x32x128xf32, #tpu.memory_space<vmem>>, vector<1x1x32x128xf32>
    %74 = vector.shape_cast %73 : vector<1x1x32x128xf32> to vector<32x128xf32>
    %cst_106 = arith.constant dense<0.000000e+00> : vector<256x128xf32>
    %75 = tpu.matmul %72, %74, %cst_106 {dimension_numbers = #tpu.dot_dimension_numbers<[1], [0], [0], [1], [0, 0, 1, 1], [], []>} : vector<256x32xf32>, vector<32x128xf32>, vector<256x128xf32> -> vector<256x128xf32>
    %c0_107 = arith.constant 0 : index
    %c0_108 = arith.constant 0 : index
    %76 = vector.load %arg5[%c0_107, %c0_108] : memref<256x128xf32, #tpu.memory_space<vmem>>, vector<256x128xf32>
    %77 = arith.addf %76, %75 : vector<256x128xf32>
    %c0_109 = arith.constant 0 : index
    %c0_110 = arith.constant 0 : index
    %78 = vector.load %arg5[%c0_109, %c0_110] : memref<256x128xf32, #tpu.memory_space<vmem>>, vector<256x128xf32>
    tpu.vector_store %arg5[%c0_109, %c0_110], %77 {strides = array<i32>} : memref<256x128xf32, #tpu.memory_space<vmem>>, vector<256x128xf32>,
    %c0_111 = arith.constant 0 : index
    %c0_112 = arith.constant 0 : index
    %79 = vector.load %arg5[%c0_111, %c0_112] : memref<256x128xf32, #tpu.memory_space<vmem>>, vector<256x128xf32>
    %c0_113 = arith.constant 0 : index
    %c0_114 = arith.constant 0 : index
    %80 = vector.load %arg3[%c0_113, %c0_114] : memref<1x128xf32, #tpu.memory_space<vmem>>, vector<1x128xf32>
    %81 = vector.broadcast %80 : vector<1x128xf32> to vector<256x128xf32>
    %82 = arith.addf %79, %81 : vector<256x128xf32>
    %cst_115 = arith.constant 0.000000e+00 : f32
    %83 = vector.broadcast %cst_115 : f32 to vector<256x128xf32>
    %84 = arith.maximumf %82, %83 : vector<256x128xf32>
    %c0_116 = arith.constant 0 : index
    %c0_117 = arith.constant 0 : index
    %85 = vector.load %arg4[%c0_116, %c0_117] : memref<256x128xf32, #tpu.memory_space<vmem>>, vector<256x128xf32>
    tpu.vector_store %arg4[%c0_116, %c0_117], %84 {strides = array<i32>} : memref<256x128xf32, #tpu.memory_space<vmem>>, vector<256x128xf32>,
    return
  }
  func.func @transform_0(%arg0: i32) -> (i32, i32, i32, i32) {
    %c0_i32 = arith.constant 0 : i32
    %c0_i32_0 = arith.constant 0 : i32
    %c0_i32_1 = arith.constant 0 : i32
    %c0_i32_2 = arith.constant 0 : i32
    return %c0_i32, %arg0, %c0_i32_0, %c0_i32_1 : i32, i32, i32, i32
  }
  func.func @transform_1(%arg0: i32) -> (i32, i32, i32, i32) {
    %c0_i32 = arith.constant 0 : i32
    %c0_i32_0 = arith.constant 0 : i32
    %c0_i32_1 = arith.constant 0 : i32
    %c0_i32_2 = arith.constant 0 : i32
    %c0_i32_3 = arith.constant 0 : i32
    return %c0_i32, %c0_i32_0, %c0_i32_1, %c0_i32_2 : i32, i32, i32, i32
  }
  func.func @transform_2(%arg0: i32) -> (i32, i32) {
    %c0_i32 = arith.constant 0 : i32
    %c0_i32_0 = arith.constant 0 : i32
    %c0_i32_1 = arith.constant 0 : i32
    return %c0_i32, %c0_i32_0 : i32, i32
  }
  func.func @transform_3(%arg0: i32) -> (i32, i32) {
    %c0_i32 = arith.constant 0 : i32
    %c0_i32_0 = arith.constant 0 : i32
    return %arg0, %c0_i32 : i32, i32
  }
}

</mosaic_0001>

<llo_original>
// kernel: tpu_custom_call.1
$region0: #{tpu_custom_call.1}
  #allocation0 [shape = 'u32[]', space=smem, size = 0x4, offset = 0x4, fixed_abs, tag = 'smem constant byte address 0x4 - core index']
  #allocation1 [shape = 'u32[144,128]{1,0:T(1,128)}', space=vmem, size = 0x12000, scoped, tag = 'internal scratch']
  #allocation2 [shape = 'f32[256,128]{1,0:T(8,128)}', space=vmem, size = 0x20000, scoped, tag = 'scratch operand']
  %s0 = inlined_call_operand.vmem [shape: f32[3,32,18,32], index: 0, kind: input, shape index: {}]
  %s1 = inlined_call_operand.vmem [shape: f32[3,3,32,128], index: 1, kind: input, shape index: {}]
  %s2 = inlined_call_operand.vmem [shape: f32[1,128], index: 2, kind: input, shape index: {}]
  %s3 = inlined_call_operand.hbm [shape: f32[512,128], index: 3, kind: output, shape index: {}]
  %s4 = sld [smem:[#allocation0]]
  $region83: #{tpu_custom_call.1} parent=0
    _
  %s6 = ssub.s32 1, %s4
  %s7 = scalar_select 0, %s6, %s4
  $region1: #{tpu_custom_call.1} parent=0
    #allocation3 [shape = 'u8[1179648]{0}', space=vmem, size = 0x120000, scoped, tag = 'input window, operand 0']
    #allocation4 [shape = 'u8[262144]{0}', space=vmem, size = 0x40000, scoped, tag = 'output window, operand 0']
    #allocation5 [shape = 's32[2]{0}', space=sflag, size = 0x8, scoped, tag = 'scoped memory for tpu_custom_call.1']
    %8 = vsyncpa [#allocation5], 0
    %s9 = scalar_lea.sflag [#allocation5], 1
    %10 = vsyncpa %s9, 0
    loop: start=0, step=1, limit=4
    $region2: #{tpu_custom_call.1} parent=1 // loop_pre_header
      _
    $region3: #{tpu_custom_call.1} parent=1 // loop_header
      %s12 = sphi 0, %s16
      %p13 = scmp.ge.s32.totalorder %s12, 4
      %s22 = sphi 0, %s24
      %s25 = sphi 0, %s22
      %s26 = sphi 0, %s25
      %s42 = sphi 0, %s26
      %s46 = sphi 0, %s46
      %s48 = sphi 0, %s46
      %s49 = sphi 0, %s48
      %s63 = sphi 0, %s49
      %s67 = sphi 0, %s67
      %s69 = sphi 0, %s67
      %s70 = sphi 0, %s69
      %s84 = sphi 0, %s70
      %s90 = sphi 0, %s92
      %s93 = sphi 0, %s90
      %s94 = sphi 0, %s93
      %s110 = sphi 0, %s94
    $region4: #{tpu_custom_call.1} parent=1 // loop_header_branch
      %15 = sbr.rel (%p13) target = $region8
    $region5: #{tpu_custom_call.1} parent=1 // loop_body
      %s17 = ssub.s32 %s12, 1
      %s18 = ssub.s32 %s12, 2
      %s19 = sadd.s32 %s12, 1
      %s20 = ssub.s32 %s12, %s19
      %p21 = scmp.eq.s32.totalorder %s20, 0
      %s23 = sadd.s32 %s22, 1
      %s24 = scalar_select %p21, %s22, %s23
      %p27 = pneg %p21
      %p28 = scmp.eq.s32.totalorder %s12, 1
      %p29 = por %p27, %p28
      %p30 = scmp.ne.s32.totalorder %s22, %s25
      %p31 = scmp.eq.s32.totalorder %s12, 0
      %p32 = por %p30, %p31
      %p33 = scmp.ne.s32.totalorder %s22, %s25
      %p34 = scmp.eq.s32.totalorder %s17, 1
      %p35 = por %p33, %p34
      %p36 = scmp.ne.s32.totalorder %s25, %s26
      %p37 = scmp.eq.s32.totalorder %s17, 0
      %p38 = por %p36, %p37
      %p39 = scmp.ne.s32.totalorder %s25, %s26
      %p40 = scmp.eq.s32.totalorder %s18, 1
      %p41 = por %p39, %p40
      %p43 = scmp.ne.s32.totalorder %s26, %s42
      %p44 = scmp.eq.s32.totalorder %s18, 0
      %p45 = por %p43, %p44
      %s47 = sadd.s32 %s46, 1
      %p50 = scmp.eq.s32.totalorder %s12, 1
      %p51 = scmp.ne.s32.totalorder %s46, %s48
      %p52 = scmp.eq.s32.totalorder %s12, 0
      %p53 = por %p51, %p52
      %p54 = scmp.ne.s32.totalorder %s46, %s48
      %p55 = scmp.eq.s32.totalorder %s17, 1
      %p56 = por %p54, %p55
      %p57 = scmp.ne.s32.totalorder %s48, %s49
      %p58 = scmp.eq.s32.totalorder %s17, 0
      %p59 = por %p57, %p58
      %p60 = scmp.ne.s32.totalorder %s48, %s49
      %p61 = scmp.eq.s32.totalorder %s18, 1
      %p62 = por %p60, %p61
      %p64 = scmp.ne.s32.totalorder %s49, %s63
      %p65 = scmp.eq.s32.totalorder %s18, 0
      %p66 = por %p64, %p65
      %s68 = sadd.s32 %s67, 1
      %p71 = scmp.eq.s32.totalorder %s12, 1
      %p72 = scmp.ne.s32.totalorder %s67, %s69
      %p73 = scmp.eq.s32.totalorder %s12, 0
      %p74 = por %p72, %p73
      %p75 = scmp.ne.s32.totalorder %s67, %s69
      %p76 = scmp.eq.s32.totalorder %s17, 1
      %p77 = por %p75, %p76
      %p78 = scmp.ne.s32.totalorder %s69, %s70
      %p79 = scmp.eq.s32.totalorder %s17, 0
      %p80 = por %p78, %p79
      %p81 = scmp.ne.s32.totalorder %s69, %s70
      %p82 = scmp.eq.s32.totalorder %s18, 1
      %p83 = por %p81, %p82
      %p85 = scmp.ne.s32.totalorder %s70, %s84
      %p86 = scmp.eq.s32.totalorder %s18, 0
      %p87 = por %p85, %p86
      %s88 = ssub.s32 %s12, %s19
      %p89 = scmp.eq.s32.totalorder %s88, 0
      %s91 = sadd.s32 %s90, 1
      %s92 = scalar_select %p89, %s90, %s91
      %p95 = pneg %p89
      %p96 = scmp.eq.s32.totalorder %s12, 1
      %p97 = por %p95, %p96
      %p98 = scmp.ne.s32.totalorder %s90, %s93
      %p99 = scmp.eq.s32.totalorder %s12, 0
      %p100 = por %p98, %p99
      %p101 = scmp.ne.s32.totalorder %s90, %s93
      %p102 = scmp.eq.s32.totalorder %s17, 1
      %p103 = por %p101, %p102
      %p104 = scmp.ne.s32.totalorder %s93, %s94
      %p105 = scmp.eq.s32.totalorder %s17, 0
      %p106 = por %p104, %p105
      %p107 = scmp.ne.s32.totalorder %s93, %s94
      %p108 = scmp.eq.s32.totalorder %s18, 1
      %p109 = por %p107, %p108
      %p111 = scmp.ne.s32.totalorder %s94, %s110
      %p112 = scmp.eq.s32.totalorder %s18, 0
      %p113 = por %p111, %p112
      %p114 = scmp.le.s32.totalorder 1, %s12
      %p115 = scmp.lt.s32.totalorder %s12, 3
      %p116 = pnand %p114, %p115
      %p117 = pneg %p116
      // Predicated region
      $region9: #{tpu_custom_call.1} parent=5 // pred_check
        _
      $region10: #{tpu_custom_call.1} parent=5 // pred_check_branch
        %119 = sbr.rel (%p116) target = $region12
      $region11: #{tpu_custom_call.1} parent=5 // pred_region
        %s120 = ssub.s32 %s12, 1
        // Predicated region
        $region13: #{tpu_custom_call.1} parent=11 // pred_check
          %p121 = pneg %p59
        $region14: #{tpu_custom_call.1} parent=11 // pred_check_branch
          %123 = sbr.rel (%p121) target = $region16
        $region15: #{tpu_custom_call.1} parent=11 // pred_region
          _
        $region16: #{tpu_custom_call.1} parent=11 // pred_fallthru
          _
        // Predicated region
        $region17: #{tpu_custom_call.1} parent=11 // pred_check
          %p124 = pneg %p80
        $region18: #{tpu_custom_call.1} parent=11 // pred_check_branch
          %126 = sbr.rel (%p124) target = $region20
        $region19: #{tpu_custom_call.1} parent=11 // pred_region
          _
        $region20: #{tpu_custom_call.1} parent=11 // pred_fallthru
          _
      $region12: #{tpu_custom_call.1} parent=5 // pred_fallthru
        _
      %p127 = scmp.lt.s32.totalorder %s12, 2
      // Predicated region
      $region21: #{tpu_custom_call.1} parent=5 // pred_check
        %p128 = pneg %p127
      $region22: #{tpu_custom_call.1} parent=5 // pred_check_branch
        %130 = sbr.rel (%p128) target = $region24
      $region23: #{tpu_custom_call.1} parent=5 // pred_region
        // Predicated region
        $region25: #{tpu_custom_call.1} parent=23 // pred_check
          %p131 = pneg %p32
        $region26: #{tpu_custom_call.1} parent=23 // pred_check_branch
          %133 = sbr.rel (%p131) target = $region28
        $region27: #{tpu_custom_call.1} parent=23 // pred_region
          %s134 = sand.u32 %s22, 1
          %s135 = sand.u32 %s22, 1
          %s136 = smul.addr %s135, 1152
          %s137 = scalar_lea.vmem [#allocation3], %s136
          %s138 = smul.u32 16, %s12
          %s139 = smul.addr %s138, 3
          %s140 = smul.addr %s139, 8
          %s141 = scalar_lea.vmem %s0, %s140
          // Predicated region
          $region29: #{tpu_custom_call.1} parent=27 // pred_check
            _
          $region30: #{tpu_custom_call.1} parent=27 // pred_check_branch
            %143 = sbr.rel (0) target = $region32
          $region31: #{tpu_custom_call.1} parent=27 // pred_region
            // Predicated region
            $region33: #{tpu_custom_call.1} parent=31 // pred_check
              _
            $region34: #{tpu_custom_call.1} parent=31 // pred_check_branch
              %145 = sbr.rel (0) target = $region36
            $region35: #{tpu_custom_call.1} parent=31 // pred_region
              // Predicated region
              $region48: #{tpu_custom_call.1} parent=35 // pred_check
                _
              $region49: #{tpu_custom_call.1} parent=35 // pred_check_branch
                %446 = sbr.rel (0) target = $region51
              $region50: #{tpu_custom_call.1} parent=35 // pred_region
                loop: start=0, step=1, limit=1
                $region52: #{tpu_custom_call.1} parent=50 // loop_pre_header
                  _
                $region53: #{tpu_custom_call.1} parent=50 // loop_header
                  %s448 = sphi 0, %s452
                  %p449 = scmp.ge.s32.totalorder %s448, 1
                  %s453 = sphi %s141, %s141
                  %s454 = sphi %s137, %s137
                $region54: #{tpu_custom_call.1} parent=50 // loop_header_branch
                  %451 = sbr.rel (%p449) target = $region58
                $region55: #{tpu_custom_call.1} parent=50 // loop_body
                  %v455 = vld [vmem:[%s453] sm:$0xff]
                  %456 = vst [vmem:[%s454] sm:$0xff] %v455
                  %v457 = vld [vmem:[%s453 + $0x8] sm:$0xff]
                  %458 = vst [vmem:[%s454 + $0x8] sm:$0xff] %v457
                  %v459 = vld [vmem:[%s453 + $0x10] sm:$0xff]
                  %460 = vst [vmem:[%s454 + $0x10] sm:$0xff] %v459
                  %v461 = vld [vmem:[%s453 + $0x18] sm:$0xff]
                  %462 = vst [vmem:[%s454 + $0x18] sm:$0xff] %v461
                  %v463 = vld [vmem:[%s453 + $0x20] sm:$0xff]
                  %464 = vst [vmem:[%s454 + $0x20] sm:$0xff] %v463
                  %v465 = vld [vmem:[%s453 + $0x28] sm:$0xff]
                  %466 = vst [vmem:[%s454 + $0x28] sm:$0xff] %v465
                  %v467 = vld [vmem:[%s453 + $0x30] sm:$0xff]
                  %468 = vst [vmem:[%s454 + $0x30] sm:$0xff] %v467
                  %v469 = vld [vmem:[%s453 + $0x38] sm:$0xff]
                  %470 = vst [vmem:[%s454 + $0x38] sm:$0xff] %v469
                  %v471 = vld [vmem:[%s453 + $0x40] sm:$0xff]
                  %472 = vst [vmem:[%s454 + $0x40] sm:$0xff] %v471
                  %v473 = vld [vmem:[%s453 + $0x48] sm:$0xff]
                  %474 = vst [vmem:[%s454 + $0x48] sm:$0xff] %v473
                  %v475 = vld [vmem:[%s453 + $0x50] sm:$0xff]
                  %476 = vst [vmem:[%s454 + $0x50] sm:$0xff] %v475
                  %v477 = vld [vmem:[%s453 + $0x58] sm:$0xff]
                  %478 = vst [vmem:[%s454 + $0x58] sm:$0xff] %v477
                  %v479 = vld [vmem:[%s453 + $0x60] sm:$0xff]
                  %480 = vst [vmem:[%s454 + $0x60] sm:$0xff] %v479
                  %v481 = vld [vmem:[%s453 + $0x68] sm:$0xff]
                  %482 = vst [vmem:[%s454 + $0x68] sm:$0xff] %v481
                  %v483 = vld [vmem:[%s453 + $0x70] sm:$0xff]
                  %484 = vst [vmem:[%s454 + $0x70] sm:$0xff] %v483
                  %v485 = vld [vmem:[%s453 + $0x78] sm:$0xff]
                  %486 = vst [vmem:[%s454 + $0x78] sm:$0xff] %v485
                  %v487 = vld [vmem:[%s453 + $0x80] sm:$0xff]
                  %488 = vst [vmem:[%s454 + $0x80] sm:$0xff] %v487
                  %v489 = vld [vmem:[%s453 + $0x88] sm:$0xff]
                  %490 = vst [vmem:[%s454 + $0x88] sm:$0xff] %v489
                  %v491 = vld [vmem:[%s453 + $0x90] sm:$0xff]
                  %492 = vst [vmem:[%s454 + $0x90] sm:$0xff] %v491
                  %v493 = vld [vmem:[%s453 + $0x98] sm:$0xff]
                  %494 = vst [vmem:[%s454 + $0x98] sm:$0xff] %v493
                  %v495 = vld [vmem:[%s453 + $0xa0] sm:$0xff]
                  %496 = vst [vmem:[%s454 + $0xa0] sm:$0xff] %v495
                  %v497 = vld [vmem:[%s453 + $0xa8] sm:$0xff]
                  %498 = vst [vmem:[%s454 + $0xa8] sm:$0xff] %v497
                  %v499 = vld [vmem:[%s453 + $0xb0] sm:$0xff]
                  %500 = vst [vmem:[%s454 + $0xb0] sm:$0xff] %v499
                  %v501 = vld [vmem:[%s453 + $0xb8] sm:$0xff]
                  %502 = vst [vmem:[%s454 + $0xb8] sm:$0xff] %v501
                  %v503 = vld [vmem:[%s453 + $0xc0] sm:$0xff]
                  %504 = vst [vmem:[%s454 + $0xc0] sm:$0xff] %v503
                  %v505 = vld [vmem:[%s453 + $0xc8] sm:$0xff]
                  %506 = vst [vmem:[%s454 + $0xc8] sm:$0xff] %v505
                  %v507 = vld [vmem:[%s453 + $0xd0] sm:$0xff]
                  %508 = vst [vmem:[%s454 + $0xd0] sm:$0xff] %v507
                  %v509 = vld [vmem:[%s453 + $0xd8] sm:$0xff]
                  %510 = vst [vmem:[%s454 + $0xd8] sm:$0xff] %v509
                  %v511 = vld [vmem:[%s453 + $0xe0] sm:$0xff]
                  %512 = vst [vmem:[%s454 + $0xe0] sm:$0xff] %v511
                  %v513 = vld [vmem:[%s453 + $0xe8] sm:$0xff]
                  %514 = vst [vmem:[%s454 + $0xe8] sm:$0xff] %v513
                  %v515 = vld [vmem:[%s453 + $0xf0] sm:$0xff]
                  %516 = vst [vmem:[%s454 + $0xf0] sm:$0xff] %v515
                  %v517 = vld [vmem:[%s453 + $0xf8] sm:$0xff]
                  %518 = vst [vmem:[%s454 + $0xf8] sm:$0xff] %v517
                  %v519 = vld [vmem:[%s453 + $0x100] sm:$0xff]
                  %520 = vst [vmem:[%s454 + $0x100] sm:$0xff] %v519
                  %v521 = vld [vmem:[%s453 + $0x108] sm:$0xff]
                  %522 = vst [vmem:[%s454 + $0x108] sm:$0xff] %v521
                  %v523 = vld [vmem:[%s453 + $0x110] sm:$0xff]
                  %524 = vst [vmem:[%s454 + $0x110] sm:$0xff] %v523
                  %v525 = vld [vmem:[%s453 + $0x118] sm:$0xff]
                  %526 = vst [vmem:[%s454 + $0x118] sm:$0xff] %v525
                  %v527 = vld [vmem:[%s453 + $0x120] sm:$0xff]
                  %528 = vst [vmem:[%s454 + $0x120] sm:$0xff] %v527
                  %v529 = vld [vmem:[%s453 + $0x128] sm:$0xff]
                  %530 = vst [vmem:[%s454 + $0x128] sm:$0xff] %v529
                  %v531 = vld [vmem:[%s453 + $0x130] sm:$0xff]
                  %532 = vst [vmem:[%s454 + $0x130] sm:$0xff] %v531
                  %v533 = vld [vmem:[%s453 + $0x138] sm:$0xff]
                  %534 = vst [vmem:[%s454 + $0x138] sm:$0xff] %v533
                  %v535 = vld [vmem:[%s453 + $0x140] sm:$0xff]
                  %536 = vst [vmem:[%s454 + $0x140] sm:$0xff] %v535
                  %v537 = vld [vmem:[%s453 + $0x148] sm:$0xff]
                  %538 = vst [vmem:[%s454 + $0x148] sm:$0xff] %v537
                  %v539 = vld [vmem:[%s453 + $0x150] sm:$0xff]
                  %540 = vst [vmem:[%s454 + $0x150] sm:$0xff] %v539
                  %v541 = vld [vmem:[%s453 + $0x158] sm:$0xff]
                  %542 = vst [vmem:[%s454 + $0x158] sm:$0xff] %v541
                  %v543 = vld [vmem:[%s453 + $0x160] sm:$0xff]
                  %544 = vst [vmem:[%s454 + $0x160] sm:$0xff] %v543
                  %v545 = vld [vmem:[%s453 + $0x168] sm:$0xff]
                  %546 = vst [vmem:[%s454 + $0x168] sm:$0xff] %v545
                  %v547 = vld [vmem:[%s453 + $0x170] sm:$0xff]
                  %548 = vst [vmem:[%s454 + $0x170] sm:$0xff] %v547
                  %v549 = vld [vmem:[%s453 + $0x178] sm:$0xff]
                  %550 = vst [vmem:[%s454 + $0x178] sm:$0xff] %v549
                  %v551 = vld [vmem:[%s453 + $0x300] sm:$0xff]
                  %552 = vst [vmem:[%s454 + $0x180] sm:$0xff] %v551
                  %v553 = vld [vmem:[%s453 + $0x308] sm:$0xff]
                  %554 = vst [vmem:[%s454 + $0x188] sm:$0xff] %v553
                  %v555 = vld [vmem:[%s453 + $0x310] sm:$0xff]
                  %556 = vst [vmem:[%s454 + $0x190] sm:$0xff] %v555
                  %v557 = vld [vmem:[%s453 + $0x318] sm:$0xff]
                  %558 = vst [vmem:[%s454 + $0x198] sm:$0xff] %v557
                  %v559 = vld [vmem:[%s453 + $0x320] sm:$0xff]
                  %560 = vst [vmem:[%s454 + $0x1a0] sm:$0xff] %v559
                  %v561 = vld [vmem:[%s453 + $0x328] sm:$0xff]
                  %562 = vst [vmem:[%s454 + $0x1a8] sm:$0xff] %v561
                  %v563 = vld [vmem:[%s453 + $0x330] sm:$0xff]
                  %564 = vst [vmem:[%s454 + $0x1b0] sm:$0xff] %v563
                  %v565 = vld [vmem:[%s453 + $0x338] sm:$0xff]
                  %566 = vst [vmem:[%s454 + $0x1b8] sm:$0xff] %v565
                  %v567 = vld [vmem:[%s453 + $0x340] sm:$0xff]
                  %568 = vst [vmem:[%s454 + $0x1c0] sm:$0xff] %v567
                  %v569 = vld [vmem:[%s453 + $0x348] sm:$0xff]
                  %570 = vst [vmem:[%s454 + $0x1c8] sm:$0xff] %v569
                  %v571 = vld [vmem:[%s453 + $0x350] sm:$0xff]
                  %572 = vst [vmem:[%s454 + $0x1d0] sm:$0xff] %v571
                  %v573 = vld [vmem:[%s453 + $0x358] sm:$0xff]
                  %574 = vst [vmem:[%s454 + $0x1d8] sm:$0xff] %v573
                  %v575 = vld [vmem:[%s453 + $0x360] sm:$0xff]
                  %576 = vst [vmem:[%s454 + $0x1e0] sm:$0xff] %v575
                  %v577 = vld [vmem:[%s453 + $0x368] sm:$0xff]
                  %578 = vst [vmem:[%s454 + $0x1e8] sm:$0xff] %v577
                  %v579 = vld [vmem:[%s453 + $0x370] sm:$0xff]
                  %580 = vst [vmem:[%s454 + $0x1f0] sm:$0xff] %v579
                  %v581 = vld [vmem:[%s453 + $0x378] sm:$0xff]
                  %582 = vst [vmem:[%s454 + $0x1f8] sm:$0xff] %v581
                  %v583 = vld [vmem:[%s453 + $0x380] sm:$0xff]
                  %584 = vst [vmem:[%s454 + $0x200] sm:$0xff] %v583
                  %v585 = vld [vmem:[%s453 + $0x388] sm:$0xff]
                  %586 = vst [vmem:[%s454 + $0x208] sm:$0xff] %v585
                  %v587 = vld [vmem:[%s453 + $0x390] sm:$0xff]
                  %588 = vst [vmem:[%s454 + $0x210] sm:$0xff] %v587
                  %v589 = vld [vmem:[%s453 + $0x398] sm:$0xff]
                  %590 = vst [vmem:[%s454 + $0x218] sm:$0xff] %v589
                  %v591 = vld [vmem:[%s453 + $0x3a0] sm:$0xff]
                  %592 = vst [vmem:[%s454 + $0x220] sm:$0xff] %v591
                  %v593 = vld [vmem:[%s453 + $0x3a8] sm:$0xff]
                  %594 = vst [vmem:[%s454 + $0x228] sm:$0xff] %v593
                  %v595 = vld [vmem:[%s453 + $0x3b0] sm:$0xff]
                  %596 = vst [vmem:[%s454 + $0x230] sm:$0xff] %v595
                  %v597 = vld [vmem:[%s453 + $0x3b8] sm:$0xff]
                  %598 = vst [vmem:[%s454 + $0x238] sm:$0xff] %v597
                  %v599 = vld [vmem:[%s453 + $0x3c0] sm:$0xff]
                  %600 = vst [vmem:[%s454 + $0x240] sm:$0xff] %v599
                  %v601 = vld [vmem:[%s453 + $0x3c8] sm:$0xff]
                  %602 = vst [vmem:[%s454 + $0x248] sm:$0xff] %v601
                  %v603 = vld [vmem:[%s453 + $0x3d0] sm:$0xff]
                  %604 = vst [vmem:[%s454 + $0x250] sm:$0xff] %v603
                  %v605 = vld [vmem:[%s453 + $0x3d8] sm:$0xff]
                  %606 = vst [vmem:[%s454 + $0x258] sm:$0xff] %v605
                  %v607 = vld [vmem:[%s453 + $0x3e0] sm:$0xff]
                  %608 = vst [vmem:[%s454 + $0x260] sm:$0xff] %v607
                  %v609 = vld [vmem:[%s453 + $0x3e8] sm:$0xff]
                  %610 = vst [vmem:[%s454 + $0x268] sm:$0xff] %v609
                  %v611 = vld [vmem:[%s453 + $0x3f0] sm:$0xff]
                  %612 = vst [vmem:[%s454 + $0x270] sm:$0xff] %v611
                  %v613 = vld [vmem:[%s453 + $0x3f8] sm:$0xff]
                  %614 = vst [vmem:[%s454 + $0x278] sm:$0xff] %v613
                  %v615 = vld [vmem:[%s453 + $0x400] sm:$0xff]
                  %616 = vst [vmem:[%s454 + $0x280] sm:$0xff] %v615
                  %v617 = vld [vmem:[%s453 + $0x408] sm:$0xff]
                  %618 = vst [vmem:[%s454 + $0x288] sm:$0xff] %v617
                  %v619 = vld [vmem:[%s453 + $0x410] sm:$0xff]
                  %620 = vst [vmem:[%s454 + $0x290] sm:$0xff] %v619
                  %v621 = vld [vmem:[%s453 + $0x418] sm:$0xff]
                  %622 = vst [vmem:[%s454 + $0x298] sm:$0xff] %v621
                  %v623 = vld [vmem:[%s453 + $0x420] sm:$0xff]
                  %624 = vst [vmem:[%s454 + $0x2a0] sm:$0xff] %v623
                  %v625 = vld [vmem:[%s453 + $0x428] sm:$0xff]
                  %626 = vst [vmem:[%s454 + $0x2a8] sm:$0xff] %v625
                  %v627 = vld [vmem:[%s453 + $0x430] sm:$0xff]
                  %628 = vst [vmem:[%s454 + $0x2b0] sm:$0xff] %v627
                  %v629 = vld [vmem:[%s453 + $0x438] sm:$0xff]
                  %630 = vst [vmem:[%s454 + $0x2b8] sm:$0xff] %v629
                  %v631 = vld [vmem:[%s453 + $0x440] sm:$0xff]
                  %632 = vst [vmem:[%s454 + $0x2c0] sm:$0xff] %v631
                  %v633 = vld [vmem:[%s453 + $0x448] sm:$0xff]
                  %634 = vst [vmem:[%s454 + $0x2c8] sm:$0xff] %v633
                  %v635 = vld [vmem:[%s453 + $0x450] sm:$0xff]
                  %636 = vst [vmem:[%s454 + $0x2d0] sm:$0xff] %v635
                  %v637 = vld [vmem:[%s453 + $0x458] sm:$0xff]
                  %638 = vst [vmem:[%s454 + $0x2d8] sm:$0xff] %v637
                  %v639 = vld [vmem:[%s453 + $0x460] sm:$0xff]
                  %640 = vst [vmem:[%s454 + $0x2e0] sm:$0xff] %v639
                  %v641 = vld [vmem:[%s453 + $0x468] sm:$0xff]
                  %642 = vst [vmem:[%s454 + $0x2e8] sm:$0xff] %v641
                  %v643 = vld [vmem:[%s453 + $0x470] sm:$0xff]
                  %644 = vst [vmem:[%s454 + $0x2f0] sm:$0xff] %v643
                  %v645 = vld [vmem:[%s453 + $0x478] sm:$0xff]
                  %646 = vst [vmem:[%s454 + $0x2f8] sm:$0xff] %v645
                  %v647 = vld [vmem:[%s453 + $0x600] sm:$0xff]
                  %648 = vst [vmem:[%s454 + $0x300] sm:$0xff] %v647
                  %v649 = vld [vmem:[%s453 + $0x608] sm:$0xff]
                  %650 = vst [vmem:[%s454 + $0x308] sm:$0xff] %v649
                  %v651 = vld [vmem:[%s453 + $0x610] sm:$0xff]
                  %652 = vst [vmem:[%s454 + $0x310] sm:$0xff] %v651
                  %v653 = vld [vmem:[%s453 + $0x618] sm:$0xff]
                  %654 = vst [vmem:[%s454 + $0x318] sm:$0xff] %v653
                  %v655 = vld [vmem:[%s453 + $0x620] sm:$0xff]
                  %656 = vst [vmem:[%s454 + $0x320] sm:$0xff] %v655
                  %v657 = vld [vmem:[%s453 + $0x628] sm:$0xff]
                  %658 = vst [vmem:[%s454 + $0x328] sm:$0xff] %v657
                  %v659 = vld [vmem:[%s453 + $0x630] sm:$0xff]
                  %660 = vst [vmem:[%s454 + $0x330] sm:$0xff] %v659
                  %v661 = vld [vmem:[%s453 + $0x638] sm:$0xff]
                  %662 = vst [vmem:[%s454 + $0x338] sm:$0xff] %v661
                  %v663 = vld [vmem:[%s453 + $0x640] sm:$0xff]
                  %664 = vst [vmem:[%s454 + $0x340] sm:$0xff] %v663
                  %v665 = vld [vmem:[%s453 + $0x648] sm:$0xff]
                  %666 = vst [vmem:[%s454 + $0x348] sm:$0xff] %v665
                  %v667 = vld [vmem:[%s453 + $0x650] sm:$0xff]
                  %668 = vst [vmem:[%s454 + $0x350] sm:$0xff] %v667
                  %v669 = vld [vmem:[%s453 + $0x658] sm:$0xff]
                  %670 = vst [vmem:[%s454 + $0x358] sm:$0xff] %v669
                  %v671 = vld [vmem:[%s453 + $0x660] sm:$0xff]
                  %672 = vst [vmem:[%s454 + $0x360] sm:$0xff] %v671
                  %v673 = vld [vmem:[%s453 + $0x668] sm:$0xff]
                  %674 = vst [vmem:[%s454 + $0x368] sm:$0xff] %v673
                  %v675 = vld [vmem:[%s453 + $0x670] sm:$0xff]
                  %676 = vst [vmem:[%s454 + $0x370] sm:$0xff] %v675
                  %v677 = vld [vmem:[%s453 + $0x678] sm:$0xff]
                  %678 = vst [vmem:[%s454 + $0x378] sm:$0xff] %v677
                  %v679 = vld [vmem:[%s453 + $0x680] sm:$0xff]
                  %680 = vst [vmem:[%s454 + $0x380] sm:$0xff] %v679
                  %v681 = vld [vmem:[%s453 + $0x688] sm:$0xff]
                  %682 = vst [vmem:[%s454 + $0x388] sm:$0xff] %v681
                  %v683 = vld [vmem:[%s453 + $0x690] sm:$0xff]
                  %684 = vst [vmem:[%s454 + $0x390] sm:$0xff] %v683
                  %v685 = vld [vmem:[%s453 + $0x698] sm:$0xff]
                  %686 = vst [vmem:[%s454 + $0x398] sm:$0xff] %v685
                  %v687 = vld [vmem:[%s453 + $0x6a0] sm:$0xff]
                  %688 = vst [vmem:[%s454 + $0x3a0] sm:$0xff] %v687
                  %v689 = vld [vmem:[%s453 + $0x6a8] sm:$0xff]
                  %690 = vst [vmem:[%s454 + $0x3a8] sm:$0xff] %v689
                  %v691 = vld [vmem:[%s453 + $0x6b0] sm:$0xff]
                  %692 = vst [vmem:[%s454 + $0x3b0] sm:$0xff] %v691
                  %v693 = vld [vmem:[%s453 + $0x6b8] sm:$0xff]
                  %694 = vst [vmem:[%s454 + $0x3b8] sm:$0xff] %v693
                  %v695 = vld [vmem:[%s453 + $0x6c0] sm:$0xff]
                  %696 = vst [vmem:[%s454 + $0x3c0] sm:$0xff] %v695
                  %v697 = vld [vmem:[%s453 + $0x6c8] sm:$0xff]
                  %698 = vst [vmem:[%s454 + $0x3c8] sm:$0xff] %v697
                  %v699 = vld [vmem:[%s453 + $0x6d0] sm:$0xff]
                  %700 = vst [vmem:[%s454 + $0x3d0] sm:$0xff] %v699
                  %v701 = vld [vmem:[%s453 + $0x6d8] sm:$0xff]
                  %702 = vst [vmem:[%s454 + $0x3d8] sm:$0xff] %v701
                  %v703 = vld [vmem:[%s453 + $0x6e0] sm:$0xff]
                  %704 = vst [vmem:[%s454 + $0x3e0] sm:$0xff] %v703
                  %v705 = vld [vmem:[%s453 + $0x6e8] sm:$0xff]
                  %706 = vst [vmem:[%s454 + $0x3e8] sm:$0xff] %v705
                  %v707 = vld [vmem:[%s453 + $0x6f0] sm:$0xff]
                  %708 = vst [vmem:[%s454 + $0x3f0] sm:$0xff] %v707
                  %v709 = vld [vmem:[%s453 + $0x6f8] sm:$0xff]
                  %710 = vst [vmem:[%s454 + $0x3f8] sm:$0xff] %v709
                  %v711 = vld [vmem:[%s453 + $0x700] sm:$0xff]
                  %712 = vst [vmem:[%s454 + $0x400] sm:$0xff] %v711
                  %v713 = vld [vmem:[%s453 + $0x708] sm:$0xff]
                  %714 = vst [vmem:[%s454 + $0x408] sm:$0xff] %v713
                  %v715 = vld [vmem:[%s453 + $0x710] sm:$0xff]
                  %716 = vst [vmem:[%s454 + $0x410] sm:$0xff] %v715
                  %v717 = vld [vmem:[%s453 + $0x718] sm:$0xff]
                  %718 = vst [vmem:[%s454 + $0x418] sm:$0xff] %v717
                  %v719 = vld [vmem:[%s453 + $0x720] sm:$0xff]
                  %720 = vst [vmem:[%s454 + $0x420] sm:$0xff] %v719
                  %v721 = vld [vmem:[%s453 + $0x728] sm:$0xff]
                  %722 = vst [vmem:[%s454 + $0x428] sm:$0xff] %v721
                  %v723 = vld [vmem:[%s453 + $0x730] sm:$0xff]
                  %724 = vst [vmem:[%s454 + $0x430] sm:$0xff] %v723
                  %v725 = vld [vmem:[%s453 + $0x738] sm:$0xff]
                  %726 = vst [vmem:[%s454 + $0x438] sm:$0xff] %v725
                  %v727 = vld [vmem:[%s453 + $0x740] sm:$0xff]
                  %728 = vst [vmem:[%s454 + $0x440] sm:$0xff] %v727
                  %v729 = vld [vmem:[%s453 + $0x748] sm:$0xff]
                  %730 = vst [vmem:[%s454 + $0x448] sm:$0xff] %v729
                  %v731 = vld [vmem:[%s453 + $0x750] sm:$0xff]
                  %732 = vst [vmem:[%s454 + $0x450] sm:$0xff] %v731
                  %v733 = vld [vmem:[%s453 + $0x758] sm:$0xff]
                  %734 = vst [vmem:[%s454 + $0x458] sm:$0xff] %v733
                  %v735 = vld [vmem:[%s453 + $0x760] sm:$0xff]
                  %736 = vst [vmem:[%s454 + $0x460] sm:$0xff] %v735
                  %v737 = vld [vmem:[%s453 + $0x768] sm:$0xff]
                  %738 = vst [vmem:[%s454 + $0x468] sm:$0xff] %v737
                  %v739 = vld [vmem:[%s453 + $0x770] sm:$0xff]
                  %740 = vst [vmem:[%s454 + $0x470] sm:$0xff] %v739
                  %v741 = vld [vmem:[%s453 + $0x778] sm:$0xff]
                  %742 = vst [vmem:[%s454 + $0x478] sm:$0xff] %v741
                $region56: #{tpu_custom_call.1} parent=50 // loop_footer
                  %s452 = sadd.s32 1, %s448
                $region57: #{tpu_custom_call.1} parent=50 // loop_footer_branch
                  %447 = sbr.rel target = $region53
                $region58: #{tpu_custom_call.1} parent=50 // loop_exit
                  _
              $region51: #{tpu_custom_call.1} parent=35 // pred_fallthru
                _
              // Predicated region
              $region59: #{tpu_custom_call.1} parent=35 // pred_check
                _
              $region60: #{tpu_custom_call.1} parent=35 // pred_check_branch
                %744 = sbr.rel target = $region62
              $region61: #{tpu_custom_call.1} parent=35 // pred_region
                _
              $region62: #{tpu_custom_call.1} parent=35 // pred_fallthru
                _
            $region36: #{tpu_custom_call.1} parent=31 // pred_fallthru
              _
            // Predicated region
            $region37: #{tpu_custom_call.1} parent=31 // pred_check
              _
            $region38: #{tpu_custom_call.1} parent=31 // pred_check_branch
              %147 = sbr.rel target = $region40
            $region39: #{tpu_custom_call.1} parent=31 // pred_region
              loop: start=0, step=1, limit=1
              $region41: #{tpu_custom_call.1} parent=39 // loop_pre_header
                _
              $region42: #{tpu_custom_call.1} parent=39 // loop_header
                %s150 = sphi 0, %s154
                %p151 = scmp.ge.s32.totalorder %s150, 1
                %s155 = sphi %s141, %s141
                %s156 = sphi %s137, %s137
              $region43: #{tpu_custom_call.1} parent=39 // loop_header_branch
                %153 = sbr.rel (%p151) target = $region47
              $region44: #{tpu_custom_call.1} parent=39 // loop_body
                %v157 = vld [vmem:[%s155] sm:$0xff]
                %158 = vst [vmem:[%s156] sm:$0xff] %v157
                %v159 = vld [vmem:[%s155 + $0x8] sm:$0xff]
                %160 = vst [vmem:[%s156 + $0x8] sm:$0xff] %v159
                %v161 = vld [vmem:[%s155 + $0x10] sm:$0xff]
                %162 = vst [vmem:[%s156 + $0x10] sm:$0xff] %v161
                %v163 = vld [vmem:[%s155 + $0x18] sm:$0xff]
                %164 = vst [vmem:[%s156 + $0x18] sm:$0xff] %v163
                %v165 = vld [vmem:[%s155 + $0x20] sm:$0xff]
                %166 = vst [vmem:[%s156 + $0x20] sm:$0xff] %v165
                %v167 = vld [vmem:[%s155 + $0x28] sm:$0xff]
                %168 = vst [vmem:[%s156 + $0x28] sm:$0xff] %v167
                %v169 = vld [vmem:[%s155 + $0x30] sm:$0xff]
                %170 = vst [vmem:[%s156 + $0x30] sm:$0xff] %v169
                %v171 = vld [vmem:[%s155 + $0x38] sm:$0xff]
                %172 = vst [vmem:[%s156 + $0x38] sm:$0xff] %v171
                %v173 = vld [vmem:[%s155 + $0x40] sm:$0xff]
                %174 = vst [vmem:[%s156 + $0x40] sm:$0xff] %v173
                %v175 = vld [vmem:[%s155 + $0x48] sm:$0xff]
                %176 = vst [vmem:[%s156 + $0x48] sm:$0xff] %v175
                %v177 = vld [vmem:[%s155 + $0x50] sm:$0xff]
                %178 = vst [vmem:[%s156 + $0x50] sm:$0xff] %v177
                %v179 = vld [vmem:[%s155 + $0x58] sm:$0xff]
                %180 = vst [vmem:[%s156 + $0x58] sm:$0xff] %v179
                %v181 = vld [vmem:[%s155 + $0x60] sm:$0xff]
                %182 = vst [vmem:[%s156 + $0x60] sm:$0xff] %v181
                %v183 = vld [vmem:[%s155 + $0x68] sm:$0xff]
                %184 = vst [vmem:[%s156 + $0x68] sm:$0xff] %v183
                %v185 = vld [vmem:[%s155 + $0x70] sm:$0xff]
                %186 = vst [vmem:[%s156 + $0x70] sm:$0xff] %v185
                %v187 = vld [vmem:[%s155 + $0x78] sm:$0xff]
                %188 = vst [vmem:[%s156 + $0x78] sm:$0xff] %v187
                %v189 = vld [vmem:[%s155 + $0x80] sm:$0xff]
                %190 = vst [vmem:[%s156 + $0x80] sm:$0xff] %v189
                %v191 = vld [vmem:[%s155 + $0x88] sm:$0xff]
                %192 = vst [vmem:[%s156 + $0x88] sm:$0xff] %v191
                %v193 = vld [vmem:[%s155 + $0x90] sm:$0xff]
                %194 = vst [vmem:[%s156 + $0x90] sm:$0xff] %v193
                %v195 = vld [vmem:[%s155 + $0x98] sm:$0xff]
                %196 = vst [vmem:[%s156 + $0x98] sm:$0xff] %v195
                %v197 = vld [vmem:[%s155 + $0xa0] sm:$0xff]
                %198 = vst [vmem:[%s156 + $0xa0] sm:$0xff] %v197
                %v199 = vld [vmem:[%s155 + $0xa8] sm:$0xff]
                %200 = vst [vmem:[%s156 + $0xa8] sm:$0xff] %v199
                %v201 = vld [vmem:[%s155 + $0xb0] sm:$0xff]
                %202 = vst [vmem:[%s156 + $0xb0] sm:$0xff] %v201
                %v203 = vld [vmem:[%s155 + $0xb8] sm:$0xff]
                %204 = vst [vmem:[%s156 + $0xb8] sm:$0xff] %v203
                %v205 = vld [vmem:[%s155 + $0xc0] sm:$0xff]
                %206 = vst [vmem:[%s156 + $0xc0] sm:$0xff] %v205
                %v207 = vld [vmem:[%s155 + $0xc8] sm:$0xff]
                %208 = vst [vmem:[%s156 + $0xc8] sm:$0xff] %v207
                %v209 = vld [vmem:[%s155 + $0xd0] sm:$0xff]
                %210 = vst [vmem:[%s156 + $0xd0] sm:$0xff] %v209
                %v211 = vld [vmem:[%s155 + $0xd8] sm:$0xff]
                %212 = vst [vmem:[%s156 + $0xd8] sm:$0xff] %v211
                %v213 = vld [vmem:[%s155 + $0xe0] sm:$0xff]
                %214 = vst [vmem:[%s156 + $0xe0] sm:$0xff] %v213
                %v215 = vld [vmem:[%s155 + $0xe8] sm:$0xff]
                %216 = vst [vmem:[%s156 + $0xe8] sm:$0xff] %v215
                %v217 = vld [vmem:[%s155 + $0xf0] sm:$0xff]
                %218 = vst [vmem:[%s156 + $0xf0] sm:$0xff] %v217
                %v219 = vld [vmem:[%s155 + $0xf8] sm:$0xff]
                %220 = vst [vmem:[%s156 + $0xf8] sm:$0xff] %v219
                %v221 = vld [vmem:[%s155 + $0x100] sm:$0xff]
                %222 = vst [vmem:[%s156 + $0x100] sm:$0xff] %v221
                %v223 = vld [vmem:[%s155 + $0x108] sm:$0xff]
                %224 = vst [vmem:[%s156 + $0x108] sm:$0xff] %v223
                %v225 = vld [vmem:[%s155 + $0x110] sm:$0xff]
                %226 = vst [vmem:[%s156 + $0x110] sm:$0xff] %v225
                %v227 = vld [vmem:[%s155 + $0x118] sm:$0xff]
                %228 = vst [vmem:[%s156 + $0x118] sm:$0xff] %v227
                %v229 = vld [vmem:[%s155 + $0x120] sm:$0xff]
                %230 = vst [vmem:[%s156 + $0x120] sm:$0xff] %v229
                %v231 = vld [vmem:[%s155 + $0x128] sm:$0xff]
                %232 = vst [vmem:[%s156 + $0x128] sm:$0xff] %v231
                %v233 = vld [vmem:[%s155 + $0x130] sm:$0xff]
                %234 = vst [vmem:[%s156 + $0x130] sm:$0xff] %v233
                %v235 = vld [vmem:[%s155 + $0x138] sm:$0xff]
                %236 = vst [vmem:[%s156 + $0x138] sm:$0xff] %v235
                %v237 = vld [vmem:[%s155 + $0x140] sm:$0xff]
                %238 = vst [vmem:[%s156 + $0x140] sm:$0xff] %v237
                %v239 = vld [vmem:[%s155 + $0x148] sm:$0xff]
                %240 = vst [vmem:[%s156 + $0x148] sm:$0xff] %v239
                %v241 = vld [vmem:[%s155 + $0x150] sm:$0xff]
                %242 = vst [vmem:[%s156 + $0x150] sm:$0xff] %v241
                %v243 = vld [vmem:[%s155 + $0x158] sm:$0xff]
                %244 = vst [vmem:[%s156 + $0x158] sm:$0xff] %v243
                %v245 = vld [vmem:[%s155 + $0x160] sm:$0xff]
                %246 = vst [vmem:[%s156 + $0x160] sm:$0xff] %v245
                %v247 = vld [vmem:[%s155 + $0x168] sm:$0xff]
                %248 = vst [vmem:[%s156 + $0x168] sm:$0xff] %v247
                %v249 = vld [vmem:[%s155 + $0x170] sm:$0xff]
                %250 = vst [vmem:[%s156 + $0x170] sm:$0xff] %v249
                %v251 = vld [vmem:[%s155 + $0x178] sm:$0xff]
                %252 = vst [vmem:[%s156 + $0x178] sm:$0xff] %v251
                %v253 = vld [vmem:[%s155 + $0x300] sm:$0xff]
                %254 = vst [vmem:[%s156 + $0x180] sm:$0xff] %v253
                %v255 = vld [vmem:[%s155 + $0x308] sm:$0xff]
                %256 = vst [vmem:[%s156 + $0x188] sm:$0xff] %v255
                %v257 = vld [vmem:[%s155 + $0x310] sm:$0xff]
                %258 = vst [vmem:[%s156 + $0x190] sm:$0xff] %v257
                %v259 = vld [vmem:[%s155 + $0x318] sm:$0xff]
                %260 = vst [vmem:[%s156 + $0x198] sm:$0xff] %v259
                %v261 = vld [vmem:[%s155 + $0x320] sm:$0xff]
                %262 = vst [vmem:[%s156 + $0x1a0] sm:$0xff] %v261
                %v263 = vld [vmem:[%s155 + $0x328] sm:$0xff]
                %264 = vst [vmem:[%s156 + $0x1a8] sm:$0xff] %v263
                %v265 = vld [vmem:[%s155 + $0x330] sm:$0xff]
                %266 = vst [vmem:[%s156 + $0x1b0] sm:$0xff] %v265
                %v267 = vld [vmem:[%s155 + $0x338] sm:$0xff]
                %268 = vst [vmem:[%s156 + $0x1b8] sm:$0xff] %v267
                %v269 = vld [vmem:[%s155 + $0x340] sm:$0xff]
                %270 = vst [vmem:[%s156 + $0x1c0] sm:$0xff] %v269
                %v271 = vld [vmem:[%s155 + $0x348] sm:$0xff]
                %272 = vst [vmem:[%s156 + $0x1c8] sm:$0xff] %v271
                %v273 = vld [vmem:[%s155 + $0x350] sm:$0xff]
                %274 = vst [vmem:[%s156 + $0x1d0] sm:$0xff] %v273
                %v275 = vld [vmem:[%s155 + $0x358] sm:$0xff]
                %276 = vst [vmem:[%s156 + $0x1d8] sm:$0xff] %v275
                %v277 = vld [vmem:[%s155 + $0x360] sm:$0xff]
                %278 = vst [vmem:[%s156 + $0x1e0] sm:$0xff] %v277
                %v279 = vld [vmem:[%s155 + $0x368] sm:$0xff]
                %280 = vst [vmem:[%s156 + $0x1e8] sm:$0xff] %v279
                %v281 = vld [vmem:[%s155 + $0x370] sm:$0xff]
                %282 = vst [vmem:[%s156 + $0x1f0] sm:$0xff] %v281
                %v283 = vld [vmem:[%s155 + $0x378] sm:$0xff]
                %284 = vst [vmem:[%s156 + $0x1f8] sm:$0xff] %v283
                %v285 = vld [vmem:[%s155 + $0x380] sm:$0xff]
                %286 = vst [vmem:[%s156 + $0x200] sm:$0xff] %v285
                %v287 = vld [vmem:[%s155 + $0x388] sm:$0xff]
                %288 = vst [vmem:[%s156 + $0x208] sm:$0xff] %v287
                %v289 = vld [vmem:[%s155 + $0x390] sm:$0xff]
                %290 = vst [vmem:[%s156 + $0x210] sm:$0xff] %v289
                %v291 = vld [vmem:[%s155 + $0x398] sm:$0xff]
                %292 = vst [vmem:[%s156 + $0x218] sm:$0xff] %v291
                %v293 = vld [vmem:[%s155 + $0x3a0] sm:$0xff]
                %294 = vst [vmem:[%s156 + $0x220] sm:$0xff] %v293
                %v295 = vld [vmem:[%s155 + $0x3a8] sm:$0xff]
                %296 = vst [vmem:[%s156 + $0x228] sm:$0xff] %v295
                %v297 = vld [vmem:[%s155 + $0x3b0] sm:$0xff]
                %298 = vst [vmem:[%s156 + $0x230] sm:$0xff] %v297
                %v299 = vld [vmem:[%s155 + $0x3b8] sm:$0xff]
                %300 = vst [vmem:[%s156 + $0x238] sm:$0xff] %v299
                %v301 = vld [vmem:[%s155 + $0x3c0] sm:$0xff]
                %302 = vst [vmem:[%s156 + $0x240] sm:$0xff] %v301
                %v303 = vld [vmem:[%s155 + $0x3c8] sm:$0xff]
                %304 = vst [vmem:[%s156 + $0x248] sm:$0xff] %v303
                %v305 = vld [vmem:[%s155 + $0x3d0] sm:$0xff]
                %306 = vst [vmem:[%s156 + $0x250] sm:$0xff] %v305
                %v307 = vld [vmem:[%s155 + $0x3d8] sm:$0xff]
                %308 = vst [vmem:[%s156 + $0x258] sm:$0xff] %v307
                %v309 = vld [vmem:[%s155 + $0x3e0] sm:$0xff]
                %310 = vst [vmem:[%s156 + $0x260] sm:$0xff] %v309
                %v311 = vld [vmem:[%s155 + $0x3e8] sm:$0xff]
                %312 = vst [vmem:[%s156 + $0x268] sm:$0xff] %v311
                %v313 = vld [vmem:[%s155 + $0x3f0] sm:$0xff]
                %314 = vst [vmem:[%s156 + $0x270] sm:$0xff] %v313
                %v315 = vld [vmem:[%s155 + $0x3f8] sm:$0xff]
                %316 = vst [vmem:[%s156 + $0x278] sm:$0xff] %v315
                %v317 = vld [vmem:[%s155 + $0x400] sm:$0xff]
                %318 = vst [vmem:[%s156 + $0x280] sm:$0xff] %v317
                %v319 = vld [vmem:[%s155 + $0x408] sm:$0xff]
                %320 = vst [vmem:[%s156 + $0x288] sm:$0xff] %v319
                %v321 = vld [vmem:[%s155 + $0x410] sm:$0xff]
                %322 = vst [vmem:[%s156 + $0x290] sm:$0xff] %v321
                %v323 = vld [vmem:[%s155 + $0x418] sm:$0xff]
                %324 = vst [vmem:[%s156 + $0x298] sm:$0xff] %v323
                %v325 = vld [vmem:[%s155 + $0x420] sm:$0xff]
                %326 = vst [vmem:[%s156 + $0x2a0] sm:$0xff] %v325
                %v327 = vld [vmem:[%s155 + $0x428] sm:$0xff]
                %328 = vst [vmem:[%s156 + $0x2a8] sm:$0xff] %v327
                %v329 = vld [vmem:[%s155 + $0x430] sm:$0xff]
                %330 = vst [vmem:[%s156 + $0x2b0] sm:$0xff] %v329
                %v331 = vld [vmem:[%s155 + $0x438] sm:$0xff]
                %332 = vst [vmem:[%s156 + $0x2b8] sm:$0xff] %v331
                %v333 = vld [vmem:[%s155 + $0x440] sm:$0xff]
                %334 = vst [vmem:[%s156 + $0x2c0] sm:$0xff] %v333
                %v335 = vld [vmem:[%s155 + $0x448] sm:$0xff]
                %336 = vst [vmem:[%s156 + $0x2c8] sm:$0xff] %v335
                %v337 = vld [vmem:[%s155 + $0x450] sm:$0xff]
                %338 = vst [vmem:[%s156 + $0x2d0] sm:$0xff] %v337
                %v339 = vld [vmem:[%s155 + $0x458] sm:$0xff]
                %340 = vst [vmem:[%s156 + $0x2d8] sm:$0xff] %v339
                %v341 = vld [vmem:[%s155 + $0x460] sm:$0xff]
                %342 = vst [vmem:[%s156 + $0x2e0] sm:$0xff] %v341
                %v343 = vld [vmem:[%s155 + $0x468] sm:$0xff]
                %344 = vst [vmem:[%s156 + $0x2e8] sm:$0xff] %v343
                %v345 = vld [vmem:[%s155 + $0x470] sm:$0xff]
                %346 = vst [vmem:[%s156 + $0x2f0] sm:$0xff] %v345
                %v347 = vld [vmem:[%s155 + $0x478] sm:$0xff]
                %348 = vst [vmem:[%s156 + $0x2f8] sm:$0xff] %v347
                %v349 = vld [vmem:[%s155 + $0x600] sm:$0xff]
                %350 = vst [vmem:[%s156 + $0x300] sm:$0xff] %v349
                %v351 = vld [vmem:[%s155 + $0x608] sm:$0xff]
                %352 = vst [vmem:[%s156 + $0x308] sm:$0xff] %v351
                %v353 = vld [vmem:[%s155 + $0x610] sm:$0xff]
                %354 = vst [vmem:[%s156 + $0x310] sm:$0xff] %v353
                %v355 = vld [vmem:[%s155 + $0x618] sm:$0xff]
                %356 = vst [vmem:[%s156 + $0x318] sm:$0xff] %v355
                %v357 = vld [vmem:[%s155 + $0x620] sm:$0xff]
                %358 = vst [vmem:[%s156 + $0x320] sm:$0xff] %v357
                %v359 = vld [vmem:[%s155 + $0x628] sm:$0xff]
                %360 = vst [vmem:[%s156 + $0x328] sm:$0xff] %v359
                %v361 = vld [vmem:[%s155 + $0x630] sm:$0xff]
                %362 = vst [vmem:[%s156 + $0x330] sm:$0xff] %v361
                %v363 = vld [vmem:[%s155 + $0x638] sm:$0xff]
                %364 = vst [vmem:[%s156 + $0x338] sm:$0xff] %v363
                %v365 = vld [vmem:[%s155 + $0x640] sm:$0xff]
                %366 = vst [vmem:[%s156 + $0x340] sm:$0xff] %v365
                %v367 = vld [vmem:[%s155 + $0x648] sm:$0xff]
                %368 = vst [vmem:[%s156 + $0x348] sm:$0xff] %v367
                %v369 = vld [vmem:[%s155 + $0x650] sm:$0xff]
                %370 = vst [vmem:[%s156 + $0x350] sm:$0xff] %v369
                %v371 = vld [vmem:[%s155 + $0x658] sm:$0xff]
                %372 = vst [vmem:[%s156 + $0x358] sm:$0xff] %v371
                %v373 = vld [vmem:[%s155 + $0x660] sm:$0xff]
                %374 = vst [vmem:[%s156 + $0x360] sm:$0xff] %v373
                %v375 = vld [vmem:[%s155 + $0x668] sm:$0xff]
                %376 = vst [vmem:[%s156 + $0x368] sm:$0xff] %v375
                %v377 = vld [vmem:[%s155 + $0x670] sm:$0xff]
                %378 = vst [vmem:[%s156 + $0x370] sm:$0xff] %v377
                %v379 = vld [vmem:[%s155 + $0x678] sm:$0xff]
                %380 = vst [vmem:[%s156 + $0x378] sm:$0xff] %v379
                %v381 = vld [vmem:[%s155 + $0x680] sm:$0xff]
                %382 = vst [vmem:[%s156 + $0x380] sm:$0xff] %v381
                %v383 = vld [vmem:[%s155 + $0x688] sm:$0xff]
                %384 = vst [vmem:[%s156 + $0x388] sm:$0xff] %v383
                %v385 = vld [vmem:[%s155 + $0x690] sm:$0xff]
                %386 = vst [vmem:[%s156 + $0x390] sm:$0xff] %v385
                %v387 = vld [vmem:[%s155 + $0x698] sm:$0xff]
                %388 = vst [vmem:[%s156 + $0x398] sm:$0xff] %v387
                %v389 = vld [vmem:[%s155 + $0x6a0] sm:$0xff]
                %390 = vst [vmem:[%s156 + $0x3a0] sm:$0xff] %v389
                %v391 = vld [vmem:[%s155 + $0x6a8] sm:$0xff]
                %392 = vst [vmem:[%s156 + $0x3a8] sm:$0xff] %v391
                %v393 = vld [vmem:[%s155 + $0x6b0] sm:$0xff]
                %394 = vst [vmem:[%s156 + $0x3b0] sm:$0xff] %v393
                %v395 = vld [vmem:[%s155 + $0x6b8] sm:$0xff]
                %396 = vst [vmem:[%s156 + $0x3b8] sm:$0xff] %v395
                %v397 = vld [vmem:[%s155 + $0x6c0] sm:$0xff]
                %398 = vst [vmem:[%s156 + $0x3c0] sm:$0xff] %v397
                %v399 = vld [vmem:[%s155 + $0x6c8] sm:$0xff]
                %400 = vst [vmem:[%s156 + $0x3c8] sm:$0xff] %v399
                %v401 = vld [vmem:[%s155 + $0x6d0] sm:$0xff]
                %402 = vst [vmem:[%s156 + $0x3d0] sm:$0xff] %v401
                %v403 = vld [vmem:[%s155 + $0x6d8] sm:$0xff]
                %404 = vst [vmem:[%s156 + $0x3d8] sm:$0xff] %v403
                %v405 = vld [vmem:[%s155 + $0x6e0] sm:$0xff]
                %406 = vst [vmem:[%s156 + $0x3e0] sm:$0xff] %v405
                %v407 = vld [vmem:[%s155 + $0x6e8] sm:$0xff]
                %408 = vst [vmem:[%s156 + $0x3e8] sm:$0xff] %v407
                %v409 = vld [vmem:[%s155 + $0x6f0] sm:$0xff]
                %410 = vst [vmem:[%s156 + $0x3f0] sm:$0xff] %v409
                %v411 = vld [vmem:[%s155 + $0x6f8] sm:$0xff]
                %412 = vst [vmem:[%s156 + $0x3f8] sm:$0xff] %v411
                %v413 = vld [vmem:[%s155 + $0x700] sm:$0xff]
                %414 = vst [vmem:[%s156 + $0x400] sm:$0xff] %v413
                %v415 = vld [vmem:[%s155 + $0x708] sm:$0xff]
                %416 = vst [vmem:[%s156 + $0x408] sm:$0xff] %v415
                %v417 = vld [vmem:[%s155 + $0x710] sm:$0xff]
                %418 = vst [vmem:[%s156 + $0x410] sm:$0xff] %v417
                %v419 = vld [vmem:[%s155 + $0x718] sm:$0xff]
                %420 = vst [vmem:[%s156 + $0x418] sm:$0xff] %v419
                %v421 = vld [vmem:[%s155 + $0x720] sm:$0xff]
                %422 = vst [vmem:[%s156 + $0x420] sm:$0xff] %v421
                %v423 = vld [vmem:[%s155 + $0x728] sm:$0xff]
                %424 = vst [vmem:[%s156 + $0x428] sm:$0xff] %v423
                %v425 = vld [vmem:[%s155 + $0x730] sm:$0xff]
                %426 = vst [vmem:[%s156 + $0x430] sm:$0xff] %v425
                %v427 = vld [vmem:[%s155 + $0x738] sm:$0xff]
                %428 = vst [vmem:[%s156 + $0x438] sm:$0xff] %v427
                %v429 = vld [vmem:[%s155 + $0x740] sm:$0xff]
                %430 = vst [vmem:[%s156 + $0x440] sm:$0xff] %v429
                %v431 = vld [vmem:[%s155 + $0x748] sm:$0xff]
                %432 = vst [vmem:[%s156 + $0x448] sm:$0xff] %v431
                %v433 = vld [vmem:[%s155 + $0x750] sm:$0xff]
                %434 = vst [vmem:[%s156 + $0x450] sm:$0xff] %v433
                %v435 = vld [vmem:[%s155 + $0x758] sm:$0xff]
                %436 = vst [vmem:[%s156 + $0x458] sm:$0xff] %v435
                %v437 = vld [vmem:[%s155 + $0x760] sm:$0xff]
                %438 = vst [vmem:[%s156 + $0x460] sm:$0xff] %v437
                %v439 = vld [vmem:[%s155 + $0x768] sm:$0xff]
                %440 = vst [vmem:[%s156 + $0x468] sm:$0xff] %v439
                %v441 = vld [vmem:[%s155 + $0x770] sm:$0xff]
                %442 = vst [vmem:[%s156 + $0x470] sm:$0xff] %v441
                %v443 = vld [vmem:[%s155 + $0x778] sm:$0xff]
                %444 = vst [vmem:[%s156 + $0x478] sm:$0xff] %v443
              $region45: #{tpu_custom_call.1} parent=39 // loop_footer
                %s154 = sadd.s32 1, %s150
              $region46: #{tpu_custom_call.1} parent=39 // loop_footer_branch
                %149 = sbr.rel target = $region42
              $region47: #{tpu_custom_call.1} parent=39 // loop_exit
                _
            $region40: #{tpu_custom_call.1} parent=31 // pred_fallthru
              _
          $region32: #{tpu_custom_call.1} parent=27 // pred_fallthru
            _
          %745 = vnop
        $region28: #{tpu_custom_call.1} parent=23 // pred_fallthru
          _
      $region24: #{tpu_custom_call.1} parent=5 // pred_fallthru
        _
      %p746 = scmp.le.s32.totalorder 1, %s12
      %p747 = scmp.lt.s32.totalorder %s12, 3
      %p748 = pnand %p746, %p747
      %p749 = pneg %p748
      // Predicated region
      $region63: #{tpu_custom_call.1} parent=5 // pred_check
        _
      $region64: #{tpu_custom_call.1} parent=5 // pred_check_branch
        %751 = sbr.rel (%p748) target = $region66
      $region65: #{tpu_custom_call.1} parent=5 // pred_region
        %s752 = ssub.s32 %s12, 1
        %s753 = sand.u32 %s25, 1
        %s754 = sand.u32 %s25, 1
        %s755 = smul.addr %s754, 1152
        %s756 = scalar_lea.vmem [#allocation3], %s755
        // Predicated region
        $region67: #{tpu_custom_call.1} parent=65 // pred_check
          %p757 = pneg %p38
        $region68: #{tpu_custom_call.1} parent=65 // pred_check_branch
          %759 = sbr.rel (%p757) target = $region70
        $region69: #{tpu_custom_call.1} parent=65 // pred_region
          _
        $region70: #{tpu_custom_call.1} parent=65 // pred_fallthru
          _
        %s760 = sand.u32 %s25, 1
        %s761 = sand.u32 %s25, 1
        %s762 = smul.addr %s761, 1152
        %s763 = scalar_lea.vmem [#allocation3], %s762
        %p764 = pneg %p38
        %p765 = pneg %p35
        %p766 = pneg %p59
        %p767 = pneg %p56
        %p768 = pneg %p80
        %p769 = pneg %p77
        %p770 = pneg %p106
        %p771 = pneg %p103
        %s772 = sand.u32 %s93, 1
        %s773 = scalar_lea.sflag [#allocation5], %s772
        %s774 = sand.u32 %s93, 1
        %s775 = smul.addr %s774, 256
        %s776 = scalar_lea.vmem [#allocation4], %s775
        %s777 = smul.u32 16, %s17
        %s778 = smul.u32 32, %s17
        %v779 = vld [vmem:[%s756] sm:$0xff]
        %v780 = vld [vmem:[%s756 + $0x8] sm:$0xff]
        %v781 = vld [vmem:[%s756 + $0x18] sm:$0xff]
        %v782 = vld [vmem:[%s756 + $0x20] sm:$0xff]
        %v783 = vld [vmem:[%s756 + $0x30] sm:$0xff]
        %v784 = vld [vmem:[%s756 + $0x38] sm:$0xff]
        %v785 = vld [vmem:[%s756 + $0x48] sm:$0xff]
        %v786 = vld [vmem:[%s756 + $0x50] sm:$0xff]
        %v787 = vld [vmem:[%s756 + $0x60] sm:$0xff]
        %v788 = vld [vmem:[%s756 + $0x68] sm:$0xff]
        %v789 = vld [vmem:[%s756 + $0x78] sm:$0xff]
        %v790 = vld [vmem:[%s756 + $0x80] sm:$0xff]
        %v791 = vld [vmem:[%s756 + $0x90] sm:$0xff]
        %v792 = vld [vmem:[%s756 + $0x98] sm:$0xff]
        %v793 = vld [vmem:[%s756 + $0xa8] sm:$0xff]
        %v794 = vld [vmem:[%s756 + $0xb0] sm:$0xff]
        %v795 = vld [vmem:[%s756 + $0xc0] sm:$0xff]
        %v796 = vld [vmem:[%s756 + $0xc8] sm:$0xff]
        %v797 = vld [vmem:[%s756 + $0xd8] sm:$0xff]
        %v798 = vld [vmem:[%s756 + $0xe0] sm:$0xff]
        %v799 = vld [vmem:[%s756 + $0xf0] sm:$0xff]
        %v800 = vld [vmem:[%s756 + $0xf8] sm:$0xff]
        %v801 = vld [vmem:[%s756 + $0x108] sm:$0xff]
        %v802 = vld [vmem:[%s756 + $0x110] sm:$0xff]
        %v803 = vld [vmem:[%s756 + $0x120] sm:$0xff]
        %v804 = vld [vmem:[%s756 + $0x128] sm:$0xff]
        %v805 = vld [vmem:[%s756 + $0x138] sm:$0xff]
        %v806 = vld [vmem:[%s756 + $0x140] sm:$0xff]
        %v807 = vld [vmem:[%s756 + $0x150] sm:$0xff]
        %v808 = vld [vmem:[%s756 + $0x158] sm:$0xff]
        %v809 = vld [vmem:[%s756 + $0x168] sm:$0xff]
        %v810 = vld [vmem:[%s756 + $0x170] sm:$0xff]
        %v811 = vld [vmem:[%s1] sm:$0xff]
        %v812 = vld [vmem:[%s1 + $0x8] sm:$0xff]
        %v813 = vld [vmem:[%s1 + $0x10] sm:$0xff]
        %v814 = vld [vmem:[%s1 + $0x18] sm:$0xff]
        %vm815 = vcmask 261120
        %v817 = vsel %vm815, %v779, 0
        %v820 = vsel %vm815, %v780, 0
        %v823 = vsel %vm815, %v781, 0
        %v826 = vsel %vm815, %v782, 0
        %v829 = vsel %vm815, %v783, 0
        %v832 = vsel %vm815, %v784, 0
        %v835 = vsel %vm815, %v785, 0
        %v838 = vsel %vm815, %v786, 0
        %v841 = vsel %vm815, %v787, 0
        %v844 = vsel %vm815, %v788, 0
        %v847 = vsel %vm815, %v789, 0
        %v850 = vsel %vm815, %v790, 0
        %v853 = vsel %vm815, %v791, 0
        %v856 = vsel %vm815, %v792, 0
        %v859 = vsel %vm815, %v793, 0
        %v862 = vsel %vm815, %v794, 0
        %v865 = vsel %vm815, %v795, 0
        %v868 = vsel %vm815, %v796, 0
        %v871 = vsel %vm815, %v797, 0
        %v874 = vsel %vm815, %v798, 0
        %v877 = vsel %vm815, %v799, 0
        %v880 = vsel %vm815, %v800, 0
        %v883 = vsel %vm815, %v801, 0
        %v886 = vsel %vm815, %v802, 0
        %v889 = vsel %vm815, %v803, 0
        %v892 = vsel %vm815, %v804, 0
        %v895 = vsel %vm815, %v805, 0
        %v898 = vsel %vm815, %v806, 0
        %v901 = vsel %vm815, %v807, 0
        %v904 = vsel %vm815, %v808, 0
        %v907 = vsel %vm815, %v809, 0
        %v910 = vsel %vm815, %v810, 0
        %912 = vmatprep.subr.mxu0 0.0
        %913 = vmatpush1.msra.mxu0 %v811
        %914 = vmatprep.subr.mxu0 0.0
        %915 = vmatpush1.msra.mxu0 %v812
        %916 = vmatprep.subr.mxu0 0.0
        %917 = vmatpush1.msra.mxu0 %v813
        %918 = vmatprep.subr.mxu0 0.0
        %919 = vmatpush1.msra.mxu0 %v814
        %920 = vmatprep.subr.mxu0 0.0
        %921 = vmatpush1.msra.mxu0 0.0
        %922 = vmatprep.subr.mxu0 0.0
        %923 = vmatpush1.msra.mxu0 0.0
        %924 = vmatprep.subr.mxu0 0.0
        %925 = vmatpush1.msra.mxu0 0.0
        %926 = vmatprep.subr.mxu0 0.0
        %927 = vmatpush1.msra.mxu0 0.0
        %928 = vmatprep.subr.mxu0 0.0
        %929 = vmatpush1.msra.mxu0 0.0
        %930 = vmatprep.subr.mxu0 0.0
        %931 = vmatpush1.msra.mxu0 0.0
        %932 = vmatprep.subr.mxu0 0.0
        %933 = vmatpush1.msra.mxu0 0.0
        %934 = vmatprep.subr.mxu0 0.0
        %935 = vmatpush1.msra.mxu0 0.0
        %936 = vmatprep.subr.mxu0 0.0
        %937 = vmatpush1.msra.mxu0 0.0
        %938 = vmatprep.subr.mxu0 0.0
        %939 = vmatpush1.msra.mxu0 0.0
        %940 = vmatprep.subr.mxu0 0.0
        %941 = vmatpush1.msra.mxu0 0.0
        %942 = vmatprep.subr.mxu0 0.0
        %943 = vmatpush1.msra.mxu0 0.0
        %944 = vmatprep.subr.mxu0 0.0
        %945 = vmatpush1.msra.mxu0 0.0
        %946 = vmatprep.subr.mxu0 0.0
        %947 = vmatpush1.msra.mxu0 0.0
        %948 = vmatprep.subr.mxu0 0.0
        %949 = vmatpush1.msra.mxu0 0.0
        %950 = vmatprep.subr.mxu0 0.0
        %951 = vmatpush1.msra.mxu0 0.0
        %952 = vmatprep.subr.mxu0 0.0
        %953 = vmatpush1.msra.mxu0 0.0
        %954 = vmatprep.subr.mxu0 0.0
        %955 = vmatpush1.msra.mxu0 0.0
        %956 = vmatprep.subr.mxu0 0.0
        %957 = vmatpush1.msra.mxu0 0.0
        %958 = vmatprep.subr.mxu0 0.0
        %959 = vmatpush1.msra.mxu0 0.0
        %960 = vmatprep.subr.mxu0 0.0
        %961 = vmatpush1.msra.mxu0 0.0
        %962 = vmatprep.subr.mxu0 0.0
        %963 = vmatpush1.msra.mxu0 0.0
        %964 = vmatprep.subr.mxu0 0.0
        %965 = vmatpush1.msra.mxu0 0.0
        %966 = vmatprep.subr.mxu0 0.0
        %967 = vmatpush1.msra.mxu0 0.0
        %968 = vmatprep.subr.mxu0 0.0
        %969 = vmatpush1.msra.mxu0 0.0
        %970 = vmatprep.subr.mxu0 0.0
        %971 = vmatpush1.msra.mxu0 0.0
        %972 = vmatprep.subr.mxu0 0.0
        %973 = vmatpush1.msra.mxu0 0.0
        %974 = vmatprep.subr.mxu0 0.0
        %975 = vmatpush1.msra.mxu0 0.0
        %976 = vmatprep.mubr.f32.mxu0 0.0
        %977 = vmatmul.mubr.f32.gmra.mrb[0].mxu0 %v817
        %v978 = vpop.f32.mrb[0].mxu0
        %v979 = vadd.f32 0.0, %v978
        %v980 = vpop.f32.mrb[0].mxu0
        %981 = vmatprep.mubr.f32.mxu0 0.0
        %982 = vmatmul.mubr.f32.gmra.mrb[0].mxu0 %v820
        %v983 = vpop.f32.mrb[0].mxu0
        %v984 = vadd.f32 0.0, %v983
        %v985 = vpop.f32.mrb[0].mxu0
        %986 = vmatprep.mubr.f32.mxu0 0.0
        %987 = vmatmul.mubr.f32.gmra.mrb[0].mxu0 %v823
        %v988 = vpop.f32.mrb[0].mxu0
        %v989 = vadd.f32 0.0, %v988
        %v990 = vpop.f32.mrb[0].mxu0
        %991 = vmatprep.mubr.f32.mxu0 0.0
        %992 = vmatmul.mubr.f32.gmra.mrb[0].mxu0 %v826
        %v993 = vpop.f32.mrb[0].mxu0
        %v994 = vadd.f32 0.0, %v993
        %v995 = vpop.f32.mrb[0].mxu0
        %996 = vmatprep.mubr.f32.mxu0 0.0
        %997 = vmatmul.mubr.f32.gmra.mrb[0].mxu0 %v829
        %v998 = vpop.f32.mrb[0].mxu0
        %v999 = vadd.f32 0.0, %v998
        %v1000 = vpop.f32.mrb[0].mxu0
        %1001 = vmatprep.mubr.f32.mxu0 0.0
        %1002 = vmatmul.mubr.f32.gmra.mrb[0].mxu0 %v832
        %v1003 = vpop.f32.mrb[0].mxu0
        %v1004 = vadd.f32 0.0, %v1003
        %v1005 = vpop.f32.mrb[0].mxu0
        %1006 = vmatprep.mubr.f32.mxu0 0.0
        %1007 = vmatmul.mubr.f32.gmra.mrb[0].mxu0 %v835
        %v1008 = vpop.f32.mrb[0].mxu0
        %v1009 = vadd.f32 0.0, %v1008
        %v1010 = vpop.f32.mrb[0].mxu0
        %1011 = vmatprep.mubr.f32.mxu0 0.0
        %1012 = vmatmul.mubr.f32.gmra.mrb[0].mxu0 %v838
        %v1013 = vpop.f32.mrb[0].mxu0
        %v1014 = vadd.f32 0.0, %v1013
        %v1015 = vpop.f32.mrb[0].mxu0
        %1016 = vmatprep.mubr.f32.mxu0 0.0
        %1017 = vmatmul.mubr.f32.gmra.mrb[0].mxu0 %v841
        %v1018 = vpop.f32.mrb[0].mxu0
        %v1019 = vadd.f32 0.0, %v1018
        %v1020 = vpop.f32.mrb[0].mxu0
        %1021 = vmatprep.mubr.f32.mxu0 0.0
        %1022 = vmatmul.mubr.f32.gmra.mrb[0].mxu0 %v844
        %v1023 = vpop.f32.mrb[0].mxu0
        %v1024 = vadd.f32 0.0, %v1023
        %v1025 = vpop.f32.mrb[0].mxu0
        %1026 = vmatprep.mubr.f32.mxu0 0.0
        %1027 = vmatmul.mubr.f32.gmra.mrb[0].mxu0 %v847
        %v1028 = vpop.f32.mrb[0].mxu0
        %v1029 = vadd.f32 0.0, %v1028
        %v1030 = vpop.f32.mrb[0].mxu0
        %1031 = vmatprep.mubr.f32.mxu0 0.0
        %1032 = vmatmul.mubr.f32.gmra.mrb[0].mxu0 %v850
        %v1033 = vpop.f32.mrb[0].mxu0
        %v1034 = vadd.f32 0.0, %v1033
        %v1035 = vpop.f32.mrb[0].mxu0
        %1036 = vmatprep.mubr.f32.mxu0 0.0
        %1037 = vmatmul.mubr.f32.gmra.mrb[0].mxu0 %v853
        %v1038 = vpop.f32.mrb[0].mxu0
        %v1039 = vadd.f32 0.0, %v1038
        %v1040 = vpop.f32.mrb[0].mxu0
        %1041 = vmatprep.mubr.f32.mxu0 0.0
        %1042 = vmatmul.mubr.f32.gmra.mrb[0].mxu0 %v856
        %v1043 = vpop.f32.mrb[0].mxu0
        %v1044 = vadd.f32 0.0, %v1043
        %v1045 = vpop.f32.mrb[0].mxu0
        %1046 = vmatprep.mubr.f32.mxu0 0.0
        %1047 = vmatmul.mubr.f32.gmra.mrb[0].mxu0 %v859
        %v1048 = vpop.f32.mrb[0].mxu0
        %v1049 = vadd.f32 0.0, %v1048
        %v1050 = vpop.f32.mrb[0].mxu0
        %1051 = vmatprep.mubr.f32.mxu0 0.0
        %1052 = vmatmul.mubr.f32.gmra.mrb[0].mxu0 %v862
        %v1053 = vpop.f32.mrb[0].mxu0
        %v1054 = vadd.f32 0.0, %v1053
        %v1055 = vpop.f32.mrb[0].mxu0
        %1056 = vmatprep.mubr.f32.mxu0 0.0
        %1057 = vmatmul.mubr.f32.gmra.mrb[0].mxu0 %v865
        %v1058 = vpop.f32.mrb[0].mxu0
        %v1059 = vadd.f32 0.0, %v1058
        %v1060 = vpop.f32.mrb[0].mxu0
        %1061 = vmatprep.mubr.f32.mxu0 0.0
        %1062 = vmatmul.mubr.f32.gmra.mrb[0].mxu0 %v868
        %v1063 = vpop.f32.mrb[0].mxu0
        %v1064 = vadd.f32 0.0, %v1063
        %v1065 = vpop.f32.mrb[0].mxu0
        %1066 = vmatprep.mubr.f32.mxu0 0.0
        %1067 = vmatmul.mubr.f32.gmra.mrb[0].mxu0 %v871
        %v1068 = vpop.f32.mrb[0].mxu0
        %v1069 = vadd.f32 0.0, %v1068
        %v1070 = vpop.f32.mrb[0].mxu0
        %1071 = vmatprep.mubr.f32.mxu0 0.0
        %1072 = vmatmul.mubr.f32.gmra.mrb[0].mxu0 %v874
        %v1073 = vpop.f32.mrb[0].mxu0
        %v1074 = vadd.f32 0.0, %v1073
        %v1075 = vpop.f32.mrb[0].mxu0
        %1076 = vmatprep.mubr.f32.mxu0 0.0
        %1077 = vmatmul.mubr.f32.gmra.mrb[0].mxu0 %v877
        %v1078 = vpop.f32.mrb[0].mxu0
        %v1079 = vadd.f32 0.0, %v1078
        %v1080 = vpop.f32.mrb[0].mxu0
        %1081 = vmatprep.mubr.f32.mxu0 0.0
        %1082 = vmatmul.mubr.f32.gmra.mrb[0].mxu0 %v880
        %v1083 = vpop.f32.mrb[0].mxu0
        %v1084 = vadd.f32 0.0, %v1083
        %v1085 = vpop.f32.mrb[0].mxu0
        %1086 = vmatprep.mubr.f32.mxu0 0.0
        %1087 = vmatmul.mubr.f32.gmra.mrb[0].mxu0 %v883
        %v1088 = vpop.f32.mrb[0].mxu0
        %v1089 = vadd.f32 0.0, %v1088
        %v1090 = vpop.f32.mrb[0].mxu0
        %1091 = vmatprep.mubr.f32.mxu0 0.0
        %1092 = vmatmul.mubr.f32.gmra.mrb[0].mxu0 %v886
        %v1093 = vpop.f32.mrb[0].mxu0
        %v1094 = vadd.f32 0.0, %v1093
        %v1095 = vpop.f32.mrb[0].mxu0
        %1096 = vmatprep.mubr.f32.mxu0 0.0
        %1097 = vmatmul.mubr.f32.gmra.mrb[0].mxu0 %v889
        %v1098 = vpop.f32.mrb[0].mxu0
        %v1099 = vadd.f32 0.0, %v1098
        %v1100 = vpop.f32.mrb[0].mxu0
        %1101 = vmatprep.mubr.f32.mxu0 0.0
        %1102 = vmatmul.mubr.f32.gmra.mrb[0].mxu0 %v892
        %v1103 = vpop.f32.mrb[0].mxu0
        %v1104 = vadd.f32 0.0, %v1103
        %v1105 = vpop.f32.mrb[0].mxu0
        %1106 = vmatprep.mubr.f32.mxu0 0.0
        %1107 = vmatmul.mubr.f32.gmra.mrb[0].mxu0 %v895
        %v1108 = vpop.f32.mrb[0].mxu0
        %v1109 = vadd.f32 0.0, %v1108
        %v1110 = vpop.f32.mrb[0].mxu0
        %1111 = vmatprep.mubr.f32.mxu0 0.0
        %1112 = vmatmul.mubr.f32.gmra.mrb[0].mxu0 %v898
        %v1113 = vpop.f32.mrb[0].mxu0
        %v1114 = vadd.f32 0.0, %v1113
        %v1115 = vpop.f32.mrb[0].mxu0
        %1116 = vmatprep.mubr.f32.mxu0 0.0
        %1117 = vmatmul.mubr.f32.gmra.mrb[0].mxu0 %v901
        %v1118 = vpop.f32.mrb[0].mxu0
        %v1119 = vadd.f32 0.0, %v1118
        %v1120 = vpop.f32.mrb[0].mxu0
        %1121 = vmatprep.mubr.f32.mxu0 0.0
        %1122 = vmatmul.mubr.f32.gmra.mrb[0].mxu0 %v904
        %v1123 = vpop.f32.mrb[0].mxu0
        %v1124 = vadd.f32 0.0, %v1123
        %v1125 = vpop.f32.mrb[0].mxu0
        %1126 = vmatprep.mubr.f32.mxu0 0.0
        %1127 = vmatmul.mubr.f32.gmra.mrb[0].mxu0 %v907
        %v1128 = vpop.f32.mrb[0].mxu0
        %v1129 = vadd.f32 0.0, %v1128
        %v1130 = vpop.f32.mrb[0].mxu0
        %1131 = vmatprep.mubr.f32.mxu0 0.0
        %1132 = vmatmul.mubr.f32.gmra.mrb[0].mxu0 %v910
        %v1133 = vpop.f32.mrb[0].mxu0
        %v1134 = vadd.f32 0.0, %v1133
        %v1135 = vpop.f32.mrb[0].mxu0
        %1136 = vdwg.mxu0
        %1137 = vst [vmem:[#allocation2] sm:$0xff] %v979
        %1138 = vst [vmem:[#allocation2 + $0x8] sm:$0xff] %v984
        %1139 = vst [vmem:[#allocation2 + $0x10] sm:$0xff] %v989
        %1140 = vst [vmem:[#allocation2 + $0x18] sm:$0xff] %v994
        %1141 = vst [vmem:[#allocation2 + $0x20] sm:$0xff] %v999
        %1142 = vst [vmem:[#allocation2 + $0x28] sm:$0xff] %v1004
        %1143 = vst [vmem:[#allocation2 + $0x30] sm:$0xff] %v1009
        %1144 = vst [vmem:[#allocation2 + $0x38] sm:$0xff] %v1014
        %1145 = vst [vmem:[#allocation2 + $0x40] sm:$0xff] %v1019
        %1146 = vst [vmem:[#allocation2 + $0x48] sm:$0xff] %v1024
        %1147 = vst [vmem:[#allocation2 + $0x50] sm:$0xff] %v1029
        %1148 = vst [vmem:[#allocation2 + $0x58] sm:$0xff] %v1034
        %1149 = vst [vmem:[#allocation2 + $0x60] sm:$0xff] %v1039
        %1150 = vst [vmem:[#allocation2 + $0x68] sm:$0xff] %v1044
        %1151 = vst [vmem:[#allocation2 + $0x70] sm:$0xff] %v1049
        %1152 = vst [vmem:[#allocation2 + $0x78] sm:$0xff] %v1054
        %1153 = vst [vmem:[#allocation2 + $0x80] sm:$0xff] %v1059
        %1154 = vst [vmem:[#allocation2 + $0x88] sm:$0xff] %v1064
        %1155 = vst [vmem:[#allocation2 + $0x90] sm:$0xff] %v1069
        %1156 = vst [vmem:[#allocation2 + $0x98] sm:$0xff] %v1074
        %1157 = vst [vmem:[#allocation2 + $0xa0] sm:$0xff] %v1079
        %1158 = vst [vmem:[#allocation2 + $0xa8] sm:$0xff] %v1084
        %1159 = vst [vmem:[#allocation2 + $0xb0] sm:$0xff] %v1089
        %1160 = vst [vmem:[#allocation2 + $0xb8] sm:$0xff] %v1094
        %1161 = vst [vmem:[#allocation2 + $0xc0] sm:$0xff] %v1099
        %1162 = vst [vmem:[#allocation2 + $0xc8] sm:$0xff] %v1104
        %1163 = vst [vmem:[#allocation2 + $0xd0] sm:$0xff] %v1109
        %1164 = vst [vmem:[#allocation2 + $0xd8] sm:$0xff] %v1114
        %1165 = vst [vmem:[#allocation2 + $0xe0] sm:$0xff] %v1119
        %1166 = vst [vmem:[#allocation2 + $0xe8] sm:$0xff] %v1124
        %1167 = vst [vmem:[#allocation2 + $0xf0] sm:$0xff] %v1129
        %1168 = vst [vmem:[#allocation2 + $0xf8] sm:$0xff] %v1134
        %v1169 = vld [vmem:[%s756 + $0x1] sm:$0xff]
        %v1170 = vld [vmem:[%s756 + $0x9] sm:$0xff]
        %v1171 = vld [vmem:[%s756 + $0x19] sm:$0xff]
        %v1172 = vld [vmem:[%s756 + $0x21] sm:$0xff]
        %v1173 = vld [vmem:[%s756 + $0x31] sm:$0xff]
        %v1174 = vld [vmem:[%s756 + $0x39] sm:$0xff]
        %v1175 = vld [vmem:[%s756 + $0x49] sm:$0xff]
        %v1176 = vld [vmem:[%s756 + $0x51] sm:$0xff]
        %v1177 = vld [vmem:[%s756 + $0x61] sm:$0xff]
        %v1178 = vld [vmem:[%s756 + $0x69] sm:$0xff]
        %v1179 = vld [vmem:[%s756 + $0x79] sm:$0xff]
        %v1180 = vld [vmem:[%s756 + $0x81] sm:$0xff]
        %v1181 = vld [vmem:[%s756 + $0x91] sm:$0xff]
        %v1182 = vld [vmem:[%s756 + $0x99] sm:$0xff]
        %v1183 = vld [vmem:[%s756 + $0xa9] sm:$0xff]
        %v1184 = vld [vmem:[%s756 + $0xb1] sm:$0xff]
        %v1185 = vld [vmem:[%s756 + $0xc1] sm:$0xff]
        %v1186 = vld [vmem:[%s756 + $0xc9] sm:$0xff]
        %v1187 = vld [vmem:[%s756 + $0xd9] sm:$0xff]
        %v1188 = vld [vmem:[%s756 + $0xe1] sm:$0xff]
        %v1189 = vld [vmem:[%s756 + $0xf1] sm:$0xff]
        %v1190 = vld [vmem:[%s756 + $0xf9] sm:$0xff]
        %v1191 = vld [vmem:[%s756 + $0x109] sm:$0xff]
        %v1192 = vld [vmem:[%s756 + $0x111] sm:$0xff]
        %v1193 = vld [vmem:[%s756 + $0x121] sm:$0xff]
        %v1194 = vld [vmem:[%s756 + $0x129] sm:$0xff]
        %v1195 = vld [vmem:[%s756 + $0x139] sm:$0xff]
        %v1196 = vld [vmem:[%s756 + $0x141] sm:$0xff]
        %v1197 = vld [vmem:[%s756 + $0x151] sm:$0xff]
        %v1198 = vld [vmem:[%s756 + $0x159] sm:$0xff]
        %v1199 = vld [vmem:[%s756 + $0x169] sm:$0xff]
        %v1200 = vld [vmem:[%s756 + $0x171] sm:$0xff]
        %s1201 = scalar_lea.vmem %s1, 32
        %v1202 = vld [vmem:[%s1201] sm:$0xff]
        %v1203 = vld [vmem:[%s1201 + $0x8] sm:$0xff]
        %v1204 = vld [vmem:[%s1201 + $0x10] sm:$0xff]
        %v1205 = vld [vmem:[%s1201 + $0x18] sm:$0xff]
        %v1207 = vsel %vm815, %v1169, 0
        %v1210 = vsel %vm815, %v1170, 0
        %v1213 = vsel %vm815, %v1171, 0
        %v1216 = vsel %vm815, %v1172, 0
        %v1219 = vsel %vm815, %v1173, 0
        %v1222 = vsel %vm815, %v1174, 0
        %v1225 = vsel %vm815, %v1175, 0
        %v1228 = vsel %vm815, %v1176, 0
        %v1231 = vsel %vm815, %v1177, 0
        %v1234 = vsel %vm815, %v1178, 0
        %v1237 = vsel %vm815, %v1179, 0
        %v1240 = vsel %vm815, %v1180, 0
        %v1243 = vsel %vm815, %v1181, 0
        %v1246 = vsel %vm815, %v1182, 0
        %v1249 = vsel %vm815, %v1183, 0
        %v1252 = vsel %vm815, %v1184, 0
        %v1255 = vsel %vm815, %v1185, 0
        %v1258 = vsel %vm815, %v1186, 0
        %v1261 = vsel %vm815, %v1187, 0
        %v1264 = vsel %vm815, %v1188, 0
        %v1267 = vsel %vm815, %v1189, 0
        %v1270 = vsel %vm815, %v1190, 0
        %v1273 = vsel %vm815, %v1191, 0
        %v1276 = vsel %vm815, %v1192, 0
        %v1279 = vsel %vm815, %v1193, 0
        %v1282 = vsel %vm815, %v1194, 0
        %v1285 = vsel %vm815, %v1195, 0
        %v1288 = vsel %vm815, %v1196, 0
        %v1291 = vsel %vm815, %v1197, 0
        %v1294 = vsel %vm815, %v1198, 0
        %v1297 = vsel %vm815, %v1199, 0
        %v1300 = vsel %vm815, %v1200, 0
        %1302 = vmatprep.subr.mxu0 0.0
        %1303 = vmatpush1.msra.mxu0 %v1202
        %1304 = vmatprep.subr.mxu0 0.0
        %1305 = vmatpush1.msra.mxu0 %v1203
        %1306 = vmatprep.subr.mxu0 0.0
        %1307 = vmatpush1.msra.mxu0 %v1204
        %1308 = vmatprep.subr.mxu0 0.0
        %1309 = vmatpush1.msra.mxu0 %v1205
        %1310 = vmatprep.subr.mxu0 0.0
        %1311 = vmatpush1.msra.mxu0 0.0
        %1312 = vmatprep.subr.mxu0 0.0
        %1313 = vmatpush1.msra.mxu0 0.0
        %1314 = vmatprep.subr.mxu0 0.0
        %1315 = vmatpush1.msra.mxu0 0.0
        %1316 = vmatprep.subr.mxu0 0.0
        %1317 = vmatpush1.msra.mxu0 0.0
        %1318 = vmatprep.subr.mxu0 0.0
        %1319 = vmatpush1.msra.mxu0 0.0
        %1320 = vmatprep.subr.mxu0 0.0
        %1321 = vmatpush1.msra.mxu0 0.0
        %1322 = vmatprep.subr.mxu0 0.0
        %1323 = vmatpush1.msra.mxu0 0.0
        %1324 = vmatprep.subr.mxu0 0.0
        %1325 = vmatpush1.msra.mxu0 0.0
        %1326 = vmatprep.subr.mxu0 0.0
        %1327 = vmatpush1.msra.mxu0 0.0
        %1328 = vmatprep.subr.mxu0 0.0
        %1329 = vmatpush1.msra.mxu0 0.0
        %1330 = vmatprep.subr.mxu0 0.0
        %1331 = vmatpush1.msra.mxu0 0.0
        %1332 = vmatprep.subr.mxu0 0.0
        %1333 = vmatpush1.msra.mxu0 0.0
        %1334 = vmatprep.subr.mxu0 0.0
        %1335 = vmatpush1.msra.mxu0 0.0
        %1336 = vmatprep.subr.mxu0 0.0
        %1337 = vmatpush1.msra.mxu0 0.0
        %1338 = vmatprep.subr.mxu0 0.0
        %1339 = vmatpush1.msra.mxu0 0.0
        %1340 = vmatprep.subr.mxu0 0.0
        %1341 = vmatpush1.msra.mxu0 0.0
        %1342 = vmatprep.subr.mxu0 0.0
        %1343 = vmatpush1.msra.mxu0 0.0
        %1344 = vmatprep.subr.mxu0 0.0
        %1345 = vmatpush1.msra.mxu0 0.0
        %1346 = vmatprep.subr.mxu0 0.0
        %1347 = vmatpush1.msra.mxu0 0.0
        %1348 = vmatprep.subr.mxu0 0.0
        %1349 = vmatpush1.msra.mxu0 0.0
        %1350 = vmatprep.subr.mxu0 0.0
        %1351 = vmatpush1.msra.mxu0 0.0
        %1352 = vmatprep.subr.mxu0 0.0
        %1353 = vmatpush1.msra.mxu0 0.0
        %1354 = vmatprep.subr.mxu0 0.0
        %1355 = vmatpush1.msra.mxu0 0.0
        %1356 = vmatprep.subr.mxu0 0.0
        %1357 = vmatpush1.msra.mxu0 0.0
        %1358 = vmatprep.subr.mxu0 0.0
        %1359 = vmatpush1.msra.mxu0 0.0
        %1360 = vmatprep.subr.mxu0 0.0
        %1361 = vmatpush1.msra.mxu0 0.0
        %1362 = vmatprep.subr.mxu0 0.0
        %1363 = vmatpush1.msra.mxu0 0.0
        %1364 = vmatprep.subr.mxu0 0.0
        %1365 = vmatpush1.msra.mxu0 0.0
        %1366 = vmatprep.mubr.f32.mxu0 0.0
        %1367 = vmatmul.mubr.f32.gmra.mrb[0].mxu0 %v1207
        %v1368 = vpop.f32.mrb[0].mxu0
        %v1369 = vadd.f32 0.0, %v1368
        %v1370 = vpop.f32.mrb[0].mxu0
        %1371 = vmatprep.mubr.f32.mxu0 0.0
        %1372 = vmatmul.mubr.f32.gmra.mrb[0].mxu0 %v1210
        %v1373 = vpop.f32.mrb[0].mxu0
        %v1374 = vadd.f32 0.0, %v1373
        %v1375 = vpop.f32.mrb[0].mxu0
        %1376 = vmatprep.mubr.f32.mxu0 0.0
        %1377 = vmatmul.mubr.f32.gmra.mrb[0].mxu0 %v1213
        %v1378 = vpop.f32.mrb[0].mxu0
        %v1379 = vadd.f32 0.0, %v1378
        %v1380 = vpop.f32.mrb[0].mxu0
        %1381 = vmatprep.mubr.f32.mxu0 0.0
        %1382 = vmatmul.mubr.f32.gmra.mrb[0].mxu0 %v1216
        %v1383 = vpop.f32.mrb[0].mxu0
        %v1384 = vadd.f32 0.0, %v1383
        %v1385 = vpop.f32.mrb[0].mxu0
        %1386 = vmatprep.mubr.f32.mxu0 0.0
        %1387 = vmatmul.mubr.f32.gmra.mrb[0].mxu0 %v1219
        %v1388 = vpop.f32.mrb[0].mxu0
        %v1389 = vadd.f32 0.0, %v1388
        %v1390 = vpop.f32.mrb[0].mxu0
        %1391 = vmatprep.mubr.f32.mxu0 0.0
        %1392 = vmatmul.mubr.f32.gmra.mrb[0].mxu0 %v1222
        %v1393 = vpop.f32.mrb[0].mxu0
        %v1394 = vadd.f32 0.0, %v1393
        %v1395 = vpop.f32.mrb[0].mxu0
        %1396 = vmatprep.mubr.f32.mxu0 0.0
        %1397 = vmatmul.mubr.f32.gmra.mrb[0].mxu0 %v1225
        %v1398 = vpop.f32.mrb[0].mxu0
        %v1399 = vadd.f32 0.0, %v1398
        %v1400 = vpop.f32.mrb[0].mxu0
        %1401 = vmatprep.mubr.f32.mxu0 0.0
        %1402 = vmatmul.mubr.f32.gmra.mrb[0].mxu0 %v1228
        %v1403 = vpop.f32.mrb[0].mxu0
        %v1404 = vadd.f32 0.0, %v1403
        %v1405 = vpop.f32.mrb[0].mxu0
        %1406 = vmatprep.mubr.f32.mxu0 0.0
        %1407 = vmatmul.mubr.f32.gmra.mrb[0].mxu0 %v1231
        %v1408 = vpop.f32.mrb[0].mxu0
        %v1409 = vadd.f32 0.0, %v1408
        %v1410 = vpop.f32.mrb[0].mxu0
        %1411 = vmatprep.mubr.f32.mxu0 0.0
        %1412 = vmatmul.mubr.f32.gmra.mrb[0].mxu0 %v1234
        %v1413 = vpop.f32.mrb[0].mxu0
        %v1414 = vadd.f32 0.0, %v1413
        %v1415 = vpop.f32.mrb[0].mxu0
        %1416 = vmatprep.mubr.f32.mxu0 0.0
        %1417 = vmatmul.mubr.f32.gmra.mrb[0].mxu0 %v1237
        %v1418 = vpop.f32.mrb[0].mxu0
        %v1419 = vadd.f32 0.0, %v1418
        %v1420 = vpop.f32.mrb[0].mxu0
        %1421 = vmatprep.mubr.f32.mxu0 0.0
        %1422 = vmatmul.mubr.f32.gmra.mrb[0].mxu0 %v1240
        %v1423 = vpop.f32.mrb[0].mxu0
        %v1424 = vadd.f32 0.0, %v1423
        %v1425 = vpop.f32.mrb[0].mxu0
        %1426 = vmatprep.mubr.f32.mxu0 0.0
        %1427 = vmatmul.mubr.f32.gmra.mrb[0].mxu0 %v1243
        %v1428 = vpop.f32.mrb[0].mxu0
        %v1429 = vadd.f32 0.0, %v1428
        %v1430 = vpop.f32.mrb[0].mxu0
        %1431 = vmatprep.mubr.f32.mxu0 0.0
        %1432 = vmatmul.mubr.f32.gmra.mrb[0].mxu0 %v1246
        %v1433 = vpop.f32.mrb[0].mxu0
        %v1434 = vadd.f32 0.0, %v1433
        %v1435 = vpop.f32.mrb[0].mxu0
        %1436 = vmatprep.mubr.f32.mxu0 0.0
        %1437 = vmatmul.mubr.f32.gmra.mrb[0].mxu0 %v1249
        %v1438 = vpop.f32.mrb[0].mxu0
        %v1439 = vadd.f32 0.0, %v1438
        %v1440 = vpop.f32.mrb[0].mxu0
        %1441 = vmatprep.mubr.f32.mxu0 0.0
        %1442 = vmatmul.mubr.f32.gmra.mrb[0].mxu0 %v1252
        %v1443 = vpop.f32.mrb[0].mxu0
        %v1444 = vadd.f32 0.0, %v1443
        %v1445 = vpop.f32.mrb[0].mxu0
        %1446 = vmatprep.mubr.f32.mxu0 0.0
        %1447 = vmatmul.mubr.f32.gmra.mrb[0].mxu0 %v1255
        %v1448 = vpop.f32.mrb[0].mxu0
        %v1449 = vadd.f32 0.0, %v1448
        %v1450 = vpop.f32.mrb[0].mxu0
        %1451 = vmatprep.mubr.f32.mxu0 0.0
        %1452 = vmatmul.mubr.f32.gmra.mrb[0].mxu0 %v1258
        %v1453 = vpop.f32.mrb[0].mxu0
        %v1454 = vadd.f32 0.0, %v1453
        %v1455 = vpop.f32.mrb[0].mxu0
        %1456 = vmatprep.mubr.f32.mxu0 0.0
        %1457 = vmatmul.mubr.f32.gmra.mrb[0].mxu0 %v1261
        %v1458 = vpop.f32.mrb[0].mxu0
        %v1459 = vadd.f32 0.0, %v1458
        %v1460 = vpop.f32.mrb[0].mxu0
        %1461 = vmatprep.mubr.f32.mxu0 0.0
        %1462 = vmatmul.mubr.f32.gmra.mrb[0].mxu0 %v1264
        %v1463 = vpop.f32.mrb[0].mxu0
        %v1464 = vadd.f32 0.0, %v1463
        %v1465 = vpop.f32.mrb[0].mxu0
        %1466 = vmatprep.mubr.f32.mxu0 0.0
        %1467 = vmatmul.mubr.f32.gmra.mrb[0].mxu0 %v1267
        %v1468 = vpop.f32.mrb[0].mxu0
        %v1469 = vadd.f32 0.0, %v1468
        %v1470 = vpop.f32.mrb[0].mxu0
        %1471 = vmatprep.mubr.f32.mxu0 0.0
        %1472 = vmatmul.mubr.f32.gmra.mrb[0].mxu0 %v1270
        %v1473 = vpop.f32.mrb[0].mxu0
        %v1474 = vadd.f32 0.0, %v1473
        %v1475 = vpop.f32.mrb[0].mxu0
        %1476 = vmatprep.mubr.f32.mxu0 0.0
        %1477 = vmatmul.mubr.f32.gmra.mrb[0].mxu0 %v1273
        %v1478 = vpop.f32.mrb[0].mxu0
        %v1479 = vadd.f32 0.0, %v1478
        %v1480 = vpop.f32.mrb[0].mxu0
        %1481 = vmatprep.mubr.f32.mxu0 0.0
        %1482 = vmatmul.mubr.f32.gmra.mrb[0].mxu0 %v1276
        %v1483 = vpop.f32.mrb[0].mxu0
        %v1484 = vadd.f32 0.0, %v1483
        %v1485 = vpop.f32.mrb[0].mxu0
        %1486 = vmatprep.mubr.f32.mxu0 0.0
        %1487 = vmatmul.mubr.f32.gmra.mrb[0].mxu0 %v1279
        %v1488 = vpop.f32.mrb[0].mxu0
        %v1489 = vadd.f32 0.0, %v1488
        %v1490 = vpop.f32.mrb[0].mxu0
        %1491 = vmatprep.mubr.f32.mxu0 0.0
        %1492 = vmatmul.mubr.f32.gmra.mrb[0].mxu0 %v1282
        %v1493 = vpop.f32.mrb[0].mxu0
        %v1494 = vadd.f32 0.0, %v1493
        %v1495 = vpop.f32.mrb[0].mxu0
        %1496 = vmatprep.mubr.f32.mxu0 0.0
        %1497 = vmatmul.mubr.f32.gmra.mrb[0].mxu0 %v1285
        %v1498 = vpop.f32.mrb[0].mxu0
        %v1499 = vadd.f32 0.0, %v1498
        %v1500 = vpop.f32.mrb[0].mxu0
        %1501 = vmatprep.mubr.f32.mxu0 0.0
        %1502 = vmatmul.mubr.f32.gmra.mrb[0].mxu0 %v1288
        %v1503 = vpop.f32.mrb[0].mxu0
        %v1504 = vadd.f32 0.0, %v1503
        %v1505 = vpop.f32.mrb[0].mxu0
        %1506 = vmatprep.mubr.f32.mxu0 0.0
        %1507 = vmatmul.mubr.f32.gmra.mrb[0].mxu0 %v1291
        %v1508 = vpop.f32.mrb[0].mxu0
        %v1509 = vadd.f32 0.0, %v1508
        %v1510 = vpop.f32.mrb[0].mxu0
        %1511 = vmatprep.mubr.f32.mxu0 0.0
        %1512 = vmatmul.mubr.f32.gmra.mrb[0].mxu0 %v1294
        %v1513 = vpop.f32.mrb[0].mxu0
        %v1514 = vadd.f32 0.0, %v1513
        %v1515 = vpop.f32.mrb[0].mxu0
        %1516 = vmatprep.mubr.f32.mxu0 0.0
        %1517 = vmatmul.mubr.f32.gmra.mrb[0].mxu0 %v1297
        %v1518 = vpop.f32.mrb[0].mxu0
        %v1519 = vadd.f32 0.0, %v1518
        %v1520 = vpop.f32.mrb[0].mxu0
        %1521 = vmatprep.mubr.f32.mxu0 0.0
        %1522 = vmatmul.mubr.f32.gmra.mrb[0].mxu0 %v1300
        %v1523 = vpop.f32.mrb[0].mxu0
        %v1524 = vadd.f32 0.0, %v1523
        %v1525 = vpop.f32.mrb[0].mxu0
        %1526 = vdwg.mxu0
        %v1527 = vld [vmem:[#allocation2] sm:$0xff]
        %v1528 = vld [vmem:[#allocation2 + $0x8] sm:$0xff]
        %v1529 = vld [vmem:[#allocation2 + $0x10] sm:$0xff]
        %v1530 = vld [vmem:[#allocation2 + $0x18] sm:$0xff]
        %v1531 = vld [vmem:[#allocation2 + $0x20] sm:$0xff]
        %v1532 = vld [vmem:[#allocation2 + $0x28] sm:$0xff]
        %v1533 = vld [vmem:[#allocation2 + $0x30] sm:$0xff]
        %v1534 = vld [vmem:[#allocation2 + $0x38] sm:$0xff]
        %v1535 = vld [vmem:[#allocation2 + $0x40] sm:$0xff]
        %v1536 = vld [vmem:[#allocation2 + $0x48] sm:$0xff]
        %v1537 = vld [vmem:[#allocation2 + $0x50] sm:$0xff]
        %v1538 = vld [vmem:[#allocation2 + $0x58] sm:$0xff]
        %v1539 = vld [vmem:[#allocation2 + $0x60] sm:$0xff]
        %v1540 = vld [vmem:[#allocation2 + $0x68] sm:$0xff]
        %v1541 = vld [vmem:[#allocation2 + $0x70] sm:$0xff]
        %v1542 = vld [vmem:[#allocation2 + $0x78] sm:$0xff]
        %v1543 = vld [vmem:[#allocation2 + $0x80] sm:$0xff]
        %v1544 = vld [vmem:[#allocation2 + $0x88] sm:$0xff]
        %v1545 = vld [vmem:[#allocation2 + $0x90] sm:$0xff]
        %v1546 = vld [vmem:[#allocation2 + $0x98] sm:$0xff]
        %v1547 = vld [vmem:[#allocation2 + $0xa0] sm:$0xff]
        %v1548 = vld [vmem:[#allocation2 + $0xa8] sm:$0xff]
        %v1549 = vld [vmem:[#allocation2 + $0xb0] sm:$0xff]
        %v1550 = vld [vmem:[#allocation2 + $0xb8] sm:$0xff]
        %v1551 = vld [vmem:[#allocation2 + $0xc0] sm:$0xff]
        %v1552 = vld [vmem:[#allocation2 + $0xc8] sm:$0xff]
        %v1553 = vld [vmem:[#allocation2 + $0xd0] sm:$0xff]
        %v1554 = vld [vmem:[#allocation2 + $0xd8] sm:$0xff]
        %v1555 = vld [vmem:[#allocation2 + $0xe0] sm:$0xff]
        %v1556 = vld [vmem:[#allocation2 + $0xe8] sm:$0xff]
        %v1557 = vld [vmem:[#allocation2 + $0xf0] sm:$0xff]
        %v1558 = vld [vmem:[#allocation2 + $0xf8] sm:$0xff]
        %v1559 = vadd.f32 %v1527, %v1369
        %v1560 = vadd.f32 %v1528, %v1374
        %v1561 = vadd.f32 %v1529, %v1379
        %v1562 = vadd.f32 %v1530, %v1384
        %v1563 = vadd.f32 %v1531, %v1389
        %v1564 = vadd.f32 %v1532, %v1394
        %v1565 = vadd.f32 %v1533, %v1399
        %v1566 = vadd.f32 %v1534, %v1404
        %v1567 = vadd.f32 %v1535, %v1409
        %v1568 = vadd.f32 %v1536, %v1414
        %v1569 = vadd.f32 %v1537, %v1419
        %v1570 = vadd.f32 %v1538, %v1424
        %v1571 = vadd.f32 %v1539, %v1429
        %v1572 = vadd.f32 %v1540, %v1434
        %v1573 = vadd.f32 %v1541, %v1439
        %v1574 = vadd.f32 %v1542, %v1444
        %v1575 = vadd.f32 %v1543, %v1449
        %v1576 = vadd.f32 %v1544, %v1454
        %v1577 = vadd.f32 %v1545, %v1459
        %v1578 = vadd.f32 %v1546, %v1464
        %v1579 = vadd.f32 %v1547, %v1469
        %v1580 = vadd.f32 %v1548, %v1474
        %v1581 = vadd.f32 %v1549, %v1479
        %v1582 = vadd.f32 %v1550, %v1484
        %v1583 = vadd.f32 %v1551, %v1489
        %v1584 = vadd.f32 %v1552, %v1494
        %v1585 = vadd.f32 %v1553, %v1499
        %v1586 = vadd.f32 %v1554, %v1504
        %v1587 = vadd.f32 %v1555, %v1509
        %v1588 = vadd.f32 %v1556, %v1514
        %v1589 = vadd.f32 %v1557, %v1519
        %v1590 = vadd.f32 %v1558, %v1524
        %1591 = vst [vmem:[#allocation2] sm:$0xff] %v1559
        %1592 = vst [vmem:[#allocation2 + $0x8] sm:$0xff] %v1560
        %1593 = vst [vmem:[#allocation2 + $0x10] sm:$0xff] %v1561
        %1594 = vst [vmem:[#allocation2 + $0x18] sm:$0xff] %v1562
        %1595 = vst [vmem:[#allocation2 + $0x20] sm:$0xff] %v1563
        %1596 = vst [vmem:[#allocation2 + $0x28] sm:$0xff] %v1564
        %1597 = vst [vmem:[#allocation2 + $0x30] sm:$0xff] %v1565
        %1598 = vst [vmem:[#allocation2 + $0x38] sm:$0xff] %v1566
        %1599 = vst [vmem:[#allocation2 + $0x40] sm:$0xff] %v1567
        %1600 = vst [vmem:[#allocation2 + $0x48] sm:$0xff] %v1568
        %1601 = vst [vmem:[#allocation2 + $0x50] sm:$0xff] %v1569
        %1602 = vst [vmem:[#allocation2 + $0x58] sm:$0xff] %v1570
        %1603 = vst [vmem:[#allocation2 + $0x60] sm:$0xff] %v1571
        %1604 = vst [vmem:[#allocation2 + $0x68] sm:$0xff] %v1572
        %1605 = vst [vmem:[#allocation2 + $0x70] sm:$0xff] %v1573
        %1606 = vst [vmem:[#allocation2 + $0x78] sm:$0xff] %v1574
        %1607 = vst [vmem:[#allocation2 + $0x80] sm:$0xff] %v1575
        %1608 = vst [vmem:[#allocation2 + $0x88] sm:$0xff] %v1576
        %1609 = vst [vmem:[#allocation2 + $0x90] sm:$0xff] %v1577
        %1610 = vst [vmem:[#allocation2 + $0x98] sm:$0xff] %v1578
        %1611 = vst [vmem:[#allocation2 + $0xa0] sm:$0xff] %v1579
        %1612 = vst [vmem:[#allocation2 + $0xa8] sm:$0xff] %v1580
        %1613 = vst [vmem:[#allocation2 + $0xb0] sm:$0xff] %v1581
        %1614 = vst [vmem:[#allocation2 + $0xb8] sm:$0xff] %v1582
        %1615 = vst [vmem:[#allocation2 + $0xc0] sm:$0xff] %v1583
        %1616 = vst [vmem:[#allocation2 + $0xc8] sm:$0xff] %v1584
        %1617 = vst [vmem:[#allocation2 + $0xd0] sm:$0xff] %v1585
        %1618 = vst [vmem:[#allocation2 + $0xd8] sm:$0xff] %v1586
        %1619 = vst [vmem:[#allocation2 + $0xe0] sm:$0xff] %v1587
        %1620 = vst [vmem:[#allocation2 + $0xe8] sm:$0xff] %v1588
        %1621 = vst [vmem:[#allocation2 + $0xf0] sm:$0xff] %v1589
        %1622 = vst [vmem:[#allocation2 + $0xf8] sm:$0xff] %v1590
        %v1623 = vld [vmem:[%s756 + $0x2] sm:$0xff]
        %v1624 = vld [vmem:[%s756 + $0xa] sm:$0xff]
        %v1625 = vld [vmem:[%s756 + $0x1a] sm:$0xff]
        %v1626 = vld [vmem:[%s756 + $0x22] sm:$0xff]
        %v1627 = vld [vmem:[%s756 + $0x32] sm:$0xff]
        %v1628 = vld [vmem:[%s756 + $0x3a] sm:$0xff]
        %v1629 = vld [vmem:[%s756 + $0x4a] sm:$0xff]
        %v1630 = vld [vmem:[%s756 + $0x52] sm:$0xff]
        %v1631 = vld [vmem:[%s756 + $0x62] sm:$0xff]
        %v1632 = vld [vmem:[%s756 + $0x6a] sm:$0xff]
        %v1633 = vld [vmem:[%s756 + $0x7a] sm:$0xff]
        %v1634 = vld [vmem:[%s756 + $0x82] sm:$0xff]
        %v1635 = vld [vmem:[%s756 + $0x92] sm:$0xff]
        %v1636 = vld [vmem:[%s756 + $0x9a] sm:$0xff]
        %v1637 = vld [vmem:[%s756 + $0xaa] sm:$0xff]
        %v1638 = vld [vmem:[%s756 + $0xb2] sm:$0xff]
        %v1639 = vld [vmem:[%s756 + $0xc2] sm:$0xff]
        %v1640 = vld [vmem:[%s756 + $0xca] sm:$0xff]
        %v1641 = vld [vmem:[%s756 + $0xda] sm:$0xff]
        %v1642 = vld [vmem:[%s756 + $0xe2] sm:$0xff]
        %v1643 = vld [vmem:[%s756 + $0xf2] sm:$0xff]
        %v1644 = vld [vmem:[%s756 + $0xfa] sm:$0xff]
        %v1645 = vld [vmem:[%s756 + $0x10a] sm:$0xff]
        %v1646 = vld [vmem:[%s756 + $0x112] sm:$0xff]
        %v1647 = vld [vmem:[%s756 + $0x122] sm:$0xff]
        %v1648 = vld [vmem:[%s756 + $0x12a] sm:$0xff]
        %v1649 = vld [vmem:[%s756 + $0x13a] sm:$0xff]
        %v1650 = vld [vmem:[%s756 + $0x142] sm:$0xff]
        %v1651 = vld [vmem:[%s756 + $0x152] sm:$0xff]
        %v1652 = vld [vmem:[%s756 + $0x15a] sm:$0xff]
        %v1653 = vld [vmem:[%s756 + $0x16a] sm:$0xff]
        %v1654 = vld [vmem:[%s756 + $0x172] sm:$0xff]
        %s1655 = scalar_lea.vmem %s1, 64
        %v1656 = vld [vmem:[%s1655] sm:$0xff]
        %v1657 = vld [vmem:[%s1655 + $0x8] sm:$0xff]
        %v1658 = vld [vmem:[%s1655 + $0x10] sm:$0xff]
        %v1659 = vld [vmem:[%s1655 + $0x18] sm:$0xff]
        %v1661 = vsel %vm815, %v1623, 0
        %v1664 = vsel %vm815, %v1624, 0
        %v1667 = vsel %vm815, %v1625, 0
        %v1670 = vsel %vm815, %v1626, 0
        %v1673 = vsel %vm815, %v1627, 0
        %v1676 = vsel %vm815, %v1628, 0
        %v1679 = vsel %vm815, %v1629, 0
        %v1682 = vsel %vm815, %v1630, 0
        %v1685 = vsel %vm815, %v1631, 0
        %v1688 = vsel %vm815, %v1632, 0
        %v1691 = vsel %vm815, %v1633, 0
        %v1694 = vsel %vm815, %v1634, 0
        %v1697 = vsel %vm815, %v1635, 0
        %v1700 = vsel %vm815, %v1636, 0
        %v1703 = vsel %vm815, %v1637, 0
        %v1706 = vsel %vm815, %v1638, 0
        %v1709 = vsel %vm815, %v1639, 0
        %v1712 = vsel %vm815, %v1640, 0
        %v1715 = vsel %vm815, %v1641, 0
        %v1718 = vsel %vm815, %v1642, 0
        %v1721 = vsel %vm815, %v1643, 0
        %v1724 = vsel %vm815, %v1644, 0
        %v1727 = vsel %vm815, %v1645, 0
        %v1730 = vsel %vm815, %v1646, 0
        %v1733 = vsel %vm815, %v1647, 0
        %v1736 = vsel %vm815, %v1648, 0
        %v1739 = vsel %vm815, %v1649, 0
        %v1742 = vsel %vm815, %v1650, 0
        %v1745 = vsel %vm815, %v1651, 0
        %v1748 = vsel %vm815, %v1652, 0
        %v1751 = vsel %vm815, %v1653, 0
        %v1754 = vsel %vm815, %v1654, 0
        %1756 = vmatprep.subr.mxu0 0.0
        %1757 = vmatpush1.msra.mxu0 %v1656
        %1758 = vmatprep.subr.mxu0 0.0
        %1759 = vmatpush1.msra.mxu0 %v1657
        %1760 = vmatprep.subr.mxu0 0.0
        %1761 = vmatpush1.msra.mxu0 %v1658
        %1762 = vmatprep.subr.mxu0 0.0
        %1763 = vmatpush1.msra.mxu0 %v1659
        %1764 = vmatprep.subr.mxu0 0.0
        %1765 = vmatpush1.msra.mxu0 0.0
        %1766 = vmatprep.subr.mxu0 0.0
        %1767 = vmatpush1.msra.mxu0 0.0
        %1768 = vmatprep.subr.mxu0 0.0
        %1769 = vmatpush1.msra.mxu0 0.0
        %1770 = vmatprep.subr.mxu0 0.0
        %1771 = vmatpush1.msra.mxu0 0.0
        %1772 = vmatprep.subr.mxu0 0.0
        %1773 = vmatpush1.msra.mxu0 0.0
        %1774 = vmatprep.subr.mxu0 0.0
        %1775 = vmatpush1.msra.mxu0 0.0
        %1776 = vmatprep.subr.mxu0 0.0
        %1777 = vmatpush1.msra.mxu0 0.0
        %1778 = vmatprep.subr.mxu0 0.0
        %1779 = vmatpush1.msra.mxu0 0.0
        %1780 = vmatprep.subr.mxu0 0.0
        %1781 = vmatpush1.msra.mxu0 0.0
        %1782 = vmatprep.subr.mxu0 0.0
        %1783 = vmatpush1.msra.mxu0 0.0
        %1784 = vmatprep.subr.mxu0 0.0
        %1785 = vmatpush1.msra.mxu0 0.0
        %1786 = vmatprep.subr.mxu0 0.0
        %1787 = vmatpush1.msra.mxu0 0.0
        %1788 = vmatprep.subr.mxu0 0.0
        %1789 = vmatpush1.msra.mxu0 0.0
        %1790 = vmatprep.subr.mxu0 0.0
        %1791 = vmatpush1.msra.mxu0 0.0
        %1792 = vmatprep.subr.mxu0 0.0
        %1793 = vmatpush1.msra.mxu0 0.0
        %1794 = vmatprep.subr.mxu0 0.0
        %1795 = vmatpush1.msra.mxu0 0.0
        %1796 = vmatprep.subr.mxu0 0.0
        %1797 = vmatpush1.msra.mxu0 0.0
        %1798 = vmatprep.subr.mxu0 0.0
        %1799 = vmatpush1.msra.mxu0 0.0
        %1800 = vmatprep.subr.mxu0 0.0
        %1801 = vmatpush1.msra.mxu0 0.0
        %1802 = vmatprep.subr.mxu0 0.0
        %1803 = vmatpush1.msra.mxu0 0.0
        %1804 = vmatprep.subr.mxu0 0.0
        %1805 = vmatpush1.msra.mxu0 0.0
        %1806 = vmatprep.subr.mxu0 0.0
        %1807 = vmatpush1.msra.mxu0 0.0
        %1808 = vmatprep.subr.mxu0 0.0
        %1809 = vmatpush1.msra.mxu0 0.0
        %1810 = vmatprep.subr.mxu0 0.0
        %1811 = vmatpush1.msra.mxu0 0.0
        %1812 = vmatprep.subr.mxu0 0.0
        %1813 = vmatpush1.msra.mxu0 0.0
        %1814 = vmatprep.subr.mxu0 0.0
        %1815 = vmatpush1.msra.mxu0 0.0
        %1816 = vmatprep.subr.mxu0 0.0
        %1817 = vmatpush1.msra.mxu0 0.0
        %1818 = vmatprep.subr.mxu0 0.0
        %1819 = vmatpush1.msra.mxu0 0.0
        %1820 = vmatprep.mubr.f32.mxu0 0.0
        %1821 = vmatmul.mubr.f32.gmra.mrb[0].mxu0 %v1661
        %v1822 = vpop.f32.mrb[0].mxu0
        %v1823 = vadd.f32 0.0, %v1822
        %v1824 = vpop.f32.mrb[0].mxu0
        %1825 = vmatprep.mubr.f32.mxu0 0.0
        %1826 = vmatmul.mubr.f32.gmra.mrb[0].mxu0 %v1664
        %v1827 = vpop.f32.mrb[0].mxu0
        %v1828 = vadd.f32 0.0, %v1827
        %v1829 = vpop.f32.mrb[0].mxu0
        %1830 = vmatprep.mubr.f32.mxu0 0.0
        %1831 = vmatmul.mubr.f32.gmra.mrb[0].mxu0 %v1667
        %v1832 = vpop.f32.mrb[0].mxu0
        %v1833 = vadd.f32 0.0, %v1832
        %v1834 = vpop.f32.mrb[0].mxu0
        %1835 = vmatprep.mubr.f32.mxu0 0.0
        %1836 = vmatmul.mubr.f32.gmra.mrb[0].mxu0 %v1670
        %v1837 = vpop.f32.mrb[0].mxu0
        %v1838 = vadd.f32 0.0, %v1837
        %v1839 = vpop.f32.mrb[0].mxu0
        %1840 = vmatprep.mubr.f32.mxu0 0.0
        %1841 = vmatmul.mubr.f32.gmra.mrb[0].mxu0 %v1673
        %v1842 = vpop.f32.mrb[0].mxu0
        %v1843 = vadd.f32 0.0, %v1842
        %v1844 = vpop.f32.mrb[0].mxu0
        %1845 = vmatprep.mubr.f32.mxu0 0.0
        %1846 = vmatmul.mubr.f32.gmra.mrb[0].mxu0 %v1676
        %v1847 = vpop.f32.mrb[0].mxu0
        %v1848 = vadd.f32 0.0, %v1847
        %v1849 = vpop.f32.mrb[0].mxu0
        %1850 = vmatprep.mubr.f32.mxu0 0.0
        %1851 = vmatmul.mubr.f32.gmra.mrb[0].mxu0 %v1679
        %v1852 = vpop.f32.mrb[0].mxu0
        %v1853 = vadd.f32 0.0, %v1852
        %v1854 = vpop.f32.mrb[0].mxu0
        %1855 = vmatprep.mubr.f32.mxu0 0.0
        %1856 = vmatmul.mubr.f32.gmra.mrb[0].mxu0 %v1682
        %v1857 = vpop.f32.mrb[0].mxu0
        %v1858 = vadd.f32 0.0, %v1857
        %v1859 = vpop.f32.mrb[0].mxu0
        %1860 = vmatprep.mubr.f32.mxu0 0.0
        %1861 = vmatmul.mubr.f32.gmra.mrb[0].mxu0 %v1685
        %v1862 = vpop.f32.mrb[0].mxu0
        %v1863 = vadd.f32 0.0, %v1862
        %v1864 = vpop.f32.mrb[0].mxu0
        %1865 = vmatprep.mubr.f32.mxu0 0.0
        %1866 = vmatmul.mubr.f32.gmra.mrb[0].mxu0 %v1688
        %v1867 = vpop.f32.mrb[0].mxu0
        %v1868 = vadd.f32 0.0, %v1867
        %v1869 = vpop.f32.mrb[0].mxu0
        %1870 = vmatprep.mubr.f32.mxu0 0.0
        %1871 = vmatmul.mubr.f32.gmra.mrb[0].mxu0 %v1691
        %v1872 = vpop.f32.mrb[0].mxu0
        %v1873 = vadd.f32 0.0, %v1872
        %v1874 = vpop.f32.mrb[0].mxu0
        %1875 = vmatprep.mubr.f32.mxu0 0.0
        %1876 = vmatmul.mubr.f32.gmra.mrb[0].mxu0 %v1694
        %v1877 = vpop.f32.mrb[0].mxu0
        %v1878 = vadd.f32 0.0, %v1877
        %v1879 = vpop.f32.mrb[0].mxu0
        %1880 = vmatprep.mubr.f32.mxu0 0.0
        %1881 = vmatmul.mubr.f32.gmra.mrb[0].mxu0 %v1697
        %v1882 = vpop.f32.mrb[0].mxu0
        %v1883 = vadd.f32 0.0, %v1882
        %v1884 = vpop.f32.mrb[0].mxu0
        %1885 = vmatprep.mubr.f32.mxu0 0.0
        %1886 = vmatmul.mubr.f32.gmra.mrb[0].mxu0 %v1700
        %v1887 = vpop.f32.mrb[0].mxu0
        %v1888 = vadd.f32 0.0, %v1887
        %v1889 = vpop.f32.mrb[0].mxu0
        %1890 = vmatprep.mubr.f32.mxu0 0.0
        %1891 = vmatmul.mubr.f32.gmra.mrb[0].mxu0 %v1703
        %v1892 = vpop.f32.mrb[0].mxu0
        %v1893 = vadd.f32 0.0, %v1892
        %v1894 = vpop.f32.mrb[0].mxu0
        %1895 = vmatprep.mubr.f32.mxu0 0.0
        %1896 = vmatmul.mubr.f32.gmra.mrb[0].mxu0 %v1706
        %v1897 = vpop.f32.mrb[0].mxu0
        %v1898 = vadd.f32 0.0, %v1897
        %v1899 = vpop.f32.mrb[0].mxu0
        %1900 = vmatprep.mubr.f32.mxu0 0.0
        %1901 = vmatmul.mubr.f32.gmra.mrb[0].mxu0 %v1709
        %v1902 = vpop.f32.mrb[0].mxu0
        %v1903 = vadd.f32 0.0, %v1902
        %v1904 = vpop.f32.mrb[0].mxu0
        %1905 = vmatprep.mubr.f32.mxu0 0.0
        %1906 = vmatmul.mubr.f32.gmra.mrb[0].mxu0 %v1712
        %v1907 = vpop.f32.mrb[0].mxu0
        %v1908 = vadd.f32 0.0, %v1907
        %v1909 = vpop.f32.mrb[0].mxu0
        %1910 = vmatprep.mubr.f32.mxu0 0.0
        %1911 = vmatmul.mubr.f32.gmra.mrb[0].mxu0 %v1715
        %v1912 = vpop.f32.mrb[0].mxu0
        %v1913 = vadd.f32 0.0, %v1912
        %v1914 = vpop.f32.mrb[0].mxu0
        %1915 = vmatprep.mubr.f32.mxu0 0.0
        %1916 = vmatmul.mubr.f32.gmra.mrb[0].mxu0 %v1718
        %v1917 = vpop.f32.mrb[0].mxu0
        %v1918 = vadd.f32 0.0, %v1917
        %v1919 = vpop.f32.mrb[0].mxu0
        %1920 = vmatprep.mubr.f32.mxu0 0.0
        %1921 = vmatmul.mubr.f32.gmra.mrb[0].mxu0 %v1721
        %v1922 = vpop.f32.mrb[0].mxu0
        %v1923 = vadd.f32 0.0, %v1922
        %v1924 = vpop.f32.mrb[0].mxu0
        %1925 = vmatprep.mubr.f32.mxu0 0.0
        %1926 = vmatmul.mubr.f32.gmra.mrb[0].mxu0 %v1724
        %v1927 = vpop.f32.mrb[0].mxu0
        %v1928 = vadd.f32 0.0, %v1927
        %v1929 = vpop.f32.mrb[0].mxu0
        %1930 = vmatprep.mubr.f32.mxu0 0.0
        %1931 = vmatmul.mubr.f32.gmra.mrb[0].mxu0 %v1727
        %v1932 = vpop.f32.mrb[0].mxu0
        %v1933 = vadd.f32 0.0, %v1932
        %v1934 = vpop.f32.mrb[0].mxu0
        %1935 = vmatprep.mubr.f32.mxu0 0.0
        %1936 = vmatmul.mubr.f32.gmra.mrb[0].mxu0 %v1730
        %v1937 = vpop.f32.mrb[0].mxu0
        %v1938 = vadd.f32 0.0, %v1937
        %v1939 = vpop.f32.mrb[0].mxu0
        %1940 = vmatprep.mubr.f32.mxu0 0.0
        %1941 = vmatmul.mubr.f32.gmra.mrb[0].mxu0 %v1733
        %v1942 = vpop.f32.mrb[0].mxu0
        %v1943 = vadd.f32 0.0, %v1942
        %v1944 = vpop.f32.mrb[0].mxu0
        %1945 = vmatprep.mubr.f32.mxu0 0.0
        %1946 = vmatmul.mubr.f32.gmra.mrb[0].mxu0 %v1736
        %v1947 = vpop.f32.mrb[0].mxu0
        %v1948 = vadd.f32 0.0, %v1947
        %v1949 = vpop.f32.mrb[0].mxu0
        %1950 = vmatprep.mubr.f32.mxu0 0.0
        %1951 = vmatmul.mubr.f32.gmra.mrb[0].mxu0 %v1739
        %v1952 = vpop.f32.mrb[0].mxu0
        %v1953 = vadd.f32 0.0, %v1952
        %v1954 = vpop.f32.mrb[0].mxu0
        %1955 = vmatprep.mubr.f32.mxu0 0.0
        %1956 = vmatmul.mubr.f32.gmra.mrb[0].mxu0 %v1742
        %v1957 = vpop.f32.mrb[0].mxu0
        %v1958 = vadd.f32 0.0, %v1957
        %v1959 = vpop.f32.mrb[0].mxu0
        %1960 = vmatprep.mubr.f32.mxu0 0.0
        %1961 = vmatmul.mubr.f32.gmra.mrb[0].mxu0 %v1745
        %v1962 = vpop.f32.mrb[0].mxu0
        %v1963 = vadd.f32 0.0, %v1962
        %v1964 = vpop.f32.mrb[0].mxu0
        %1965 = vmatprep.mubr.f32.mxu0 0.0
        %1966 = vmatmul.mubr.f32.gmra.mrb[0].mxu0 %v1748
        %v1967 = vpop.f32.mrb[0].mxu0
        %v1968 = vadd.f32 0.0, %v1967
        %v1969 = vpop.f32.mrb[0].mxu0
        %1970 = vmatprep.mubr.f32.mxu0 0.0
        %1971 = vmatmul.mubr.f32.gmra.mrb[0].mxu0 %v1751
        %v1972 = vpop.f32.mrb[0].mxu0
        %v1973 = vadd.f32 0.0, %v1972
        %v1974 = vpop.f32.mrb[0].mxu0
        %1975 = vmatprep.mubr.f32.mxu0 0.0
        %1976 = vmatmul.mubr.f32.gmra.mrb[0].mxu0 %v1754
        %v1977 = vpop.f32.mrb[0].mxu0
        %v1978 = vadd.f32 0.0, %v1977
        %v1979 = vpop.f32.mrb[0].mxu0
        %1980 = vdwg.mxu0
        %v1981 = vld [vmem:[#allocation2] sm:$0xff]
        %v1982 = vld [vmem:[#allocation2 + $0x8] sm:$0xff]
        %v1983 = vld [vmem:[#allocation2 + $0x10] sm:$0xff]
        %v1984 = vld [vmem:[#allocation2 + $0x18] sm:$0xff]
        %v1985 = vld [vmem:[#allocation2 + $0x20] sm:$0xff]
        %v1986 = vld [vmem:[#allocation2 + $0x28] sm:$0xff]
        %v1987 = vld [vmem:[#allocation2 + $0x30] sm:$0xff]
        %v1988 = vld [vmem:[#allocation2 + $0x38] sm:$0xff]
        %v1989 = vld [vmem:[#allocation2 + $0x40] sm:$0xff]
        %v1990 = vld [vmem:[#allocation2 + $0x48] sm:$0xff]
        %v1991 = vld [vmem:[#allocation2 + $0x50] sm:$0xff]
        %v1992 = vld [vmem:[#allocation2 + $0x58] sm:$0xff]
        %v1993 = vld [vmem:[#allocation2 + $0x60] sm:$0xff]
        %v1994 = vld [vmem:[#allocation2 + $0x68] sm:$0xff]
        %v1995 = vld [vmem:[#allocation2 + $0x70] sm:$0xff]
        %v1996 = vld [vmem:[#allocation2 + $0x78] sm:$0xff]
        %v1997 = vld [vmem:[#allocation2 + $0x80] sm:$0xff]
        %v1998 = vld [vmem:[#allocation2 + $0x88] sm:$0xff]
        %v1999 = vld [vmem:[#allocation2 + $0x90] sm:$0xff]
        %v2000 = vld [vmem:[#allocation2 + $0x98] sm:$0xff]
        %v2001 = vld [vmem:[#allocation2 + $0xa0] sm:$0xff]
        %v2002 = vld [vmem:[#allocation2 + $0xa8] sm:$0xff]
        %v2003 = vld [vmem:[#allocation2 + $0xb0] sm:$0xff]
        %v2004 = vld [vmem:[#allocation2 + $0xb8] sm:$0xff]
        %v2005 = vld [vmem:[#allocation2 + $0xc0] sm:$0xff]
        %v2006 = vld [vmem:[#allocation2 + $0xc8] sm:$0xff]
        %v2007 = vld [vmem:[#allocation2 + $0xd0] sm:$0xff]
        %v2008 = vld [vmem:[#allocation2 + $0xd8] sm:$0xff]
        %v2009 = vld [vmem:[#allocation2 + $0xe0] sm:$0xff]
        %v2010 = vld [vmem:[#allocation2 + $0xe8] sm:$0xff]
        %v2011 = vld [vmem:[#allocation2 + $0xf0] sm:$0xff]
        %v2012 = vld [vmem:[#allocation2 + $0xf8] sm:$0xff]
        %v2013 = vadd.f32 %v1981, %v1823
        %v2014 = vadd.f32 %v1982, %v1828
        %v2015 = vadd.f32 %v1983, %v1833
        %v2016 = vadd.f32 %v1984, %v1838
        %v2017 = vadd.f32 %v1985, %v1843
        %v2018 = vadd.f32 %v1986, %v1848
        %v2019 = vadd.f32 %v1987, %v1853
        %v2020 = vadd.f32 %v1988, %v1858
        %v2021 = vadd.f32 %v1989, %v1863
        %v2022 = vadd.f32 %v1990, %v1868
        %v2023 = vadd.f32 %v1991, %v1873
        %v2024 = vadd.f32 %v1992, %v1878
        %v2025 = vadd.f32 %v1993, %v1883
        %v2026 = vadd.f32 %v1994, %v1888
        %v2027 = vadd.f32 %v1995, %v1893
        %v2028 = vadd.f32 %v1996, %v1898
        %v2029 = vadd.f32 %v1997, %v1903
        %v2030 = vadd.f32 %v1998, %v1908
        %v2031 = vadd.f32 %v1999, %v1913
        %v2032 = vadd.f32 %v2000, %v1918
        %v2033 = vadd.f32 %v2001, %v1923
        %v2034 = vadd.f32 %v2002, %v1928
        %v2035 = vadd.f32 %v2003, %v1933
        %v2036 = vadd.f32 %v2004, %v1938
        %v2037 = vadd.f32 %v2005, %v1943
        %v2038 = vadd.f32 %v2006, %v1948
        %v2039 = vadd.f32 %v2007, %v1953
        %v2040 = vadd.f32 %v2008, %v1958
        %v2041 = vadd.f32 %v2009, %v1963
        %v2042 = vadd.f32 %v2010, %v1968
        %v2043 = vadd.f32 %v2011, %v1973
        %v2044 = vadd.f32 %v2012, %v1978
        %2045 = vst [vmem:[#allocation2] sm:$0xff] %v2013
        %2046 = vst [vmem:[#allocation2 + $0x8] sm:$0xff] %v2014
        %2047 = vst [vmem:[#allocation2 + $0x10] sm:$0xff] %v2015
        %2048 = vst [vmem:[#allocation2 + $0x18] sm:$0xff] %v2016
        %2049 = vst [vmem:[#allocation2 + $0x20] sm:$0xff] %v2017
        %2050 = vst [vmem:[#allocation2 + $0x28] sm:$0xff] %v2018
        %2051 = vst [vmem:[#allocation2 + $0x30] sm:$0xff] %v2019
        %2052 = vst [vmem:[#allocation2 + $0x38] sm:$0xff] %v2020
        %2053 = vst [vmem:[#allocation2 + $0x40] sm:$0xff] %v2021
        %2054 = vst [vmem:[#allocation2 + $0x48] sm:$0xff] %v2022
        %2055 = vst [vmem:[#allocation2 + $0x50] sm:$0xff] %v2023
        %2056 = vst [vmem:[#allocation2 + $0x58] sm:$0xff] %v2024
        %2057 = vst [vmem:[#allocation2 + $0x60] sm:$0xff] %v2025
        %2058 = vst [vmem:[#allocation2 + $0x68] sm:$0xff] %v2026
        %2059 = vst [vmem:[#allocation2 + $0x70] sm:$0xff] %v2027
        %2060 = vst [vmem:[#allocation2 + $0x78] sm:$0xff] %v2028
        %2061 = vst [vmem:[#allocation2 + $0x80] sm:$0xff] %v2029
        %2062 = vst [vmem:[#allocation2 + $0x88] sm:$0xff] %v2030
        %2063 = vst [vmem:[#allocation2 + $0x90] sm:$0xff] %v2031
        %2064 = vst [vmem:[#allocation2 + $0x98] sm:$0xff] %v2032
        %2065 = vst [vmem:[#allocation2 + $0xa0] sm:$0xff] %v2033
        %2066 = vst [vmem:[#allocation2 + $0xa8] sm:$0xff] %v2034
        %2067 = vst [vmem:[#allocation2 + $0xb0] sm:$0xff] %v2035
        %2068 = vst [vmem:[#allocation2 + $0xb8] sm:$0xff] %v2036
        %2069 = vst [vmem:[#allocation2 + $0xc0] sm:$0xff] %v2037
        %2070 = vst [vmem:[#allocation2 + $0xc8] sm:$0xff] %v2038
        %2071 = vst [vmem:[#allocation2 + $0xd0] sm:$0xff] %v2039
        %2072 = vst [vmem:[#allocation2 + $0xd8] sm:$0xff] %v2040
        %2073 = vst [vmem:[#allocation2 + $0xe0] sm:$0xff] %v2041
        %2074 = vst [vmem:[#allocation2 + $0xe8] sm:$0xff] %v2042
        %2075 = vst [vmem:[#allocation2 + $0xf0] sm:$0xff] %v2043
        %2076 = vst [vmem:[#allocation2 + $0xf8] sm:$0xff] %v2044
        %s2077 = scalar_lea.vmem %s756, 384 [#allocation3]
        %v2078 = vld [vmem:[%s2077] sm:$0xff]
        %v2079 = vld [vmem:[%s2077 + $0x8] sm:$0xff]
        %v2080 = vld [vmem:[%s2077 + $0x18] sm:$0xff]
        %v2081 = vld [vmem:[%s2077 + $0x20] sm:$0xff]
        %v2082 = vld [vmem:[%s2077 + $0x30] sm:$0xff]
        %v2083 = vld [vmem:[%s2077 + $0x38] sm:$0xff]
        %v2084 = vld [vmem:[%s2077 + $0x48] sm:$0xff]
        %v2085 = vld [vmem:[%s2077 + $0x50] sm:$0xff]
        %v2086 = vld [vmem:[%s2077 + $0x60] sm:$0xff]
        %v2087 = vld [vmem:[%s2077 + $0x68] sm:$0xff]
        %v2088 = vld [vmem:[%s2077 + $0x78] sm:$0xff]
        %v2089 = vld [vmem:[%s2077 + $0x80] sm:$0xff]
        %v2090 = vld [vmem:[%s2077 + $0x90] sm:$0xff]
        %v2091 = vld [vmem:[%s2077 + $0x98] sm:$0xff]
        %v2092 = vld [vmem:[%s2077 + $0xa8] sm:$0xff]
        %v2093 = vld [vmem:[%s2077 + $0xb0] sm:$0xff]
        %v2094 = vld [vmem:[%s2077 + $0xc0] sm:$0xff]
        %v2095 = vld [vmem:[%s2077 + $0xc8] sm:$0xff]
        %v2096 = vld [vmem:[%s2077 + $0xd8] sm:$0xff]
        %v2097 = vld [vmem:[%s2077 + $0xe0] sm:$0xff]
        %v2098 = vld [vmem:[%s2077 + $0xf0] sm:$0xff]
        %v2099 = vld [vmem:[%s2077 + $0xf8] sm:$0xff]
        %v2100 = vld [vmem:[%s2077 + $0x108] sm:$0xff]
        %v2101 = vld [vmem:[%s2077 + $0x110] sm:$0xff]
        %v2102 = vld [vmem:[%s2077 + $0x120] sm:$0xff]
        %v2103 = vld [vmem:[%s2077 + $0x128] sm:$0xff]
        %v2104 = vld [vmem:[%s2077 + $0x138] sm:$0xff]
        %v2105 = vld [vmem:[%s2077 + $0x140] sm:$0xff]
        %v2106 = vld [vmem:[%s2077 + $0x150] sm:$0xff]
        %v2107 = vld [vmem:[%s2077 + $0x158] sm:$0xff]
        %v2108 = vld [vmem:[%s2077 + $0x168] sm:$0xff]
        %v2109 = vld [vmem:[%s2077 + $0x170] sm:$0xff]
        %s2110 = scalar_lea.vmem %s1, 96
        %v2111 = vld [vmem:[%s2110] sm:$0xff]
        %v2112 = vld [vmem:[%s2110 + $0x8] sm:$0xff]
        %v2113 = vld [vmem:[%s2110 + $0x10] sm:$0xff]
        %v2114 = vld [vmem:[%s2110 + $0x18] sm:$0xff]
        %v2116 = vsel %vm815, %v2078, 0
        %v2119 = vsel %vm815, %v2079, 0
        %v2122 = vsel %vm815, %v2080, 0
        %v2125 = vsel %vm815, %v2081, 0
        %v2128 = vsel %vm815, %v2082, 0
        %v2131 = vsel %vm815, %v2083, 0
        %v2134 = vsel %vm815, %v2084, 0
        %v2137 = vsel %vm815, %v2085, 0
        %v2140 = vsel %vm815, %v2086, 0
        %v2143 = vsel %vm815, %v2087, 0
        %v2146 = vsel %vm815, %v2088, 0
        %v2149 = vsel %vm815, %v2089, 0
        %v2152 = vsel %vm815, %v2090, 0
        %v2155 = vsel %vm815, %v2091, 0
        %v2158 = vsel %vm815, %v2092, 0
        %v2161 = vsel %vm815, %v2093, 0
        %v2164 = vsel %vm815, %v2094, 0
        %v2167 = vsel %vm815, %v2095, 0
        %v2170 = vsel %vm815, %v2096, 0
        %v2173 = vsel %vm815, %v2097, 0
        %v2176 = vsel %vm815, %v2098, 0
        %v2179 = vsel %vm815, %v2099, 0
        %v2182 = vsel %vm815, %v2100, 0
        %v2185 = vsel %vm815, %v2101, 0
        %v2188 = vsel %vm815, %v2102, 0
        %v2191 = vsel %vm815, %v2103, 0
        %v2194 = vsel %vm815, %v2104, 0
        %v2197 = vsel %vm815, %v2105, 0
        %v2200 = vsel %vm815, %v2106, 0
        %v2203 = vsel %vm815, %v2107, 0
        %v2206 = vsel %vm815, %v2108, 0
        %v2209 = vsel %vm815, %v2109, 0
        %2211 = vmatprep.subr.mxu0 0.0
        %2212 = vmatpush1.msra.mxu0 %v2111
        %2213 = vmatprep.subr.mxu0 0.0
        %2214 = vmatpush1.msra.mxu0 %v2112
        %2215 = vmatprep.subr.mxu0 0.0
        %2216 = vmatpush1.msra.mxu0 %v2113
        %2217 = vmatprep.subr.mxu0 0.0
        %2218 = vmatpush1.msra.mxu0 %v2114
        %2219 = vmatprep.subr.mxu0 0.0
        %2220 = vmatpush1.msra.mxu0 0.0
        %2221 = vmatprep.subr.mxu0 0.0
        %2222 = vmatpush1.msra.mxu0 0.0
        %2223 = vmatprep.subr.mxu0 0.0
        %2224 = vmatpush1.msra.mxu0 0.0
        %2225 = vmatprep.subr.mxu0 0.0
        %2226 = vmatpush1.msra.mxu0 0.0
        %2227 = vmatprep.subr.mxu0 0.0
        %2228 = vmatpush1.msra.mxu0 0.0
        %2229 = vmatprep.subr.mxu0 0.0
        %2230 = vmatpush1.msra.mxu0 0.0
        %2231 = vmatprep.subr.mxu0 0.0
        %2232 = vmatpush1.msra.mxu0 0.0
        %2233 = vmatprep.subr.mxu0 0.0
        %2234 = vmatpush1.msra.mxu0 0.0
        %2235 = vmatprep.subr.mxu0 0.0
        %2236 = vmatpush1.msra.mxu0 0.0
        %2237 = vmatprep.subr.mxu0 0.0
        %2238 = vmatpush1.msra.mxu0 0.0
        %2239 = vmatprep.subr.mxu0 0.0
        %2240 = vmatpush1.msra.mxu0 0.0
        %2241 = vmatprep.subr.mxu0 0.0
        %2242 = vmatpush1.msra.mxu0 0.0
        %2243 = vmatprep.subr.mxu0 0.0
        %2244 = vmatpush1.msra.mxu0 0.0
        %2245 = vmatprep.subr.mxu0 0.0
        %2246 = vmatpush1.msra.mxu0 0.0
        %2247 = vmatprep.subr.mxu0 0.0
        %2248 = vmatpush1.msra.mxu0 0.0
        %2249 = vmatprep.subr.mxu0 0.0
        %2250 = vmatpush1.msra.mxu0 0.0
        %2251 = vmatprep.subr.mxu0 0.0
        %2252 = vmatpush1.msra.mxu0 0.0
        %2253 = vmatprep.subr.mxu0 0.0
        %2254 = vmatpush1.msra.mxu0 0.0
        %2255 = vmatprep.subr.mxu0 0.0
        %2256 = vmatpush1.msra.mxu0 0.0
        %2257 = vmatprep.subr.mxu0 0.0
        %2258 = vmatpush1.msra.mxu0 0.0
        %2259 = vmatprep.subr.mxu0 0.0
        %2260 = vmatpush1.msra.mxu0 0.0
        %2261 = vmatprep.subr.mxu0 0.0
        %2262 = vmatpush1.msra.mxu0 0.0
        %2263 = vmatprep.subr.mxu0 0.0
        %2264 = vmatpush1.msra.mxu0 0.0
        %2265 = vmatprep.subr.mxu0 0.0
        %2266 = vmatpush1.msra.mxu0 0.0
        %2267 = vmatprep.subr.mxu0 0.0
        %2268 = vmatpush1.msra.mxu0 0.0
        %2269 = vmatprep.subr.mxu0 0.0
        %2270 = vmatpush1.msra.mxu0 0.0
        %2271 = vmatprep.subr.mxu0 0.0
        %2272 = vmatpush1.msra.mxu0 0.0
        %2273 = vmatprep.subr.mxu0 0.0
        %2274 = vmatpush1.msra.mxu0 0.0
        %2275 = vmatprep.mubr.f32.mxu0 0.0
        %2276 = vmatmul.mubr.f32.gmra.mrb[0].mxu0 %v2116
        %v2277 = vpop.f32.mrb[0].mxu0
        %v2278 = vadd.f32 0.0, %v2277
        %v2279 = vpop.f32.mrb[0].mxu0
        %2280 = vmatprep.mubr.f32.mxu0 0.0
        %2281 = vmatmul.mubr.f32.gmra.mrb[0].mxu0 %v2119
        %v2282 = vpop.f32.mrb[0].mxu0
        %v2283 = vadd.f32 0.0, %v2282
        %v2284 = vpop.f32.mrb[0].mxu0
        %2285 = vmatprep.mubr.f32.mxu0 0.0
        %2286 = vmatmul.mubr.f32.gmra.mrb[0].mxu0 %v2122
        %v2287 = vpop.f32.mrb[0].mxu0
        %v2288 = vadd.f32 0.0, %v2287
        %v2289 = vpop.f32.mrb[0].mxu0
        %2290 = vmatprep.mubr.f32.mxu0 0.0
        %2291 = vmatmul.mubr.f32.gmra.mrb[0].mxu0 %v2125
        %v2292 = vpop.f32.mrb[0].mxu0
        %v2293 = vadd.f32 0.0, %v2292
        %v2294 = vpop.f32.mrb[0].mxu0
        %2295 = vmatprep.mubr.f32.mxu0 0.0
        %2296 = vmatmul.mubr.f32.gmra.mrb[0].mxu0 %v2128
        %v2297 = vpop.f32.mrb[0].mxu0
        %v2298 = vadd.f32 0.0, %v2297
        %v2299 = vpop.f32.mrb[0].mxu0
        %2300 = vmatprep.mubr.f32.mxu0 0.0
        %2301 = vmatmul.mubr.f32.gmra.mrb[0].mxu0 %v2131
        %v2302 = vpop.f32.mrb[0].mxu0
        %v2303 = vadd.f32 0.0, %v2302
        %v2304 = vpop.f32.mrb[0].mxu0
        %2305 = vmatprep.mubr.f32.mxu0 0.0
        %2306 = vmatmul.mubr.f32.gmra.mrb[0].mxu0 %v2134
        %v2307 = vpop.f32.mrb[0].mxu0
        %v2308 = vadd.f32 0.0, %v2307
        %v2309 = vpop.f32.mrb[0].mxu0
        %2310 = vmatprep.mubr.f32.mxu0 0.0
        %2311 = vmatmul.mubr.f32.gmra.mrb[0].mxu0 %v2137
        %v2312 = vpop.f32.mrb[0].mxu0
        %v2313 = vadd.f32 0.0, %v2312
        %v2314 = vpop.f32.mrb[0].mxu0
        %2315 = vmatprep.mubr.f32.mxu0 0.0
        %2316 = vmatmul.mubr.f32.gmra.mrb[0].mxu0 %v2140
        %v2317 = vpop.f32.mrb[0].mxu0
        %v2318 = vadd.f32 0.0, %v2317
        %v2319 = vpop.f32.mrb[0].mxu0
        %2320 = vmatprep.mubr.f32.mxu0 0.0
        %2321 = vmatmul.mubr.f32.gmra.mrb[0].mxu0 %v2143
        %v2322 = vpop.f32.mrb[0].mxu0
        %v2323 = vadd.f32 0.0, %v2322
        %v2324 = vpop.f32.mrb[0].mxu0
        %2325 = vmatprep.mubr.f32.mxu0 0.0
        %2326 = vmatmul.mubr.f32.gmra.mrb[0].mxu0 %v2146
        %v2327 = vpop.f32.mrb[0].mxu0
        %v2328 = vadd.f32 0.0, %v2327
        %v2329 = vpop.f32.mrb[0].mxu0
        %2330 = vmatprep.mubr.f32.mxu0 0.0
        %2331 = vmatmul.mubr.f32.gmra.mrb[0].mxu0 %v2149
        %v2332 = vpop.f32.mrb[0].mxu0
        %v2333 = vadd.f32 0.0, %v2332
        %v2334 = vpop.f32.mrb[0].mxu0
        %2335 = vmatprep.mubr.f32.mxu0 0.0
        %2336 = vmatmul.mubr.f32.gmra.mrb[0].mxu0 %v2152
        %v2337 = vpop.f32.mrb[0].mxu0
        %v2338 = vadd.f32 0.0, %v2337
        %v2339 = vpop.f32.mrb[0].mxu0
        %2340 = vmatprep.mubr.f32.mxu0 0.0
        %2341 = vmatmul.mubr.f32.gmra.mrb[0].mxu0 %v2155
        %v2342 = vpop.f32.mrb[0].mxu0
        %v2343 = vadd.f32 0.0, %v2342
        %v2344 = vpop.f32.mrb[0].mxu0
        %2345 = vmatprep.mubr.f32.mxu0 0.0
        %2346 = vmatmul.mubr.f32.gmra.mrb[0].mxu0 %v2158
        %v2347 = vpop.f32.mrb[0].mxu0
        %v2348 = vadd.f32 0.0, %v2347
        %v2349 = vpop.f32.mrb[0].mxu0
        %2350 = vmatprep.mubr.f32.mxu0 0.0
        %2351 = vmatmul.mubr.f32.gmra.mrb[0].mxu0 %v2161
        %v2352 = vpop.f32.mrb[0].mxu0
        %v2353 = vadd.f32 0.0, %v2352
        %v2354 = vpop.f32.mrb[0].mxu0
        %2355 = vmatprep.mubr.f32.mxu0 0.0
        %2356 = vmatmul.mubr.f32.gmra.mrb[0].mxu0 %v2164
        %v2357 = vpop.f32.mrb[0].mxu0
        %v2358 = vadd.f32 0.0, %v2357
        %v2359 = vpop.f32.mrb[0].mxu0
        %2360 = vmatprep.mubr.f32.mxu0 0.0
        %2361 = vmatmul.mubr.f32.gmra.mrb[0].mxu0 %v2167
        %v2362 = vpop.f32.mrb[0].mxu0
        %v2363 = vadd.f32 0.0, %v2362
        %v2364 = vpop.f32.mrb[0].mxu0
        %2365 = vmatprep.mubr.f32.mxu0 0.0
        %2366 = vmatmul.mubr.f32.gmra.mrb[0].mxu0 %v2170
        %v2367 = vpop.f32.mrb[0].mxu0
        %v2368 = vadd.f32 0.0, %v2367
        %v2369 = vpop.f32.mrb[0].mxu0
        %2370 = vmatprep.mubr.f32.mxu0 0.0
        %2371 = vmatmul.mubr.f32.gmra.mrb[0].mxu0 %v2173
        %v2372 = vpop.f32.mrb[0].mxu0
        %v2373 = vadd.f32 0.0, %v2372
        %v2374 = vpop.f32.mrb[0].mxu0
        %2375 = vmatprep.mubr.f32.mxu0 0.0
        %2376 = vmatmul.mubr.f32.gmra.mrb[0].mxu0 %v2176
        %v2377 = vpop.f32.mrb[0].mxu0
        %v2378 = vadd.f32 0.0, %v2377
        %v2379 = vpop.f32.mrb[0].mxu0
        %2380 = vmatprep.mubr.f32.mxu0 0.0
        %2381 = vmatmul.mubr.f32.gmra.mrb[0].mxu0 %v2179
        %v2382 = vpop.f32.mrb[0].mxu0
        %v2383 = vadd.f32 0.0, %v2382
        %v2384 = vpop.f32.mrb[0].mxu0
        %2385 = vmatprep.mubr.f32.mxu0 0.0
        %2386 = vmatmul.mubr.f32.gmra.mrb[0].mxu0 %v2182
        %v2387 = vpop.f32.mrb[0].mxu0
        %v2388 = vadd.f32 0.0, %v2387
        %v2389 = vpop.f32.mrb[0].mxu0
        %2390 = vmatprep.mubr.f32.mxu0 0.0
        %2391 = vmatmul.mubr.f32.gmra.mrb[0].mxu0 %v2185
        %v2392 = vpop.f32.mrb[0].mxu0
        %v2393 = vadd.f32 0.0, %v2392
        %v2394 = vpop.f32.mrb[0].mxu0
        %2395 = vmatprep.mubr.f32.mxu0 0.0
        %2396 = vmatmul.mubr.f32.gmra.mrb[0].mxu0 %v2188
        %v2397 = vpop.f32.mrb[0].mxu0
        %v2398 = vadd.f32 0.0, %v2397
        %v2399 = vpop.f32.mrb[0].mxu0
        %2400 = vmatprep.mubr.f32.mxu0 0.0
        %2401 = vmatmul.mubr.f32.gmra.mrb[0].mxu0 %v2191
        %v2402 = vpop.f32.mrb[0].mxu0
        %v2403 = vadd.f32 0.0, %v2402
        %v2404 = vpop.f32.mrb[0].mxu0
        %2405 = vmatprep.mubr.f32.mxu0 0.0
        %2406 = vmatmul.mubr.f32.gmra.mrb[0].mxu0 %v2194
        %v2407 = vpop.f32.mrb[0].mxu0
        %v2408 = vadd.f32 0.0, %v2407
        %v2409 = vpop.f32.mrb[0].mxu0
        %2410 = vmatprep.mubr.f32.mxu0 0.0
        %2411 = vmatmul.mubr.f32.gmra.mrb[0].mxu0 %v2197
        %v2412 = vpop.f32.mrb[0].mxu0
        %v2413 = vadd.f32 0.0, %v2412
        %v2414 = vpop.f32.mrb[0].mxu0
        %2415 = vmatprep.mubr.f32.mxu0 0.0
        %2416 = vmatmul.mubr.f32.gmra.mrb[0].mxu0 %v2200
        %v2417 = vpop.f32.mrb[0].mxu0
        %v2418 = vadd.f32 0.0, %v2417
        %v2419 = vpop.f32.mrb[0].mxu0
        %2420 = vmatprep.mubr.f32.mxu0 0.0
        %2421 = vmatmul.mubr.f32.gmra.mrb[0].mxu0 %v2203
        %v2422 = vpop.f32.mrb[0].mxu0
        %v2423 = vadd.f32 0.0, %v2422
        %v2424 = vpop.f32.mrb[0].mxu0
        %2425 = vmatprep.mubr.f32.mxu0 0.0
        %2426 = vmatmul.mubr.f32.gmra.mrb[0].mxu0 %v2206
        %v2427 = vpop.f32.mrb[0].mxu0
        %v2428 = vadd.f32 0.0, %v2427
        %v2429 = vpop.f32.mrb[0].mxu0
        %2430 = vmatprep.mubr.f32.mxu0 0.0
        %2431 = vmatmul.mubr.f32.gmra.mrb[0].mxu0 %v2209
        %v2432 = vpop.f32.mrb[0].mxu0
        %v2433 = vadd.f32 0.0, %v2432
        %v2434 = vpop.f32.mrb[0].mxu0
        %2435 = vdwg.mxu0
        %v2436 = vld [vmem:[#allocation2] sm:$0xff]
        %v2437 = vld [vmem:[#allocation2 + $0x8] sm:$0xff]
        %v2438 = vld [vmem:[#allocation2 + $0x10] sm:$0xff]
        %v2439 = vld [vmem:[#allocation2 + $0x18] sm:$0xff]
        %v2440 = vld [vmem:[#allocation2 + $0x20] sm:$0xff]
        %v2441 = vld [vmem:[#allocation2 + $0x28] sm:$0xff]
        %v2442 = vld [vmem:[#allocation2 + $0x30] sm:$0xff]
        %v2443 = vld [vmem:[#allocation2 + $0x38] sm:$0xff]
        %v2444 = vld [vmem:[#allocation2 + $0x40] sm:$0xff]
        %v2445 = vld [vmem:[#allocation2 + $0x48] sm:$0xff]
        %v2446 = vld [vmem:[#allocation2 + $0x50] sm:$0xff]
        %v2447 = vld [vmem:[#allocation2 + $0x58] sm:$0xff]
        %v2448 = vld [vmem:[#allocation2 + $0x60] sm:$0xff]
        %v2449 = vld [vmem:[#allocation2 + $0x68] sm:$0xff]
        %v2450 = vld [vmem:[#allocation2 + $0x70] sm:$0xff]
        %v2451 = vld [vmem:[#allocation2 + $0x78] sm:$0xff]
        %v2452 = vld [vmem:[#allocation2 + $0x80] sm:$0xff]
        %v2453 = vld [vmem:[#allocation2 + $0x88] sm:$0xff]
        %v2454 = vld [vmem:[#allocation2 + $0x90] sm:$0xff]
        %v2455 = vld [vmem:[#allocation2 + $0x98] sm:$0xff]
        %v2456 = vld [vmem:[#allocation2 + $0xa0] sm:$0xff]
        %v2457 = vld [vmem:[#allocation2 + $0xa8] sm:$0xff]
        %v2458 = vld [vmem:[#allocation2 + $0xb0] sm:$0xff]
        %v2459 = vld [vmem:[#allocation2 + $0xb8] sm:$0xff]
        %v2460 = vld [vmem:[#allocation2 + $0xc0] sm:$0xff]
        %v2461 = vld [vmem:[#allocation2 + $0xc8] sm:$0xff]
        %v2462 = vld [vmem:[#allocation2 + $0xd0] sm:$0xff]
        %v2463 = vld [vmem:[#allocation2 + $0xd8] sm:$0xff]
        %v2464 = vld [vmem:[#allocation2 + $0xe0] sm:$0xff]
        %v2465 = vld [vmem:[#allocation2 + $0xe8] sm:$0xff]
        %v2466 = vld [vmem:[#allocation2 + $0xf0] sm:$0xff]
        %v2467 = vld [vmem:[#allocation2 + $0xf8] sm:$0xff]
        %v2468 = vadd.f32 %v2436, %v2278
        %v2469 = vadd.f32 %v2437, %v2283
        %v2470 = vadd.f32 %v2438, %v2288
        %v2471 = vadd.f32 %v2439, %v2293
        %v2472 = vadd.f32 %v2440, %v2298
        %v2473 = vadd.f32 %v2441, %v2303
        %v2474 = vadd.f32 %v2442, %v2308
        %v2475 = vadd.f32 %v2443, %v2313
        %v2476 = vadd.f32 %v2444, %v2318
        %v2477 = vadd.f32 %v2445, %v2323
        %v2478 = vadd.f32 %v2446, %v2328
        %v2479 = vadd.f32 %v2447, %v2333
        %v2480 = vadd.f32 %v2448, %v2338
        %v2481 = vadd.f32 %v2449, %v2343
        %v2482 = vadd.f32 %v2450, %v2348
        %v2483 = vadd.f32 %v2451, %v2353
        %v2484 = vadd.f32 %v2452, %v2358
        %v2485 = vadd.f32 %v2453, %v2363
        %v2486 = vadd.f32 %v2454, %v2368
        %v2487 = vadd.f32 %v2455, %v2373
        %v2488 = vadd.f32 %v2456, %v2378
        %v2489 = vadd.f32 %v2457, %v2383
        %v2490 = vadd.f32 %v2458, %v2388
        %v2491 = vadd.f32 %v2459, %v2393
        %v2492 = vadd.f32 %v2460, %v2398
        %v2493 = vadd.f32 %v2461, %v2403
        %v2494 = vadd.f32 %v2462, %v2408
        %v2495 = vadd.f32 %v2463, %v2413
        %v2496 = vadd.f32 %v2464, %v2418
        %v2497 = vadd.f32 %v2465, %v2423
        %v2498 = vadd.f32 %v2466, %v2428
        %v2499 = vadd.f32 %v2467, %v2433
        %2500 = vst [vmem:[#allocation2] sm:$0xff] %v2468
        %2501 = vst [vmem:[#allocation2 + $0x8] sm:$0xff] %v2469
        %2502 = vst [vmem:[#allocation2 + $0x10] sm:$0xff] %v2470
        %2503 = vst [vmem:[#allocation2 + $0x18] sm:$0xff] %v2471
        %2504 = vst [vmem:[#allocation2 + $0x20] sm:$0xff] %v2472
        %2505 = vst [vmem:[#allocation2 + $0x28] sm:$0xff] %v2473
        %2506 = vst [vmem:[#allocation2 + $0x30] sm:$0xff] %v2474
        %2507 = vst [vmem:[#allocation2 + $0x38] sm:$0xff] %v2475
        %2508 = vst [vmem:[#allocation2 + $0x40] sm:$0xff] %v2476
        %2509 = vst [vmem:[#allocation2 + $0x48] sm:$0xff] %v2477
        %2510 = vst [vmem:[#allocation2 + $0x50] sm:$0xff] %v2478
        %2511 = vst [vmem:[#allocation2 + $0x58] sm:$0xff] %v2479
        %2512 = vst [vmem:[#allocation2 + $0x60] sm:$0xff] %v2480
        %2513 = vst [vmem:[#allocation2 + $0x68] sm:$0xff] %v2481
        %2514 = vst [vmem:[#allocation2 + $0x70] sm:$0xff] %v2482
        %2515 = vst [vmem:[#allocation2 + $0x78] sm:$0xff] %v2483
        %2516 = vst [vmem:[#allocation2 + $0x80] sm:$0xff] %v2484
        %2517 = vst [vmem:[#allocation2 + $0x88] sm:$0xff] %v2485
        %2518 = vst [vmem:[#allocation2 + $0x90] sm:$0xff] %v2486
        %2519 = vst [vmem:[#allocation2 + $0x98] sm:$0xff] %v2487
        %2520 = vst [vmem:[#allocation2 + $0xa0] sm:$0xff] %v2488
        %2521 = vst [vmem:[#allocation2 + $0xa8] sm:$0xff] %v2489
        %2522 = vst [vmem:[#allocation2 + $0xb0] sm:$0xff] %v2490
        %2523 = vst [vmem:[#allocation2 + $0xb8] sm:$0xff] %v2491
        %2524 = vst [vmem:[#allocation2 + $0xc0] sm:$0xff] %v2492
        %2525 = vst [vmem:[#allocation2 + $0xc8] sm:$0xff] %v2493
        %2526 = vst [vmem:[#allocation2 + $0xd0] sm:$0xff] %v2494
        %2527 = vst [vmem:[#allocation2 + $0xd8] sm:$0xff] %v2495
        %2528 = vst [vmem:[#allocation2 + $0xe0] sm:$0xff] %v2496
        %2529 = vst [vmem:[#allocation2 + $0xe8] sm:$0xff] %v2497
        %2530 = vst [vmem:[#allocation2 + $0xf0] sm:$0xff] %v2498
        %2531 = vst [vmem:[#allocation2 + $0xf8] sm:$0xff] %v2499
        %v2532 = vld [vmem:[%s2077 + $0x1] sm:$0xff]
        %v2533 = vld [vmem:[%s2077 + $0x9] sm:$0xff]
        %v2534 = vld [vmem:[%s2077 + $0x19] sm:$0xff]
        %v2535 = vld [vmem:[%s2077 + $0x21] sm:$0xff]
        %v2536 = vld [vmem:[%s2077 + $0x31] sm:$0xff]
        %v2537 = vld [vmem:[%s2077 + $0x39] sm:$0xff]
        %v2538 = vld [vmem:[%s2077 + $0x49] sm:$0xff]
        %v2539 = vld [vmem:[%s2077 + $0x51] sm:$0xff]
        %v2540 = vld [vmem:[%s2077 + $0x61] sm:$0xff]
        %v2541 = vld [vmem:[%s2077 + $0x69] sm:$0xff]
        %v2542 = vld [vmem:[%s2077 + $0x79] sm:$0xff]
        %v2543 = vld [vmem:[%s2077 + $0x81] sm:$0xff]
        %v2544 = vld [vmem:[%s2077 + $0x91] sm:$0xff]
        %v2545 = vld [vmem:[%s2077 + $0x99] sm:$0xff]
        %v2546 = vld [vmem:[%s2077 + $0xa9] sm:$0xff]
        %v2547 = vld [vmem:[%s2077 + $0xb1] sm:$0xff]
        %v2548 = vld [vmem:[%s2077 + $0xc1] sm:$0xff]
        %v2549 = vld [vmem:[%s2077 + $0xc9] sm:$0xff]
        %v2550 = vld [vmem:[%s2077 + $0xd9] sm:$0xff]
        %v2551 = vld [vmem:[%s2077 + $0xe1] sm:$0xff]
        %v2552 = vld [vmem:[%s2077 + $0xf1] sm:$0xff]
        %v2553 = vld [vmem:[%s2077 + $0xf9] sm:$0xff]
        %v2554 = vld [vmem:[%s2077 + $0x109] sm:$0xff]
        %v2555 = vld [vmem:[%s2077 + $0x111] sm:$0xff]
        %v2556 = vld [vmem:[%s2077 + $0x121] sm:$0xff]
        %v2557 = vld [vmem:[%s2077 + $0x129] sm:$0xff]
        %v2558 = vld [vmem:[%s2077 + $0x139] sm:$0xff]
        %v2559 = vld [vmem:[%s2077 + $0x141] sm:$0xff]
        %v2560 = vld [vmem:[%s2077 + $0x151] sm:$0xff]
        %v2561 = vld [vmem:[%s2077 + $0x159] sm:$0xff]
        %v2562 = vld [vmem:[%s2077 + $0x169] sm:$0xff]
        %v2563 = vld [vmem:[%s2077 + $0x171] sm:$0xff]
        %s2564 = scalar_lea.vmem %s1, 128
        %v2565 = vld [vmem:[%s2564] sm:$0xff]
        %v2566 = vld [vmem:[%s2564 + $0x8] sm:$0xff]
        %v2567 = vld [vmem:[%s2564 + $0x10] sm:$0xff]
        %v2568 = vld [vmem:[%s2564 + $0x18] sm:$0xff]
        %v2570 = vsel %vm815, %v2532, 0
        %v2573 = vsel %vm815, %v2533, 0
        %v2576 = vsel %vm815, %v2534, 0
        %v2579 = vsel %vm815, %v2535, 0
        %v2582 = vsel %vm815, %v2536, 0
        %v2585 = vsel %vm815, %v2537, 0
        %v2588 = vsel %vm815, %v2538, 0
        %v2591 = vsel %vm815, %v2539, 0
        %v2594 = vsel %vm815, %v2540, 0
        %v2597 = vsel %vm815, %v2541, 0
        %v2600 = vsel %vm815, %v2542, 0
        %v2603 = vsel %vm815, %v2543, 0
        %v2606 = vsel %vm815, %v2544, 0
        %v2609 = vsel %vm815, %v2545, 0
        %v2612 = vsel %vm815, %v2546, 0
        %v2615 = vsel %vm815, %v2547, 0
        %v2618 = vsel %vm815, %v2548, 0
        %v2621 = vsel %vm815, %v2549, 0
        %v2624 = vsel %vm815, %v2550, 0
        %v2627 = vsel %vm815, %v2551, 0
        %v2630 = vsel %vm815, %v2552, 0
        %v2633 = vsel %vm815, %v2553, 0
        %v2636 = vsel %vm815, %v2554, 0
        %v2639 = vsel %vm815, %v2555, 0
        %v2642 = vsel %vm815, %v2556, 0
        %v2645 = vsel %vm815, %v2557, 0
        %v2648 = vsel %vm815, %v2558, 0
        %v2651 = vsel %vm815, %v2559, 0
        %v2654 = vsel %vm815, %v2560, 0
        %v2657 = vsel %vm815, %v2561, 0
        %v2660 = vsel %vm815, %v2562, 0
        %v2663 = vsel %vm815, %v2563, 0
        %2665 = vmatprep.subr.mxu0 0.0
        %2666 = vmatpush1.msra.mxu0 %v2565
        %2667 = vmatprep.subr.mxu0 0.0
        %2668 = vmatpush1.msra.mxu0 %v2566
        %2669 = vmatprep.subr.mxu0 0.0
        %2670 = vmatpush1.msra.mxu0 %v2567
        %2671 = vmatprep.subr.mxu0 0.0
        %2672 = vmatpush1.msra.mxu0 %v2568
        %2673 = vmatprep.subr.mxu0 0.0
        %2674 = vmatpush1.msra.mxu0 0.0
        %2675 = vmatprep.subr.mxu0 0.0
        %2676 = vmatpush1.msra.mxu0 0.0
        %2677 = vmatprep.subr.mxu0 0.0
        %2678 = vmatpush1.msra.mxu0 0.0
        %2679 = vmatprep.subr.mxu0 0.0
        %2680 = vmatpush1.msra.mxu0 0.0
        %2681 = vmatprep.subr.mxu0 0.0
        %2682 = vmatpush1.msra.mxu0 0.0
        %2683 = vmatprep.subr.mxu0 0.0
        %2684 = vmatpush1.msra.mxu0 0.0
        %2685 = vmatprep.subr.mxu0 0.0
        %2686 = vmatpush1.msra.mxu0 0.0
        %2687 = vmatprep.subr.mxu0 0.0
        %2688 = vmatpush1.msra.mxu0 0.0
        %2689 = vmatprep.subr.mxu0 0.0
        %2690 = vmatpush1.msra.mxu0 0.0
        %2691 = vmatprep.subr.mxu0 0.0
        %2692 = vmatpush1.msra.mxu0 0.0
        %2693 = vmatprep.subr.mxu0 0.0
        %2694 = vmatpush1.msra.mxu0 0.0
        %2695 = vmatprep.subr.mxu0 0.0
        %2696 = vmatpush1.msra.mxu0 0.0
        %2697 = vmatprep.subr.mxu0 0.0
        %2698 = vmatpush1.msra.mxu0 0.0
        %2699 = vmatprep.subr.mxu0 0.0
        %2700 = vmatpush1.msra.mxu0 0.0
        %2701 = vmatprep.subr.mxu0 0.0
        %2702 = vmatpush1.msra.mxu0 0.0
        %2703 = vmatprep.subr.mxu0 0.0
        %2704 = vmatpush1.msra.mxu0 0.0
        %2705 = vmatprep.subr.mxu0 0.0
        %2706 = vmatpush1.msra.mxu0 0.0
        %2707 = vmatprep.subr.mxu0 0.0
        %2708 = vmatpush1.msra.mxu0 0.0
        %2709 = vmatprep.subr.mxu0 0.0
        %2710 = vmatpush1.msra.mxu0 0.0
        %2711 = vmatprep.subr.mxu0 0.0
        %2712 = vmatpush1.msra.mxu0 0.0
        %2713 = vmatprep.subr.mxu0 0.0
        %2714 = vmatpush1.msra.mxu0 0.0
        %2715 = vmatprep.subr.mxu0 0.0
        %2716 = vmatpush1.msra.mxu0 0.0
        %2717 = vmatprep.subr.mxu0 0.0
        %2718 = vmatpush1.msra.mxu0 0.0
        %2719 = vmatprep.subr.mxu0 0.0
        %2720 = vmatpush1.msra.mxu0 0.0
        %2721 = vmatprep.subr.mxu0 0.0
        %2722 = vmatpush1.msra.mxu0 0.0
        %2723 = vmatprep.subr.mxu0 0.0
        %2724 = vmatpush1.msra.mxu0 0.0
        %2725 = vmatprep.subr.mxu0 0.0
        %2726 = vmatpush1.msra.mxu0 0.0
        %2727 = vmatprep.subr.mxu0 0.0
        %2728 = vmatpush1.msra.mxu0 0.0
        %2729 = vmatprep.mubr.f32.mxu0 0.0
        %2730 = vmatmul.mubr.f32.gmra.mrb[0].mxu0 %v2570
        %v2731 = vpop.f32.mrb[0].mxu0
        %v2732 = vadd.f32 0.0, %v2731
        %v2733 = vpop.f32.mrb[0].mxu0
        %2734 = vmatprep.mubr.f32.mxu0 0.0
        %2735 = vmatmul.mubr.f32.gmra.mrb[0].mxu0 %v2573
        %v2736 = vpop.f32.mrb[0].mxu0
        %v2737 = vadd.f32 0.0, %v2736
        %v2738 = vpop.f32.mrb[0].mxu0
        %2739 = vmatprep.mubr.f32.mxu0 0.0
        %2740 = vmatmul.mubr.f32.gmra.mrb[0].mxu0 %v2576
        %v2741 = vpop.f32.mrb[0].mxu0
        %v2742 = vadd.f32 0.0, %v2741
        %v2743 = vpop.f32.mrb[0].mxu0
        %2744 = vmatprep.mubr.f32.mxu0 0.0
        %2745 = vmatmul.mubr.f32.gmra.mrb[0].mxu0 %v2579
        %v2746 = vpop.f32.mrb[0].mxu0
        %v2747 = vadd.f32 0.0, %v2746
        %v2748 = vpop.f32.mrb[0].mxu0
        %2749 = vmatprep.mubr.f32.mxu0 0.0
        %2750 = vmatmul.mubr.f32.gmra.mrb[0].mxu0 %v2582
        %v2751 = vpop.f32.mrb[0].mxu0
        %v2752 = vadd.f32 0.0, %v2751
        %v2753 = vpop.f32.mrb[0].mxu0
        %2754 = vmatprep.mubr.f32.mxu0 0.0
        %2755 = vmatmul.mubr.f32.gmra.mrb[0].mxu0 %v2585
        %v2756 = vpop.f32.mrb[0].mxu0
        %v2757 = vadd.f32 0.0, %v2756
        %v2758 = vpop.f32.mrb[0].mxu0
        %2759 = vmatprep.mubr.f32.mxu0 0.0
        %2760 = vmatmul.mubr.f32.gmra.mrb[0].mxu0 %v2588
        %v2761 = vpop.f32.mrb[0].mxu0
        %v2762 = vadd.f32 0.0, %v2761
        %v2763 = vpop.f32.mrb[0].mxu0
        %2764 = vmatprep.mubr.f32.mxu0 0.0
        %2765 = vmatmul.mubr.f32.gmra.mrb[0].mxu0 %v2591
        %v2766 = vpop.f32.mrb[0].mxu0
        %v2767 = vadd.f32 0.0, %v2766
        %v2768 = vpop.f32.mrb[0].mxu0
        %2769 = vmatprep.mubr.f32.mxu0 0.0
        %2770 = vmatmul.mubr.f32.gmra.mrb[0].mxu0 %v2594
        %v2771 = vpop.f32.mrb[0].mxu0
        %v2772 = vadd.f32 0.0, %v2771
        %v2773 = vpop.f32.mrb[0].mxu0
        %2774 = vmatprep.mubr.f32.mxu0 0.0
        %2775 = vmatmul.mubr.f32.gmra.mrb[0].mxu0 %v2597
        %v2776 = vpop.f32.mrb[0].mxu0
        %v2777 = vadd.f32 0.0, %v2776
        %v2778 = vpop.f32.mrb[0].mxu0
        %2779 = vmatprep.mubr.f32.mxu0 0.0
        %2780 = vmatmul.mubr.f32.gmra.mrb[0].mxu0 %v2600
        %v2781 = vpop.f32.mrb[0].mxu0
        %v2782 = vadd.f32 0.0, %v2781
        %v2783 = vpop.f32.mrb[0].mxu0
        %2784 = vmatprep.mubr.f32.mxu0 0.0
        %2785 = vmatmul.mubr.f32.gmra.mrb[0].mxu0 %v2603
        %v2786 = vpop.f32.mrb[0].mxu0
        %v2787 = vadd.f32 0.0, %v2786
        %v2788 = vpop.f32.mrb[0].mxu0
        %2789 = vmatprep.mubr.f32.mxu0 0.0
        %2790 = vmatmul.mubr.f32.gmra.mrb[0].mxu0 %v2606
        %v2791 = vpop.f32.mrb[0].mxu0
        %v2792 = vadd.f32 0.0, %v2791
        %v2793 = vpop.f32.mrb[0].mxu0
        %2794 = vmatprep.mubr.f32.mxu0 0.0
        %2795 = vmatmul.mubr.f32.gmra.mrb[0].mxu0 %v2609
        %v2796 = vpop.f32.mrb[0].mxu0
        %v2797 = vadd.f32 0.0, %v2796
        %v2798 = vpop.f32.mrb[0].mxu0
        %2799 = vmatprep.mubr.f32.mxu0 0.0
        %2800 = vmatmul.mubr.f32.gmra.mrb[0].mxu0 %v2612
        %v2801 = vpop.f32.mrb[0].mxu0
        %v2802 = vadd.f32 0.0, %v2801
        %v2803 = vpop.f32.mrb[0].mxu0
        %2804 = vmatprep.mubr.f32.mxu0 0.0
        %2805 = vmatmul.mubr.f32.gmra.mrb[0].mxu0 %v2615
        %v2806 = vpop.f32.mrb[0].mxu0
        %v2807 = vadd.f32 0.0, %v2806
        %v2808 = vpop.f32.mrb[0].mxu0
        %2809 = vmatprep.mubr.f32.mxu0 0.0
        %2810 = vmatmul.mubr.f32.gmra.mrb[0].mxu0 %v2618
        %v2811 = vpop.f32.mrb[0].mxu0
        %v2812 = vadd.f32 0.0, %v2811
        %v2813 = vpop.f32.mrb[0].mxu0
        %2814 = vmatprep.mubr.f32.mxu0 0.0
        %2815 = vmatmul.mubr.f32.gmra.mrb[0].mxu0 %v2621
        %v2816 = vpop.f32.mrb[0].mxu0
        %v2817 = vadd.f32 0.0, %v2816
        %v2818 = vpop.f32.mrb[0].mxu0
        %2819 = vmatprep.mubr.f32.mxu0 0.0
        %2820 = vmatmul.mubr.f32.gmra.mrb[0].mxu0 %v2624
        %v2821 = vpop.f32.mrb[0].mxu0
        %v2822 = vadd.f32 0.0, %v2821
        %v2823 = vpop.f32.mrb[0].mxu0
        %2824 = vmatprep.mubr.f32.mxu0 0.0
        %2825 = vmatmul.mubr.f32.gmra.mrb[0].mxu0 %v2627
        %v2826 = vpop.f32.mrb[0].mxu0
        %v2827 = vadd.f32 0.0, %v2826
        %v2828 = vpop.f32.mrb[0].mxu0
        %2829 = vmatprep.mubr.f32.mxu0 0.0
        %2830 = vmatmul.mubr.f32.gmra.mrb[0].mxu0 %v2630
        %v2831 = vpop.f32.mrb[0].mxu0
        %v2832 = vadd.f32 0.0, %v2831
        %v2833 = vpop.f32.mrb[0].mxu0
        %2834 = vmatprep.mubr.f32.mxu0 0.0
        %2835 = vmatmul.mubr.f32.gmra.mrb[0].mxu0 %v2633
        %v2836 = vpop.f32.mrb[0].mxu0
        %v2837 = vadd.f32 0.0, %v2836
        %v2838 = vpop.f32.mrb[0].mxu0
        %2839 = vmatprep.mubr.f32.mxu0 0.0
        %2840 = vmatmul.mubr.f32.gmra.mrb[0].mxu0 %v2636
        %v2841 = vpop.f32.mrb[0].mxu0
        %v2842 = vadd.f32 0.0, %v2841
        %v2843 = vpop.f32.mrb[0].mxu0
        %2844 = vmatprep.mubr.f32.mxu0 0.0
        %2845 = vmatmul.mubr.f32.gmra.mrb[0].mxu0 %v2639
        %v2846 = vpop.f32.mrb[0].mxu0
        %v2847 = vadd.f32 0.0, %v2846
        %v2848 = vpop.f32.mrb[0].mxu0
        %2849 = vmatprep.mubr.f32.mxu0 0.0
        %2850 = vmatmul.mubr.f32.gmra.mrb[0].mxu0 %v2642
        %v2851 = vpop.f32.mrb[0].mxu0
        %v2852 = vadd.f32 0.0, %v2851
        %v2853 = vpop.f32.mrb[0].mxu0
        %2854 = vmatprep.mubr.f32.mxu0 0.0
        %2855 = vmatmul.mubr.f32.gmra.mrb[0].mxu0 %v2645
        %v2856 = vpop.f32.mrb[0].mxu0
        %v2857 = vadd.f32 0.0, %v2856
        %v2858 = vpop.f32.mrb[0].mxu0
        %2859 = vmatprep.mubr.f32.mxu0 0.0
        %2860 = vmatmul.mubr.f32.gmra.mrb[0].mxu0 %v2648
        %v2861 = vpop.f32.mrb[0].mxu0
        %v2862 = vadd.f32 0.0, %v2861
        %v2863 = vpop.f32.mrb[0].mxu0
        %2864 = vmatprep.mubr.f32.mxu0 0.0
        %2865 = vmatmul.mubr.f32.gmra.mrb[0].mxu0 %v2651
        %v2866 = vpop.f32.mrb[0].mxu0
        %v2867 = vadd.f32 0.0, %v2866
        %v2868 = vpop.f32.mrb[0].mxu0
        %2869 = vmatprep.mubr.f32.mxu0 0.0
        %2870 = vmatmul.mubr.f32.gmra.mrb[0].mxu0 %v2654
        %v2871 = vpop.f32.mrb[0].mxu0
        %v2872 = vadd.f32 0.0, %v2871
        %v2873 = vpop.f32.mrb[0].mxu0
        %2874 = vmatprep.mubr.f32.mxu0 0.0
        %2875 = vmatmul.mubr.f32.gmra.mrb[0].mxu0 %v2657
        %v2876 = vpop.f32.mrb[0].mxu0
        %v2877 = vadd.f32 0.0, %v2876
        %v2878 = vpop.f32.mrb[0].mxu0
        %2879 = vmatprep.mubr.f32.mxu0 0.0
        %2880 = vmatmul.mubr.f32.gmra.mrb[0].mxu0 %v2660
        %v2881 = vpop.f32.mrb[0].mxu0
        %v2882 = vadd.f32 0.0, %v2881
        %v2883 = vpop.f32.mrb[0].mxu0
        %2884 = vmatprep.mubr.f32.mxu0 0.0
        %2885 = vmatmul.mubr.f32.gmra.mrb[0].mxu0 %v2663
        %v2886 = vpop.f32.mrb[0].mxu0
        %v2887 = vadd.f32 0.0, %v2886
        %v2888 = vpop.f32.mrb[0].mxu0
        %2889 = vdwg.mxu0
        %v2890 = vld [vmem:[#allocation2] sm:$0xff]
        %v2891 = vld [vmem:[#allocation2 + $0x8] sm:$0xff]
        %v2892 = vld [vmem:[#allocation2 + $0x10] sm:$0xff]
        %v2893 = vld [vmem:[#allocation2 + $0x18] sm:$0xff]
        %v2894 = vld [vmem:[#allocation2 + $0x20] sm:$0xff]
        %v2895 = vld [vmem:[#allocation2 + $0x28] sm:$0xff]
        %v2896 = vld [vmem:[#allocation2 + $0x30] sm:$0xff]
        %v2897 = vld [vmem:[#allocation2 + $0x38] sm:$0xff]
        %v2898 = vld [vmem:[#allocation2 + $0x40] sm:$0xff]
        %v2899 = vld [vmem:[#allocation2 + $0x48] sm:$0xff]
        %v2900 = vld [vmem:[#allocation2 + $0x50] sm:$0xff]
        %v2901 = vld [vmem:[#allocation2 + $0x58] sm:$0xff]
        %v2902 = vld [vmem:[#allocation2 + $0x60] sm:$0xff]
        %v2903 = vld [vmem:[#allocation2 + $0x68] sm:$0xff]
        %v2904 = vld [vmem:[#allocation2 + $0x70] sm:$0xff]
        %v2905 = vld [vmem:[#allocation2 + $0x78] sm:$0xff]
        %v2906 = vld [vmem:[#allocation2 + $0x80] sm:$0xff]
        %v2907 = vld [vmem:[#allocation2 + $0x88] sm:$0xff]
        %v2908 = vld [vmem:[#allocation2 + $0x90] sm:$0xff]
        %v2909 = vld [vmem:[#allocation2 + $0x98] sm:$0xff]
        %v2910 = vld [vmem:[#allocation2 + $0xa0] sm:$0xff]
        %v2911 = vld [vmem:[#allocation2 + $0xa8] sm:$0xff]
        %v2912 = vld [vmem:[#allocation2 + $0xb0] sm:$0xff]
        %v2913 = vld [vmem:[#allocation2 + $0xb8] sm:$0xff]
        %v2914 = vld [vmem:[#allocation2 + $0xc0] sm:$0xff]
        %v2915 = vld [vmem:[#allocation2 + $0xc8] sm:$0xff]
        %v2916 = vld [vmem:[#allocation2 + $0xd0] sm:$0xff]
        %v2917 = vld [vmem:[#allocation2 + $0xd8] sm:$0xff]
        %v2918 = vld [vmem:[#allocation2 + $0xe0] sm:$0xff]
        %v2919 = vld [vmem:[#allocation2 + $0xe8] sm:$0xff]
        %v2920 = vld [vmem:[#allocation2 + $0xf0] sm:$0xff]
        %v2921 = vld [vmem:[#allocation2 + $0xf8] sm:$0xff]
        %v2922 = vadd.f32 %v2890, %v2732
        %v2923 = vadd.f32 %v2891, %v2737
        %v2924 = vadd.f32 %v2892, %v2742
        %v2925 = vadd.f32 %v2893, %v2747
        %v2926 = vadd.f32 %v2894, %v2752
        %v2927 = vadd.f32 %v2895, %v2757
        %v2928 = vadd.f32 %v2896, %v2762
        %v2929 = vadd.f32 %v2897, %v2767
        %v2930 = vadd.f32 %v2898, %v2772
        %v2931 = vadd.f32 %v2899, %v2777
        %v2932 = vadd.f32 %v2900, %v2782
        %v2933 = vadd.f32 %v2901, %v2787
        %v2934 = vadd.f32 %v2902, %v2792
        %v2935 = vadd.f32 %v2903, %v2797
        %v2936 = vadd.f32 %v2904, %v2802
        %v2937 = vadd.f32 %v2905, %v2807
        %v2938 = vadd.f32 %v2906, %v2812
        %v2939 = vadd.f32 %v2907, %v2817
        %v2940 = vadd.f32 %v2908, %v2822
        %v2941 = vadd.f32 %v2909, %v2827
        %v2942 = vadd.f32 %v2910, %v2832
        %v2943 = vadd.f32 %v2911, %v2837
        %v2944 = vadd.f32 %v2912, %v2842
        %v2945 = vadd.f32 %v2913, %v2847
        %v2946 = vadd.f32 %v2914, %v2852
        %v2947 = vadd.f32 %v2915, %v2857
        %v2948 = vadd.f32 %v2916, %v2862
        %v2949 = vadd.f32 %v2917, %v2867
        %v2950 = vadd.f32 %v2918, %v2872
        %v2951 = vadd.f32 %v2919, %v2877
        %v2952 = vadd.f32 %v2920, %v2882
        %v2953 = vadd.f32 %v2921, %v2887
        %2954 = vst [vmem:[#allocation2] sm:$0xff] %v2922
        %2955 = vst [vmem:[#allocation2 + $0x8] sm:$0xff] %v2923
        %2956 = vst [vmem:[#allocation2 + $0x10] sm:$0xff] %v2924
        %2957 = vst [vmem:[#allocation2 + $0x18] sm:$0xff] %v2925
        %2958 = vst [vmem:[#allocation2 + $0x20] sm:$0xff] %v2926
        %2959 = vst [vmem:[#allocation2 + $0x28] sm:$0xff] %v2927
        %2960 = vst [vmem:[#allocation2 + $0x30] sm:$0xff] %v2928
        %2961 = vst [vmem:[#allocation2 + $0x38] sm:$0xff] %v2929
        %2962 = vst [vmem:[#allocation2 + $0x40] sm:$0xff] %v2930
        %2963 = vst [vmem:[#allocation2 + $0x48] sm:$0xff] %v2931
        %2964 = vst [vmem:[#allocation2 + $0x50] sm:$0xff] %v2932
        %2965 = vst [vmem:[#allocation2 + $0x58] sm:$0xff] %v2933
        %2966 = vst [vmem:[#allocation2 + $0x60] sm:$0xff] %v2934
        %2967 = vst [vmem:[#allocation2 + $0x68] sm:$0xff] %v2935
        %2968 = vst [vmem:[#allocation2 + $0x70] sm:$0xff] %v2936
        %2969 = vst [vmem:[#allocation2 + $0x78] sm:$0xff] %v2937
        %2970 = vst [vmem:[#allocation2 + $0x80] sm:$0xff] %v2938
        %2971 = vst [vmem:[#allocation2 + $0x88] sm:$0xff] %v2939
        %2972 = vst [vmem:[#allocation2 + $0x90] sm:$0xff] %v2940
        %2973 = vst [vmem:[#allocation2 + $0x98] sm:$0xff] %v2941
        %2974 = vst [vmem:[#allocation2 + $0xa0] sm:$0xff] %v2942
        %2975 = vst [vmem:[#allocation2 + $0xa8] sm:$0xff] %v2943
        %2976 = vst [vmem:[#allocation2 + $0xb0] sm:$0xff] %v2944
        %2977 = vst [vmem:[#allocation2 + $0xb8] sm:$0xff] %v2945
        %2978 = vst [vmem:[#allocation2 + $0xc0] sm:$0xff] %v2946
        %2979 = vst [vmem:[#allocation2 + $0xc8] sm:$0xff] %v2947
        %2980 = vst [vmem:[#allocation2 + $0xd0] sm:$0xff] %v2948
        %2981 = vst [vmem:[#allocation2 + $0xd8] sm:$0xff] %v2949
        %2982 = vst [vmem:[#allocation2 + $0xe0] sm:$0xff] %v2950
        %2983 = vst [vmem:[#allocation2 + $0xe8] sm:$0xff] %v2951
        %2984 = vst [vmem:[#allocation2 + $0xf0] sm:$0xff] %v2952
        %2985 = vst [vmem:[#allocation2 + $0xf8] sm:$0xff] %v2953
        %v2986 = vld [vmem:[%s2077 + $0x2] sm:$0xff]
        %v2987 = vld [vmem:[%s2077 + $0xa] sm:$0xff]
        %v2988 = vld [vmem:[%s2077 + $0x1a] sm:$0xff]
        %v2989 = vld [vmem:[%s2077 + $0x22] sm:$0xff]
        %v2990 = vld [vmem:[%s2077 + $0x32] sm:$0xff]
        %v2991 = vld [vmem:[%s2077 + $0x3a] sm:$0xff]
        %v2992 = vld [vmem:[%s2077 + $0x4a] sm:$0xff]
        %v2993 = vld [vmem:[%s2077 + $0x52] sm:$0xff]
        %v2994 = vld [vmem:[%s2077 + $0x62] sm:$0xff]
        %v2995 = vld [vmem:[%s2077 + $0x6a] sm:$0xff]
        %v2996 = vld [vmem:[%s2077 + $0x7a] sm:$0xff]
        %v2997 = vld [vmem:[%s2077 + $0x82] sm:$0xff]
        %v2998 = vld [vmem:[%s2077 + $0x92] sm:$0xff]
        %v2999 = vld [vmem:[%s2077 + $0x9a] sm:$0xff]
        %v3000 = vld [vmem:[%s2077 + $0xaa] sm:$0xff]
        %v3001 = vld [vmem:[%s2077 + $0xb2] sm:$0xff]
        %v3002 = vld [vmem:[%s2077 + $0xc2] sm:$0xff]
        %v3003 = vld [vmem:[%s2077 + $0xca] sm:$0xff]
        %v3004 = vld [vmem:[%s2077 + $0xda] sm:$0xff]
        %v3005 = vld [vmem:[%s2077 + $0xe2] sm:$0xff]
        %v3006 = vld [vmem:[%s2077 + $0xf2] sm:$0xff]
        %v3007 = vld [vmem:[%s2077 + $0xfa] sm:$0xff]
        %v3008 = vld [vmem:[%s2077 + $0x10a] sm:$0xff]
        %v3009 = vld [vmem:[%s2077 + $0x112] sm:$0xff]
        %v3010 = vld [vmem:[%s2077 + $0x122] sm:$0xff]
        %v3011 = vld [vmem:[%s2077 + $0x12a] sm:$0xff]
        %v3012 = vld [vmem:[%s2077 + $0x13a] sm:$0xff]
        %v3013 = vld [vmem:[%s2077 + $0x142] sm:$0xff]
        %v3014 = vld [vmem:[%s2077 + $0x152] sm:$0xff]
        %v3015 = vld [vmem:[%s2077 + $0x15a] sm:$0xff]
        %v3016 = vld [vmem:[%s2077 + $0x16a] sm:$0xff]
        %v3017 = vld [vmem:[%s2077 + $0x172] sm:$0xff]
        %s3018 = scalar_lea.vmem %s1, 160
        %v3019 = vld [vmem:[%s3018] sm:$0xff]
        %v3020 = vld [vmem:[%s3018 + $0x8] sm:$0xff]
        %v3021 = vld [vmem:[%s3018 + $0x10] sm:$0xff]
        %v3022 = vld [vmem:[%s3018 + $0x18] sm:$0xff]
        %v3024 = vsel %vm815, %v2986, 0
        %v3027 = vsel %vm815, %v2987, 0
        %v3030 = vsel %vm815, %v2988, 0
        %v3033 = vsel %vm815, %v2989, 0
        %v3036 = vsel %vm815, %v2990, 0
        %v3039 = vsel %vm815, %v2991, 0
        %v3042 = vsel %vm815, %v2992, 0
        %v3045 = vsel %vm815, %v2993, 0
        %v3048 = vsel %vm815, %v2994, 0
        %v3051 = vsel %vm815, %v2995, 0
        %v3054 = vsel %vm815, %v2996, 0
        %v3057 = vsel %vm815, %v2997, 0
        %v3060 = vsel %vm815, %v2998, 0
        %v3063 = vsel %vm815, %v2999, 0
        %v3066 = vsel %vm815, %v3000, 0
        %v3069 = vsel %vm815, %v3001, 0
        %v3072 = vsel %vm815, %v3002, 0
        %v3075 = vsel %vm815, %v3003, 0
        %v3078 = vsel %vm815, %v3004, 0
        %v3081 = vsel %vm815, %v3005, 0
        %v3084 = vsel %vm815, %v3006, 0
        %v3087 = vsel %vm815, %v3007, 0
        %v3090 = vsel %vm815, %v3008, 0
        %v3093 = vsel %vm815, %v3009, 0
        %v3096 = vsel %vm815, %v3010, 0
        %v3099 = vsel %vm815, %v3011, 0
        %v3102 = vsel %vm815, %v3012, 0
        %v3105 = vsel %vm815, %v3013, 0
        %v3108 = vsel %vm815, %v3014, 0
        %v3111 = vsel %vm815, %v3015, 0
        %v3114 = vsel %vm815, %v3016, 0
        %v3117 = vsel %vm815, %v3017, 0
        %3119 = vmatprep.subr.mxu0 0.0
        %3120 = vmatpush1.msra.mxu0 %v3019
        %3121 = vmatprep.subr.mxu0 0.0
        %3122 = vmatpush1.msra.mxu0 %v3020
        %3123 = vmatprep.subr.mxu0 0.0
        %3124 = vmatpush1.msra.mxu0 %v3021
        %3125 = vmatprep.subr.mxu0 0.0
        %3126 = vmatpush1.msra.mxu0 %v3022
        %3127 = vmatprep.subr.mxu0 0.0
        %3128 = vmatpush1.msra.mxu0 0.0
        %3129 = vmatprep.subr.mxu0 0.0
        %3130 = vmatpush1.msra.mxu0 0.0
        %3131 = vmatprep.subr.mxu0 0.0
        %3132 = vmatpush1.msra.mxu0 0.0
        %3133 = vmatprep.subr.mxu0 0.0
        %3134 = vmatpush1.msra.mxu0 0.0
        %3135 = vmatprep.subr.mxu0 0.0
        %3136 = vmatpush1.msra.mxu0 0.0
        %3137 = vmatprep.subr.mxu0 0.0
        %3138 = vmatpush1.msra.mxu0 0.0
        %3139 = vmatprep.subr.mxu0 0.0
        %3140 = vmatpush1.msra.mxu0 0.0
        %3141 = vmatprep.subr.mxu0 0.0
        %3142 = vmatpush1.msra.mxu0 0.0
        %3143 = vmatprep.subr.mxu0 0.0
        %3144 = vmatpush1.msra.mxu0 0.0
        %3145 = vmatprep.subr.mxu0 0.0
        %3146 = vmatpush1.msra.mxu0 0.0
        %3147 = vmatprep.subr.mxu0 0.0
        %3148 = vmatpush1.msra.mxu0 0.0
        %3149 = vmatprep.subr.mxu0 0.0
        %3150 = vmatpush1.msra.mxu0 0.0
        %3151 = vmatprep.subr.mxu0 0.0
        %3152 = vmatpush1.msra.mxu0 0.0
        %3153 = vmatprep.subr.mxu0 0.0
        %3154 = vmatpush1.msra.mxu0 0.0
        %3155 = vmatprep.subr.mxu0 0.0
        %3156 = vmatpush1.msra.mxu0 0.0
        %3157 = vmatprep.subr.mxu0 0.0
        %3158 = vmatpush1.msra.mxu0 0.0
        %3159 = vmatprep.subr.mxu0 0.0
        %3160 = vmatpush1.msra.mxu0 0.0
        %3161 = vmatprep.subr.mxu0 0.0
        %3162 = vmatpush1.msra.mxu0 0.0
        %3163 = vmatprep.subr.mxu0 0.0
        %3164 = vmatpush1.msra.mxu0 0.0
        %3165 = vmatprep.subr.mxu0 0.0
        %3166 = vmatpush1.msra.mxu0 0.0
        %3167 = vmatprep.subr.mxu0 0.0
        %3168 = vmatpush1.msra.mxu0 0.0
        %3169 = vmatprep.subr.mxu0 0.0
        %3170 = vmatpush1.msra.mxu0 0.0
        %3171 = vmatprep.subr.mxu0 0.0
        %3172 = vmatpush1.msra.mxu0 0.0
        %3173 = vmatprep.subr.mxu0 0.0
        %3174 = vmatpush1.msra.mxu0 0.0
        %3175 = vmatprep.subr.mxu0 0.0
        %3176 = vmatpush1.msra.mxu0 0.0
        %3177 = vmatprep.subr.mxu0 0.0
        %3178 = vmatpush1.msra.mxu0 0.0
        %3179 = vmatprep.subr.mxu0 0.0
        %3180 = vmatpush1.msra.mxu0 0.0
        %3181 = vmatprep.subr.mxu0 0.0
        %3182 = vmatpush1.msra.mxu0 0.0
        %3183 = vmatprep.mubr.f32.mxu0 0.0
        %3184 = vmatmul.mubr.f32.gmra.mrb[0].mxu0 %v3024
        %v3185 = vpop.f32.mrb[0].mxu0
        %v3186 = vadd.f32 0.0, %v3185
        %v3187 = vpop.f32.mrb[0].mxu0
        %3188 = vmatprep.mubr.f32.mxu0 0.0
        %3189 = vmatmul.mubr.f32.gmra.mrb[0].mxu0 %v3027
        %v3190 = vpop.f32.mrb[0].mxu0
        %v3191 = vadd.f32 0.0, %v3190
        %v3192 = vpop.f32.mrb[0].mxu0
        %3193 = vmatprep.mubr.f32.mxu0 0.0
        %3194 = vmatmul.mubr.f32.gmra.mrb[0].mxu0 %v3030
        %v3195 = vpop.f32.mrb[0].mxu0
        %v3196 = vadd.f32 0.0, %v3195
        %v3197 = vpop.f32.mrb[0].mxu0
        %3198 = vmatprep.mubr.f32.mxu0 0.0
        %3199 = vmatmul.mubr.f32.gmra.mrb[0].mxu0 %v3033
        %v3200 = vpop.f32.mrb[0].mxu0
        %v3201 = vadd.f32 0.0, %v3200
        %v3202 = vpop.f32.mrb[0].mxu0
        %3203 = vmatprep.mubr.f32.mxu0 0.0
        %3204 = vmatmul.mubr.f32.gmra.mrb[0].mxu0 %v3036
        %v3205 = vpop.f32.mrb[0].mxu0
        %v3206 = vadd.f32 0.0, %v3205
        %v3207 = vpop.f32.mrb[0].mxu0
        %3208 = vmatprep.mubr.f32.mxu0 0.0
        %3209 = vmatmul.mubr.f32.gmra.mrb[0].mxu0 %v3039
        %v3210 = vpop.f32.mrb[0].mxu0
        %v3211 = vadd.f32 0.0, %v3210
        %v3212 = vpop.f32.mrb[0].mxu0
        %3213 = vmatprep.mubr.f32.mxu0 0.0
        %3214 = vmatmul.mubr.f32.gmra.mrb[0].mxu0 %v3042
        %v3215 = vpop.f32.mrb[0].mxu0
        %v3216 = vadd.f32 0.0, %v3215
        %v3217 = vpop.f32.mrb[0].mxu0
        %3218 = vmatprep.mubr.f32.mxu0 0.0
        %3219 = vmatmul.mubr.f32.gmra.mrb[0].mxu0 %v3045
        %v3220 = vpop.f32.mrb[0].mxu0
        %v3221 = vadd.f32 0.0, %v3220
        %v3222 = vpop.f32.mrb[0].mxu0
        %3223 = vmatprep.mubr.f32.mxu0 0.0
        %3224 = vmatmul.mubr.f32.gmra.mrb[0].mxu0 %v3048
        %v3225 = vpop.f32.mrb[0].mxu0
        %v3226 = vadd.f32 0.0, %v3225
        %v3227 = vpop.f32.mrb[0].mxu0
        %3228 = vmatprep.mubr.f32.mxu0 0.0
        %3229 = vmatmul.mubr.f32.gmra.mrb[0].mxu0 %v3051
        %v3230 = vpop.f32.mrb[0].mxu0
        %v3231 = vadd.f32 0.0, %v3230
        %v3232 = vpop.f32.mrb[0].mxu0
        %3233 = vmatprep.mubr.f32.mxu0 0.0
        %3234 = vmatmul.mubr.f32.gmra.mrb[0].mxu0 %v3054
        %v3235 = vpop.f32.mrb[0].mxu0
        %v3236 = vadd.f32 0.0, %v3235
        %v3237 = vpop.f32.mrb[0].mxu0
        %3238 = vmatprep.mubr.f32.mxu0 0.0
        %3239 = vmatmul.mubr.f32.gmra.mrb[0].mxu0 %v3057
        %v3240 = vpop.f32.mrb[0].mxu0
        %v3241 = vadd.f32 0.0, %v3240
        %v3242 = vpop.f32.mrb[0].mxu0
        %3243 = vmatprep.mubr.f32.mxu0 0.0
        %3244 = vmatmul.mubr.f32.gmra.mrb[0].mxu0 %v3060
        %v3245 = vpop.f32.mrb[0].mxu0
        %v3246 = vadd.f32 0.0, %v3245
        %v3247 = vpop.f32.mrb[0].mxu0
        %3248 = vmatprep.mubr.f32.mxu0 0.0
        %3249 = vmatmul.mubr.f32.gmra.mrb[0].mxu0 %v3063
        %v3250 = vpop.f32.mrb[0].mxu0
        %v3251 = vadd.f32 0.0, %v3250
        %v3252 = vpop.f32.mrb[0].mxu0
        %3253 = vmatprep.mubr.f32.mxu0 0.0
        %3254 = vmatmul.mubr.f32.gmra.mrb[0].mxu0 %v3066
        %v3255 = vpop.f32.mrb[0].mxu0
        %v3256 = vadd.f32 0.0, %v3255
        %v3257 = vpop.f32.mrb[0].mxu0
        %3258 = vmatprep.mubr.f32.mxu0 0.0
        %3259 = vmatmul.mubr.f32.gmra.mrb[0].mxu0 %v3069
        %v3260 = vpop.f32.mrb[0].mxu0
        %v3261 = vadd.f32 0.0, %v3260
        %v3262 = vpop.f32.mrb[0].mxu0
        %3263 = vmatprep.mubr.f32.mxu0 0.0
        %3264 = vmatmul.mubr.f32.gmra.mrb[0].mxu0 %v3072
        %v3265 = vpop.f32.mrb[0].mxu0
        %v3266 = vadd.f32 0.0, %v3265
        %v3267 = vpop.f32.mrb[0].mxu0
        %3268 = vmatprep.mubr.f32.mxu0 0.0
        %3269 = vmatmul.mubr.f32.gmra.mrb[0].mxu0 %v3075
        %v3270 = vpop.f32.mrb[0].mxu0
        %v3271 = vadd.f32 0.0, %v3270
        %v3272 = vpop.f32.mrb[0].mxu0
        %3273 = vmatprep.mubr.f32.mxu0 0.0
        %3274 = vmatmul.mubr.f32.gmra.mrb[0].mxu0 %v3078
        %v3275 = vpop.f32.mrb[0].mxu0
        %v3276 = vadd.f32 0.0, %v3275
        %v3277 = vpop.f32.mrb[0].mxu0
        %3278 = vmatprep.mubr.f32.mxu0 0.0
        %3279 = vmatmul.mubr.f32.gmra.mrb[0].mxu0 %v3081
        %v3280 = vpop.f32.mrb[0].mxu0
        %v3281 = vadd.f32 0.0, %v3280
        %v3282 = vpop.f32.mrb[0].mxu0
        %3283 = vmatprep.mubr.f32.mxu0 0.0
        %3284 = vmatmul.mubr.f32.gmra.mrb[0].mxu0 %v3084
        %v3285 = vpop.f32.mrb[0].mxu0
        %v3286 = vadd.f32 0.0, %v3285
        %v3287 = vpop.f32.mrb[0].mxu0
        %3288 = vmatprep.mubr.f32.mxu0 0.0
        %3289 = vmatmul.mubr.f32.gmra.mrb[0].mxu0 %v3087
        %v3290 = vpop.f32.mrb[0].mxu0
        %v3291 = vadd.f32 0.0, %v3290
        %v3292 = vpop.f32.mrb[0].mxu0
        %3293 = vmatprep.mubr.f32.mxu0 0.0
        %3294 = vmatmul.mubr.f32.gmra.mrb[0].mxu0 %v3090
        %v3295 = vpop.f32.mrb[0].mxu0
        %v3296 = vadd.f32 0.0, %v3295
        %v3297 = vpop.f32.mrb[0].mxu0
        %3298 = vmatprep.mubr.f32.mxu0 0.0
        %3299 = vmatmul.mubr.f32.gmra.mrb[0].mxu0 %v3093
        %v3300 = vpop.f32.mrb[0].mxu0
        %v3301 = vadd.f32 0.0, %v3300
        %v3302 = vpop.f32.mrb[0].mxu0
        %3303 = vmatprep.mubr.f32.mxu0 0.0
        %3304 = vmatmul.mubr.f32.gmra.mrb[0].mxu0 %v3096
        %v3305 = vpop.f32.mrb[0].mxu0
        %v3306 = vadd.f32 0.0, %v3305
        %v3307 = vpop.f32.mrb[0].mxu0
        %3308 = vmatprep.mubr.f32.mxu0 0.0
        %3309 = vmatmul.mubr.f32.gmra.mrb[0].mxu0 %v3099
        %v3310 = vpop.f32.mrb[0].mxu0
        %v3311 = vadd.f32 0.0, %v3310
        %v3312 = vpop.f32.mrb[0].mxu0
        %3313 = vmatprep.mubr.f32.mxu0 0.0
        %3314 = vmatmul.mubr.f32.gmra.mrb[0].mxu0 %v3102
        %v3315 = vpop.f32.mrb[0].mxu0
        %v3316 = vadd.f32 0.0, %v3315
        %v3317 = vpop.f32.mrb[0].mxu0
        %3318 = vmatprep.mubr.f32.mxu0 0.0
        %3319 = vmatmul.mubr.f32.gmra.mrb[0].mxu0 %v3105
        %v3320 = vpop.f32.mrb[0].mxu0
        %v3321 = vadd.f32 0.0, %v3320
        %v3322 = vpop.f32.mrb[0].mxu0
        %3323 = vmatprep.mubr.f32.mxu0 0.0
        %3324 = vmatmul.mubr.f32.gmra.mrb[0].mxu0 %v3108
        %v3325 = vpop.f32.mrb[0].mxu0
        %v3326 = vadd.f32 0.0, %v3325
        %v3327 = vpop.f32.mrb[0].mxu0
        %3328 = vmatprep.mubr.f32.mxu0 0.0
        %3329 = vmatmul.mubr.f32.gmra.mrb[0].mxu0 %v3111
        %v3330 = vpop.f32.mrb[0].mxu0
        %v3331 = vadd.f32 0.0, %v3330
        %v3332 = vpop.f32.mrb[0].mxu0
        %3333 = vmatprep.mubr.f32.mxu0 0.0
        %3334 = vmatmul.mubr.f32.gmra.mrb[0].mxu0 %v3114
        %v3335 = vpop.f32.mrb[0].mxu0
        %v3336 = vadd.f32 0.0, %v3335
        %v3337 = vpop.f32.mrb[0].mxu0
        %3338 = vmatprep.mubr.f32.mxu0 0.0
        %3339 = vmatmul.mubr.f32.gmra.mrb[0].mxu0 %v3117
        %v3340 = vpop.f32.mrb[0].mxu0
        %v3341 = vadd.f32 0.0, %v3340
        %v3342 = vpop.f32.mrb[0].mxu0
        %3343 = vdwg.mxu0
        %v3344 = vld [vmem:[#allocation2] sm:$0xff]
        %v3345 = vld [vmem:[#allocation2 + $0x8] sm:$0xff]
        %v3346 = vld [vmem:[#allocation2 + $0x10] sm:$0xff]
        %v3347 = vld [vmem:[#allocation2 + $0x18] sm:$0xff]
        %v3348 = vld [vmem:[#allocation2 + $0x20] sm:$0xff]
        %v3349 = vld [vmem:[#allocation2 + $0x28] sm:$0xff]
        %v3350 = vld [vmem:[#allocation2 + $0x30] sm:$0xff]
        %v3351 = vld [vmem:[#allocation2 + $0x38] sm:$0xff]
        %v3352 = vld [vmem:[#allocation2 + $0x40] sm:$0xff]
        %v3353 = vld [vmem:[#allocation2 + $0x48] sm:$0xff]
        %v3354 = vld [vmem:[#allocation2 + $0x50] sm:$0xff]
        %v3355 = vld [vmem:[#allocation2 + $0x58] sm:$0xff]
        %v3356 = vld [vmem:[#allocation2 + $0x60] sm:$0xff]
        %v3357 = vld [vmem:[#allocation2 + $0x68] sm:$0xff]
        %v3358 = vld [vmem:[#allocation2 + $0x70] sm:$0xff]
        %v3359 = vld [vmem:[#allocation2 + $0x78] sm:$0xff]
        %v3360 = vld [vmem:[#allocation2 + $0x80] sm:$0xff]
        %v3361 = vld [vmem:[#allocation2 + $0x88] sm:$0xff]
        %v3362 = vld [vmem:[#allocation2 + $0x90] sm:$0xff]
        %v3363 = vld [vmem:[#allocation2 + $0x98] sm:$0xff]
        %v3364 = vld [vmem:[#allocation2 + $0xa0] sm:$0xff]
        %v3365 = vld [vmem:[#allocation2 + $0xa8] sm:$0xff]
        %v3366 = vld [vmem:[#allocation2 + $0xb0] sm:$0xff]
        %v3367 = vld [vmem:[#allocation2 + $0xb8] sm:$0xff]
        %v3368 = vld [vmem:[#allocation2 + $0xc0] sm:$0xff]
        %v3369 = vld [vmem:[#allocation2 + $0xc8] sm:$0xff]
        %v3370 = vld [vmem:[#allocation2 + $0xd0] sm:$0xff]
        %v3371 = vld [vmem:[#allocation2 + $0xd8] sm:$0xff]
        %v3372 = vld [vmem:[#allocation2 + $0xe0] sm:$0xff]
        %v3373 = vld [vmem:[#allocation2 + $0xe8] sm:$0xff]
        %v3374 = vld [vmem:[#allocation2 + $0xf0] sm:$0xff]
        %v3375 = vld [vmem:[#allocation2 + $0xf8] sm:$0xff]
        %v3376 = vadd.f32 %v3344, %v3186
        %v3377 = vadd.f32 %v3345, %v3191
        %v3378 = vadd.f32 %v3346, %v3196
        %v3379 = vadd.f32 %v3347, %v3201
        %v3380 = vadd.f32 %v3348, %v3206
        %v3381 = vadd.f32 %v3349, %v3211
        %v3382 = vadd.f32 %v3350, %v3216
        %v3383 = vadd.f32 %v3351, %v3221
        %v3384 = vadd.f32 %v3352, %v3226
        %v3385 = vadd.f32 %v3353, %v3231
        %v3386 = vadd.f32 %v3354, %v3236
        %v3387 = vadd.f32 %v3355, %v3241
        %v3388 = vadd.f32 %v3356, %v3246
        %v3389 = vadd.f32 %v3357, %v3251
        %v3390 = vadd.f32 %v3358, %v3256
        %v3391 = vadd.f32 %v3359, %v3261
        %v3392 = vadd.f32 %v3360, %v3266
        %v3393 = vadd.f32 %v3361, %v3271
        %v3394 = vadd.f32 %v3362, %v3276
        %v3395 = vadd.f32 %v3363, %v3281
        %v3396 = vadd.f32 %v3364, %v3286
        %v3397 = vadd.f32 %v3365, %v3291
        %v3398 = vadd.f32 %v3366, %v3296
        %v3399 = vadd.f32 %v3367, %v3301
        %v3400 = vadd.f32 %v3368, %v3306
        %v3401 = vadd.f32 %v3369, %v3311
        %v3402 = vadd.f32 %v3370, %v3316
        %v3403 = vadd.f32 %v3371, %v3321
        %v3404 = vadd.f32 %v3372, %v3326
        %v3405 = vadd.f32 %v3373, %v3331
        %v3406 = vadd.f32 %v3374, %v3336
        %v3407 = vadd.f32 %v3375, %v3341
        %3408 = vst [vmem:[#allocation2] sm:$0xff] %v3376
        %3409 = vst [vmem:[#allocation2 + $0x8] sm:$0xff] %v3377
        %3410 = vst [vmem:[#allocation2 + $0x10] sm:$0xff] %v3378
        %3411 = vst [vmem:[#allocation2 + $0x18] sm:$0xff] %v3379
        %3412 = vst [vmem:[#allocation2 + $0x20] sm:$0xff] %v3380
        %3413 = vst [vmem:[#allocation2 + $0x28] sm:$0xff] %v3381
        %3414 = vst [vmem:[#allocation2 + $0x30] sm:$0xff] %v3382
        %3415 = vst [vmem:[#allocation2 + $0x38] sm:$0xff] %v3383
        %3416 = vst [vmem:[#allocation2 + $0x40] sm:$0xff] %v3384
        %3417 = vst [vmem:[#allocation2 + $0x48] sm:$0xff] %v3385
        %3418 = vst [vmem:[#allocation2 + $0x50] sm:$0xff] %v3386
        %3419 = vst [vmem:[#allocation2 + $0x58] sm:$0xff] %v3387
        %3420 = vst [vmem:[#allocation2 + $0x60] sm:$0xff] %v3388
        %3421 = vst [vmem:[#allocation2 + $0x68] sm:$0xff] %v3389
        %3422 = vst [vmem:[#allocation2 + $0x70] sm:$0xff] %v3390
        %3423 = vst [vmem:[#allocation2 + $0x78] sm:$0xff] %v3391
        %3424 = vst [vmem:[#allocation2 + $0x80] sm:$0xff] %v3392
        %3425 = vst [vmem:[#allocation2 + $0x88] sm:$0xff] %v3393
        %3426 = vst [vmem:[#allocation2 + $0x90] sm:$0xff] %v3394
        %3427 = vst [vmem:[#allocation2 + $0x98] sm:$0xff] %v3395
        %3428 = vst [vmem:[#allocation2 + $0xa0] sm:$0xff] %v3396
        %3429 = vst [vmem:[#allocation2 + $0xa8] sm:$0xff] %v3397
        %3430 = vst [vmem:[#allocation2 + $0xb0] sm:$0xff] %v3398
        %3431 = vst [vmem:[#allocation2 + $0xb8] sm:$0xff] %v3399
        %3432 = vst [vmem:[#allocation2 + $0xc0] sm:$0xff] %v3400
        %3433 = vst [vmem:[#allocation2 + $0xc8] sm:$0xff] %v3401
        %3434 = vst [vmem:[#allocation2 + $0xd0] sm:$0xff] %v3402
        %3435 = vst [vmem:[#allocation2 + $0xd8] sm:$0xff] %v3403
        %3436 = vst [vmem:[#allocation2 + $0xe0] sm:$0xff] %v3404
        %3437 = vst [vmem:[#allocation2 + $0xe8] sm:$0xff] %v3405
        %3438 = vst [vmem:[#allocation2 + $0xf0] sm:$0xff] %v3406
        %3439 = vst [vmem:[#allocation2 + $0xf8] sm:$0xff] %v3407
        %s3440 = scalar_lea.vmem %s756, 768 [#allocation3]
        %v3441 = vld [vmem:[%s3440] sm:$0xff]
        %v3442 = vld [vmem:[%s3440 + $0x8] sm:$0xff]
        %v3443 = vld [vmem:[%s3440 + $0x18] sm:$0xff]
        %v3444 = vld [vmem:[%s3440 + $0x20] sm:$0xff]
        %v3445 = vld [vmem:[%s3440 + $0x30] sm:$0xff]
        %v3446 = vld [vmem:[%s3440 + $0x38] sm:$0xff]
        %v3447 = vld [vmem:[%s3440 + $0x48] sm:$0xff]
        %v3448 = vld [vmem:[%s3440 + $0x50] sm:$0xff]
        %v3449 = vld [vmem:[%s3440 + $0x60] sm:$0xff]
        %v3450 = vld [vmem:[%s3440 + $0x68] sm:$0xff]
        %v3451 = vld [vmem:[%s3440 + $0x78] sm:$0xff]
        %v3452 = vld [vmem:[%s3440 + $0x80] sm:$0xff]
        %v3453 = vld [vmem:[%s3440 + $0x90] sm:$0xff]
        %v3454 = vld [vmem:[%s3440 + $0x98] sm:$0xff]
        %v3455 = vld [vmem:[%s3440 + $0xa8] sm:$0xff]
        %v3456 = vld [vmem:[%s3440 + $0xb0] sm:$0xff]
        %v3457 = vld [vmem:[%s3440 + $0xc0] sm:$0xff]
        %v3458 = vld [vmem:[%s3440 + $0xc8] sm:$0xff]
        %v3459 = vld [vmem:[%s3440 + $0xd8] sm:$0xff]
        %v3460 = vld [vmem:[%s3440 + $0xe0] sm:$0xff]
        %v3461 = vld [vmem:[%s3440 + $0xf0] sm:$0xff]
        %v3462 = vld [vmem:[%s3440 + $0xf8] sm:$0xff]
        %v3463 = vld [vmem:[%s3440 + $0x108] sm:$0xff]
        %v3464 = vld [vmem:[%s3440 + $0x110] sm:$0xff]
        %v3465 = vld [vmem:[%s3440 + $0x120] sm:$0xff]
        %v3466 = vld [vmem:[%s3440 + $0x128] sm:$0xff]
        %v3467 = vld [vmem:[%s3440 + $0x138] sm:$0xff]
        %v3468 = vld [vmem:[%s3440 + $0x140] sm:$0xff]
        %v3469 = vld [vmem:[%s3440 + $0x150] sm:$0xff]
        %v3470 = vld [vmem:[%s3440 + $0x158] sm:$0xff]
        %v3471 = vld [vmem:[%s3440 + $0x168] sm:$0xff]
        %v3472 = vld [vmem:[%s3440 + $0x170] sm:$0xff]
        %s3473 = scalar_lea.vmem %s1, 192
        %v3474 = vld [vmem:[%s3473] sm:$0xff]
        %v3475 = vld [vmem:[%s3473 + $0x8] sm:$0xff]
        %v3476 = vld [vmem:[%s3473 + $0x10] sm:$0xff]
        %v3477 = vld [vmem:[%s3473 + $0x18] sm:$0xff]
        %v3479 = vsel %vm815, %v3441, 0
        %v3482 = vsel %vm815, %v3442, 0
        %v3485 = vsel %vm815, %v3443, 0
        %v3488 = vsel %vm815, %v3444, 0
        %v3491 = vsel %vm815, %v3445, 0
        %v3494 = vsel %vm815, %v3446, 0
        %v3497 = vsel %vm815, %v3447, 0
        %v3500 = vsel %vm815, %v3448, 0
        %v3503 = vsel %vm815, %v3449, 0
        %v3506 = vsel %vm815, %v3450, 0
        %v3509 = vsel %vm815, %v3451, 0
        %v3512 = vsel %vm815, %v3452, 0
        %v3515 = vsel %vm815, %v3453, 0
        %v3518 = vsel %vm815, %v3454, 0
        %v3521 = vsel %vm815, %v3455, 0
        %v3524 = vsel %vm815, %v3456, 0
        %v3527 = vsel %vm815, %v3457, 0
        %v3530 = vsel %vm815, %v3458, 0
        %v3533 = vsel %vm815, %v3459, 0
        %v3536 = vsel %vm815, %v3460, 0
        %v3539 = vsel %vm815, %v3461, 0
        %v3542 = vsel %vm815, %v3462, 0
        %v3545 = vsel %vm815, %v3463, 0
        %v3548 = vsel %vm815, %v3464, 0
        %v3551 = vsel %vm815, %v3465, 0
        %v3554 = vsel %vm815, %v3466, 0
        %v3557 = vsel %vm815, %v3467, 0
        %v3560 = vsel %vm815, %v3468, 0
        %v3563 = vsel %vm815, %v3469, 0
        %v3566 = vsel %vm815, %v3470, 0
        %v3569 = vsel %vm815, %v3471, 0
        %v3572 = vsel %vm815, %v3472, 0
        %3574 = vmatprep.subr.mxu0 0.0
        %3575 = vmatpush1.msra.mxu0 %v3474
        %3576 = vmatprep.subr.mxu0 0.0
        %3577 = vmatpush1.msra.mxu0 %v3475
        %3578 = vmatprep.subr.mxu0 0.0
        %3579 = vmatpush1.msra.mxu0 %v3476
        %3580 = vmatprep.subr.mxu0 0.0
        %3581 = vmatpush1.msra.mxu0 %v3477
        %3582 = vmatprep.subr.mxu0 0.0
        %3583 = vmatpush1.msra.mxu0 0.0
        %3584 = vmatprep.subr.mxu0 0.0
        %3585 = vmatpush1.msra.mxu0 0.0
        %3586 = vmatprep.subr.mxu0 0.0
        %3587 = vmatpush1.msra.mxu0 0.0
        %3588 = vmatprep.subr.mxu0 0.0
        %3589 = vmatpush1.msra.mxu0 0.0
        %3590 = vmatprep.subr.mxu0 0.0
        %3591 = vmatpush1.msra.mxu0 0.0
        %3592 = vmatprep.subr.mxu0 0.0
        %3593 = vmatpush1.msra.mxu0 0.0
        %3594 = vmatprep.subr.mxu0 0.0
        %3595 = vmatpush1.msra.mxu0 0.0
        %3596 = vmatprep.subr.mxu0 0.0
        %3597 = vmatpush1.msra.mxu0 0.0
        %3598 = vmatprep.subr.mxu0 0.0
        %3599 = vmatpush1.msra.mxu0 0.0
        %3600 = vmatprep.subr.mxu0 0.0
        %3601 = vmatpush1.msra.mxu0 0.0
        %3602 = vmatprep.subr.mxu0 0.0
        %3603 = vmatpush1.msra.mxu0 0.0
        %3604 = vmatprep.subr.mxu0 0.0
        %3605 = vmatpush1.msra.mxu0 0.0
        %3606 = vmatprep.subr.mxu0 0.0
        %3607 = vmatpush1.msra.mxu0 0.0
        %3608 = vmatprep.subr.mxu0 0.0
        %3609 = vmatpush1.msra.mxu0 0.0
        %3610 = vmatprep.subr.mxu0 0.0
        %3611 = vmatpush1.msra.mxu0 0.0
        %3612 = vmatprep.subr.mxu0 0.0
        %3613 = vmatpush1.msra.mxu0 0.0
        %3614 = vmatprep.subr.mxu0 0.0
        %3615 = vmatpush1.msra.mxu0 0.0
        %3616 = vmatprep.subr.mxu0 0.0
        %3617 = vmatpush1.msra.mxu0 0.0
        %3618 = vmatprep.subr.mxu0 0.0
        %3619 = vmatpush1.msra.mxu0 0.0
        %3620 = vmatprep.subr.mxu0 0.0
        %3621 = vmatpush1.msra.mxu0 0.0
        %3622 = vmatprep.subr.mxu0 0.0
        %3623 = vmatpush1.msra.mxu0 0.0
        %3624 = vmatprep.subr.mxu0 0.0
        %3625 = vmatpush1.msra.mxu0 0.0
        %3626 = vmatprep.subr.mxu0 0.0
        %3627 = vmatpush1.msra.mxu0 0.0
        %3628 = vmatprep.subr.mxu0 0.0
        %3629 = vmatpush1.msra.mxu0 0.0
        %3630 = vmatprep.subr.mxu0 0.0
        %3631 = vmatpush1.msra.mxu0 0.0
        %3632 = vmatprep.subr.mxu0 0.0
        %3633 = vmatpush1.msra.mxu0 0.0
        %3634 = vmatprep.subr.mxu0 0.0
        %3635 = vmatpush1.msra.mxu0 0.0
        %3636 = vmatprep.subr.mxu0 0.0
        %3637 = vmatpush1.msra.mxu0 0.0
        %3638 = vmatprep.mubr.f32.mxu0 0.0
        %3639 = vmatmul.mubr.f32.gmra.mrb[0].mxu0 %v3479
        %v3640 = vpop.f32.mrb[0].mxu0
        %v3641 = vadd.f32 0.0, %v3640
        %v3642 = vpop.f32.mrb[0].mxu0
        %3643 = vmatprep.mubr.f32.mxu0 0.0
        %3644 = vmatmul.mubr.f32.gmra.mrb[0].mxu0 %v3482
        %v3645 = vpop.f32.mrb[0].mxu0
        %v3646 = vadd.f32 0.0, %v3645
        %v3647 = vpop.f32.mrb[0].mxu0
        %3648 = vmatprep.mubr.f32.mxu0 0.0
        %3649 = vmatmul.mubr.f32.gmra.mrb[0].mxu0 %v3485
        %v3650 = vpop.f32.mrb[0].mxu0
        %v3651 = vadd.f32 0.0, %v3650
        %v3652 = vpop.f32.mrb[0].mxu0
        %3653 = vmatprep.mubr.f32.mxu0 0.0
        %3654 = vmatmul.mubr.f32.gmra.mrb[0].mxu0 %v3488
        %v3655 = vpop.f32.mrb[0].mxu0
        %v3656 = vadd.f32 0.0, %v3655
        %v3657 = vpop.f32.mrb[0].mxu0
        %3658 = vmatprep.mubr.f32.mxu0 0.0
        %3659 = vmatmul.mubr.f32.gmra.mrb[0].mxu0 %v3491
        %v3660 = vpop.f32.mrb[0].mxu0
        %v3661 = vadd.f32 0.0, %v3660
        %v3662 = vpop.f32.mrb[0].mxu0
        %3663 = vmatprep.mubr.f32.mxu0 0.0
        %3664 = vmatmul.mubr.f32.gmra.mrb[0].mxu0 %v3494
        %v3665 = vpop.f32.mrb[0].mxu0
        %v3666 = vadd.f32 0.0, %v3665
        %v3667 = vpop.f32.mrb[0].mxu0
        %3668 = vmatprep.mubr.f32.mxu0 0.0
        %3669 = vmatmul.mubr.f32.gmra.mrb[0].mxu0 %v3497
        %v3670 = vpop.f32.mrb[0].mxu0
        %v3671 = vadd.f32 0.0, %v3670
        %v3672 = vpop.f32.mrb[0].mxu0
        %3673 = vmatprep.mubr.f32.mxu0 0.0
        %3674 = vmatmul.mubr.f32.gmra.mrb[0].mxu0 %v3500
        %v3675 = vpop.f32.mrb[0].mxu0
        %v3676 = vadd.f32 0.0, %v3675
        %v3677 = vpop.f32.mrb[0].mxu0
        %3678 = vmatprep.mubr.f32.mxu0 0.0
        %3679 = vmatmul.mubr.f32.gmra.mrb[0].mxu0 %v3503
        %v3680 = vpop.f32.mrb[0].mxu0
        %v3681 = vadd.f32 0.0, %v3680
        %v3682 = vpop.f32.mrb[0].mxu0
        %3683 = vmatprep.mubr.f32.mxu0 0.0
        %3684 = vmatmul.mubr.f32.gmra.mrb[0].mxu0 %v3506
        %v3685 = vpop.f32.mrb[0].mxu0
        %v3686 = vadd.f32 0.0, %v3685
        %v3687 = vpop.f32.mrb[0].mxu0
        %3688 = vmatprep.mubr.f32.mxu0 0.0
        %3689 = vmatmul.mubr.f32.gmra.mrb[0].mxu0 %v3509
        %v3690 = vpop.f32.mrb[0].mxu0
        %v3691 = vadd.f32 0.0, %v3690
        %v3692 = vpop.f32.mrb[0].mxu0
        %3693 = vmatprep.mubr.f32.mxu0 0.0
        %3694 = vmatmul.mubr.f32.gmra.mrb[0].mxu0 %v3512
        %v3695 = vpop.f32.mrb[0].mxu0
        %v3696 = vadd.f32 0.0, %v3695
        %v3697 = vpop.f32.mrb[0].mxu0
        %3698 = vmatprep.mubr.f32.mxu0 0.0
        %3699 = vmatmul.mubr.f32.gmra.mrb[0].mxu0 %v3515
        %v3700 = vpop.f32.mrb[0].mxu0
        %v3701 = vadd.f32 0.0, %v3700
        %v3702 = vpop.f32.mrb[0].mxu0
        %3703 = vmatprep.mubr.f32.mxu0 0.0
        %3704 = vmatmul.mubr.f32.gmra.mrb[0].mxu0 %v3518
        %v3705 = vpop.f32.mrb[0].mxu0
        %v3706 = vadd.f32 0.0, %v3705
        %v3707 = vpop.f32.mrb[0].mxu0
        %3708 = vmatprep.mubr.f32.mxu0 0.0
        %3709 = vmatmul.mubr.f32.gmra.mrb[0].mxu0 %v3521
        %v3710 = vpop.f32.mrb[0].mxu0
        %v3711 = vadd.f32 0.0, %v3710
        %v3712 = vpop.f32.mrb[0].mxu0
        %3713 = vmatprep.mubr.f32.mxu0 0.0
        %3714 = vmatmul.mubr.f32.gmra.mrb[0].mxu0 %v3524
        %v3715 = vpop.f32.mrb[0].mxu0
        %v3716 = vadd.f32 0.0, %v3715
        %v3717 = vpop.f32.mrb[0].mxu0
        %3718 = vmatprep.mubr.f32.mxu0 0.0
        %3719 = vmatmul.mubr.f32.gmra.mrb[0].mxu0 %v3527
        %v3720 = vpop.f32.mrb[0].mxu0
        %v3721 = vadd.f32 0.0, %v3720
        %v3722 = vpop.f32.mrb[0].mxu0
        %3723 = vmatprep.mubr.f32.mxu0 0.0
        %3724 = vmatmul.mubr.f32.gmra.mrb[0].mxu0 %v3530
        %v3725 = vpop.f32.mrb[0].mxu0
        %v3726 = vadd.f32 0.0, %v3725
        %v3727 = vpop.f32.mrb[0].mxu0
        %3728 = vmatprep.mubr.f32.mxu0 0.0
        %3729 = vmatmul.mubr.f32.gmra.mrb[0].mxu0 %v3533
        %v3730 = vpop.f32.mrb[0].mxu0
        %v3731 = vadd.f32 0.0, %v3730
        %v3732 = vpop.f32.mrb[0].mxu0
        %3733 = vmatprep.mubr.f32.mxu0 0.0
        %3734 = vmatmul.mubr.f32.gmra.mrb[0].mxu0 %v3536
        %v3735 = vpop.f32.mrb[0].mxu0
        %v3736 = vadd.f32 0.0, %v3735
        %v3737 = vpop.f32.mrb[0].mxu0
        %3738 = vmatprep.mubr.f32.mxu0 0.0
        %3739 = vmatmul.mubr.f32.gmra.mrb[0].mxu0 %v3539
        %v3740 = vpop.f32.mrb[0].mxu0
        %v3741 = vadd.f32 0.0, %v3740
        %v3742 = vpop.f32.mrb[0].mxu0
        %3743 = vmatprep.mubr.f32.mxu0 0.0
        %3744 = vmatmul.mubr.f32.gmra.mrb[0].mxu0 %v3542
        %v3745 = vpop.f32.mrb[0].mxu0
        %v3746 = vadd.f32 0.0, %v3745
        %v3747 = vpop.f32.mrb[0].mxu0
        %3748 = vmatprep.mubr.f32.mxu0 0.0
        %3749 = vmatmul.mubr.f32.gmra.mrb[0].mxu0 %v3545
        %v3750 = vpop.f32.mrb[0].mxu0
        %v3751 = vadd.f32 0.0, %v3750
        %v3752 = vpop.f32.mrb[0].mxu0
        %3753 = vmatprep.mubr.f32.mxu0 0.0
        %3754 = vmatmul.mubr.f32.gmra.mrb[0].mxu0 %v3548
        %v3755 = vpop.f32.mrb[0].mxu0
        %v3756 = vadd.f32 0.0, %v3755
        %v3757 = vpop.f32.mrb[0].mxu0
        %3758 = vmatprep.mubr.f32.mxu0 0.0
        %3759 = vmatmul.mubr.f32.gmra.mrb[0].mxu0 %v3551
        %v3760 = vpop.f32.mrb[0].mxu0
        %v3761 = vadd.f32 0.0, %v3760
        %v3762 = vpop.f32.mrb[0].mxu0
        %3763 = vmatprep.mubr.f32.mxu0 0.0
        %3764 = vmatmul.mubr.f32.gmra.mrb[0].mxu0 %v3554
        %v3765 = vpop.f32.mrb[0].mxu0
        %v3766 = vadd.f32 0.0, %v3765
        %v3767 = vpop.f32.mrb[0].mxu0
        %3768 = vmatprep.mubr.f32.mxu0 0.0
        %3769 = vmatmul.mubr.f32.gmra.mrb[0].mxu0 %v3557
        %v3770 = vpop.f32.mrb[0].mxu0
        %v3771 = vadd.f32 0.0, %v3770
        %v3772 = vpop.f32.mrb[0].mxu0
        %3773 = vmatprep.mubr.f32.mxu0 0.0
        %3774 = vmatmul.mubr.f32.gmra.mrb[0].mxu0 %v3560
        %v3775 = vpop.f32.mrb[0].mxu0
        %v3776 = vadd.f32 0.0, %v3775
        %v3777 = vpop.f32.mrb[0].mxu0
        %3778 = vmatprep.mubr.f32.mxu0 0.0
        %3779 = vmatmul.mubr.f32.gmra.mrb[0].mxu0 %v3563
        %v3780 = vpop.f32.mrb[0].mxu0
        %v3781 = vadd.f32 0.0, %v3780
        %v3782 = vpop.f32.mrb[0].mxu0
        %3783 = vmatprep.mubr.f32.mxu0 0.0
        %3784 = vmatmul.mubr.f32.gmra.mrb[0].mxu0 %v3566
        %v3785 = vpop.f32.mrb[0].mxu0
        %v3786 = vadd.f32 0.0, %v3785
        %v3787 = vpop.f32.mrb[0].mxu0
        %3788 = vmatprep.mubr.f32.mxu0 0.0
        %3789 = vmatmul.mubr.f32.gmra.mrb[0].mxu0 %v3569
        %v3790 = vpop.f32.mrb[0].mxu0
        %v3791 = vadd.f32 0.0, %v3790
        %v3792 = vpop.f32.mrb[0].mxu0
        %3793 = vmatprep.mubr.f32.mxu0 0.0
        %3794 = vmatmul.mubr.f32.gmra.mrb[0].mxu0 %v3572
        %v3795 = vpop.f32.mrb[0].mxu0
        %v3796 = vadd.f32 0.0, %v3795
        %v3797 = vpop.f32.mrb[0].mxu0
        %3798 = vdwg.mxu0
        %v3799 = vld [vmem:[#allocation2] sm:$0xff]
        %v3800 = vld [vmem:[#allocation2 + $0x8] sm:$0xff]
        %v3801 = vld [vmem:[#allocation2 + $0x10] sm:$0xff]
        %v3802 = vld [vmem:[#allocation2 + $0x18] sm:$0xff]
        %v3803 = vld [vmem:[#allocation2 + $0x20] sm:$0xff]
        %v3804 = vld [vmem:[#allocation2 + $0x28] sm:$0xff]
        %v3805 = vld [vmem:[#allocation2 + $0x30] sm:$0xff]
        %v3806 = vld [vmem:[#allocation2 + $0x38] sm:$0xff]
        %v3807 = vld [vmem:[#allocation2 + $0x40] sm:$0xff]
        %v3808 = vld [vmem:[#allocation2 + $0x48] sm:$0xff]
        %v3809 = vld [vmem:[#allocation2 + $0x50] sm:$0xff]
        %v3810 = vld [vmem:[#allocation2 + $0x58] sm:$0xff]
        %v3811 = vld [vmem:[#allocation2 + $0x60] sm:$0xff]
        %v3812 = vld [vmem:[#allocation2 + $0x68] sm:$0xff]
        %v3813 = vld [vmem:[#allocation2 + $0x70] sm:$0xff]
        %v3814 = vld [vmem:[#allocation2 + $0x78] sm:$0xff]
        %v3815 = vld [vmem:[#allocation2 + $0x80] sm:$0xff]
        %v3816 = vld [vmem:[#allocation2 + $0x88] sm:$0xff]
        %v3817 = vld [vmem:[#allocation2 + $0x90] sm:$0xff]
        %v3818 = vld [vmem:[#allocation2 + $0x98] sm:$0xff]
        %v3819 = vld [vmem:[#allocation2 + $0xa0] sm:$0xff]
        %v3820 = vld [vmem:[#allocation2 + $0xa8] sm:$0xff]
        %v3821 = vld [vmem:[#allocation2 + $0xb0] sm:$0xff]
        %v3822 = vld [vmem:[#allocation2 + $0xb8] sm:$0xff]
        %v3823 = vld [vmem:[#allocation2 + $0xc0] sm:$0xff]
        %v3824 = vld [vmem:[#allocation2 + $0xc8] sm:$0xff]
        %v3825 = vld [vmem:[#allocation2 + $0xd0] sm:$0xff]
        %v3826 = vld [vmem:[#allocation2 + $0xd8] sm:$0xff]
        %v3827 = vld [vmem:[#allocation2 + $0xe0] sm:$0xff]
        %v3828 = vld [vmem:[#allocation2 + $0xe8] sm:$0xff]
        %v3829 = vld [vmem:[#allocation2 + $0xf0] sm:$0xff]
        %v3830 = vld [vmem:[#allocation2 + $0xf8] sm:$0xff]
        %v3831 = vadd.f32 %v3799, %v3641
        %v3832 = vadd.f32 %v3800, %v3646
        %v3833 = vadd.f32 %v3801, %v3651
        %v3834 = vadd.f32 %v3802, %v3656
        %v3835 = vadd.f32 %v3803, %v3661
        %v3836 = vadd.f32 %v3804, %v3666
        %v3837 = vadd.f32 %v3805, %v3671
        %v3838 = vadd.f32 %v3806, %v3676
        %v3839 = vadd.f32 %v3807, %v3681
        %v3840 = vadd.f32 %v3808, %v3686
        %v3841 = vadd.f32 %v3809, %v3691
        %v3842 = vadd.f32 %v3810, %v3696
        %v3843 = vadd.f32 %v3811, %v3701
        %v3844 = vadd.f32 %v3812, %v3706
        %v3845 = vadd.f32 %v3813, %v3711
        %v3846 = vadd.f32 %v3814, %v3716
        %v3847 = vadd.f32 %v3815, %v3721
        %v3848 = vadd.f32 %v3816, %v3726
        %v3849 = vadd.f32 %v3817, %v3731
        %v3850 = vadd.f32 %v3818, %v3736
        %v3851 = vadd.f32 %v3819, %v3741
        %v3852 = vadd.f32 %v3820, %v3746
        %v3853 = vadd.f32 %v3821, %v3751
        %v3854 = vadd.f32 %v3822, %v3756
        %v3855 = vadd.f32 %v3823, %v3761
        %v3856 = vadd.f32 %v3824, %v3766
        %v3857 = vadd.f32 %v3825, %v3771
        %v3858 = vadd.f32 %v3826, %v3776
        %v3859 = vadd.f32 %v3827, %v3781
        %v3860 = vadd.f32 %v3828, %v3786
        %v3861 = vadd.f32 %v3829, %v3791
        %v3862 = vadd.f32 %v3830, %v3796
        %3863 = vst [vmem:[#allocation2] sm:$0xff] %v3831
        %3864 = vst [vmem:[#allocation2 + $0x8] sm:$0xff] %v3832
        %3865 = vst [vmem:[#allocation2 + $0x10] sm:$0xff] %v3833
        %3866 = vst [vmem:[#allocation2 + $0x18] sm:$0xff] %v3834
        %3867 = vst [vmem:[#allocation2 + $0x20] sm:$0xff] %v3835
        %3868 = vst [vmem:[#allocation2 + $0x28] sm:$0xff] %v3836
        %3869 = vst [vmem:[#allocation2 + $0x30] sm:$0xff] %v3837
        %3870 = vst [vmem:[#allocation2 + $0x38] sm:$0xff] %v3838
        %3871 = vst [vmem:[#allocation2 + $0x40] sm:$0xff] %v3839
        %3872 = vst [vmem:[#allocation2 + $0x48] sm:$0xff] %v3840
        %3873 = vst [vmem:[#allocation2 + $0x50] sm:$0xff] %v3841
        %3874 = vst [vmem:[#allocation2 + $0x58] sm:$0xff] %v3842
        %3875 = vst [vmem:[#allocation2 + $0x60] sm:$0xff] %v3843
        %3876 = vst [vmem:[#allocation2 + $0x68] sm:$0xff] %v3844
        %3877 = vst [vmem:[#allocation2 + $0x70] sm:$0xff] %v3845
        %3878 = vst [vmem:[#allocation2 + $0x78] sm:$0xff] %v3846
        %3879 = vst [vmem:[#allocation2 + $0x80] sm:$0xff] %v3847
        %3880 = vst [vmem:[#allocation2 + $0x88] sm:$0xff] %v3848
        %3881 = vst [vmem:[#allocation2 + $0x90] sm:$0xff] %v3849
        %3882 = vst [vmem:[#allocation2 + $0x98] sm:$0xff] %v3850
        %3883 = vst [vmem:[#allocation2 + $0xa0] sm:$0xff] %v3851
        %3884 = vst [vmem:[#allocation2 + $0xa8] sm:$0xff] %v3852
        %3885 = vst [vmem:[#allocation2 + $0xb0] sm:$0xff] %v3853
        %3886 = vst [vmem:[#allocation2 + $0xb8] sm:$0xff] %v3854
        %3887 = vst [vmem:[#allocation2 + $0xc0] sm:$0xff] %v3855
        %3888 = vst [vmem:[#allocation2 + $0xc8] sm:$0xff] %v3856
        %3889 = vst [vmem:[#allocation2 + $0xd0] sm:$0xff] %v3857
        %3890 = vst [vmem:[#allocation2 + $0xd8] sm:$0xff] %v3858
        %3891 = vst [vmem:[#allocation2 + $0xe0] sm:$0xff] %v3859
        %3892 = vst [vmem:[#allocation2 + $0xe8] sm:$0xff] %v3860
        %3893 = vst [vmem:[#allocation2 + $0xf0] sm:$0xff] %v3861
        %3894 = vst [vmem:[#allocation2 + $0xf8] sm:$0xff] %v3862
        %v3895 = vld [vmem:[%s3440 + $0x1] sm:$0xff]
        %v3896 = vld [vmem:[%s3440 + $0x9] sm:$0xff]
        %v3897 = vld [vmem:[%s3440 + $0x19] sm:$0xff]
        %v3898 = vld [vmem:[%s3440 + $0x21] sm:$0xff]
        %v3899 = vld [vmem:[%s3440 + $0x31] sm:$0xff]
        %v3900 = vld [vmem:[%s3440 + $0x39] sm:$0xff]
        %v3901 = vld [vmem:[%s3440 + $0x49] sm:$0xff]
        %v3902 = vld [vmem:[%s3440 + $0x51] sm:$0xff]
        %v3903 = vld [vmem:[%s3440 + $0x61] sm:$0xff]
        %v3904 = vld [vmem:[%s3440 + $0x69] sm:$0xff]
        %v3905 = vld [vmem:[%s3440 + $0x79] sm:$0xff]
        %v3906 = vld [vmem:[%s3440 + $0x81] sm:$0xff]
        %v3907 = vld [vmem:[%s3440 + $0x91] sm:$0xff]
        %v3908 = vld [vmem:[%s3440 + $0x99] sm:$0xff]
        %v3909 = vld [vmem:[%s3440 + $0xa9] sm:$0xff]
        %v3910 = vld [vmem:[%s3440 + $0xb1] sm:$0xff]
        %v3911 = vld [vmem:[%s3440 + $0xc1] sm:$0xff]
        %v3912 = vld [vmem:[%s3440 + $0xc9] sm:$0xff]
        %v3913 = vld [vmem:[%s3440 + $0xd9] sm:$0xff]
        %v3914 = vld [vmem:[%s3440 + $0xe1] sm:$0xff]
        %v3915 = vld [vmem:[%s3440 + $0xf1] sm:$0xff]
        %v3916 = vld [vmem:[%s3440 + $0xf9] sm:$0xff]
        %v3917 = vld [vmem:[%s3440 + $0x109] sm:$0xff]
        %v3918 = vld [vmem:[%s3440 + $0x111] sm:$0xff]
        %v3919 = vld [vmem:[%s3440 + $0x121] sm:$0xff]
        %v3920 = vld [vmem:[%s3440 + $0x129] sm:$0xff]
        %v3921 = vld [vmem:[%s3440 + $0x139] sm:$0xff]
        %v3922 = vld [vmem:[%s3440 + $0x141] sm:$0xff]
        %v3923 = vld [vmem:[%s3440 + $0x151] sm:$0xff]
        %v3924 = vld [vmem:[%s3440 + $0x159] sm:$0xff]
        %v3925 = vld [vmem:[%s3440 + $0x169] sm:$0xff]
        %v3926 = vld [vmem:[%s3440 + $0x171] sm:$0xff]
        %s3927 = scalar_lea.vmem %s1, 224
        %v3928 = vld [vmem:[%s3927] sm:$0xff]
        %v3929 = vld [vmem:[%s3927 + $0x8] sm:$0xff]
        %v3930 = vld [vmem:[%s3927 + $0x10] sm:$0xff]
        %v3931 = vld [vmem:[%s3927 + $0x18] sm:$0xff]
        %v3933 = vsel %vm815, %v3895, 0
        %v3936 = vsel %vm815, %v3896, 0
        %v3939 = vsel %vm815, %v3897, 0
        %v3942 = vsel %vm815, %v3898, 0
        %v3945 = vsel %vm815, %v3899, 0
        %v3948 = vsel %vm815, %v3900, 0
        %v3951 = vsel %vm815, %v3901, 0
        %v3954 = vsel %vm815, %v3902, 0
        %v3957 = vsel %vm815, %v3903, 0
        %v3960 = vsel %vm815, %v3904, 0
        %v3963 = vsel %vm815, %v3905, 0
        %v3966 = vsel %vm815, %v3906, 0
        %v3969 = vsel %vm815, %v3907, 0
        %v3972 = vsel %vm815, %v3908, 0
        %v3975 = vsel %vm815, %v3909, 0
        %v3978 = vsel %vm815, %v3910, 0
        %v3981 = vsel %vm815, %v3911, 0
        %v3984 = vsel %vm815, %v3912, 0
        %v3987 = vsel %vm815, %v3913, 0
        %v3990 = vsel %vm815, %v3914, 0
        %v3993 = vsel %vm815, %v3915, 0
        %v3996 = vsel %vm815, %v3916, 0
        %v3999 = vsel %vm815, %v3917, 0
        %v4002 = vsel %vm815, %v3918, 0
        %v4005 = vsel %vm815, %v3919, 0
        %v4008 = vsel %vm815, %v3920, 0
        %v4011 = vsel %vm815, %v3921, 0
        %v4014 = vsel %vm815, %v3922, 0
        %v4017 = vsel %vm815, %v3923, 0
        %v4020 = vsel %vm815, %v3924, 0
        %v4023 = vsel %vm815, %v3925, 0
        %v4026 = vsel %vm815, %v3926, 0
        %4028 = vmatprep.subr.mxu0 0.0
        %4029 = vmatpush1.msra.mxu0 %v3928
        %4030 = vmatprep.subr.mxu0 0.0
        %4031 = vmatpush1.msra.mxu0 %v3929
        %4032 = vmatprep.subr.mxu0 0.0
        %4033 = vmatpush1.msra.mxu0 %v3930
        %4034 = vmatprep.subr.mxu0 0.0
        %4035 = vmatpush1.msra.mxu0 %v3931
        %4036 = vmatprep.subr.mxu0 0.0
        %4037 = vmatpush1.msra.mxu0 0.0
        %4038 = vmatprep.subr.mxu0 0.0
        %4039 = vmatpush1.msra.mxu0 0.0
        %4040 = vmatprep.subr.mxu0 0.0
        %4041 = vmatpush1.msra.mxu0 0.0
        %4042 = vmatprep.subr.mxu0 0.0
        %4043 = vmatpush1.msra.mxu0 0.0
        %4044 = vmatprep.subr.mxu0 0.0
        %4045 = vmatpush1.msra.mxu0 0.0
        %4046 = vmatprep.subr.mxu0 0.0
        %4047 = vmatpush1.msra.mxu0 0.0
        %4048 = vmatprep.subr.mxu0 0.0
        %4049 = vmatpush1.msra.mxu0 0.0
        %4050 = vmatprep.subr.mxu0 0.0
        %4051 = vmatpush1.msra.mxu0 0.0
        %4052 = vmatprep.subr.mxu0 0.0
        %4053 = vmatpush1.msra.mxu0 0.0
        %4054 = vmatprep.subr.mxu0 0.0
        %4055 = vmatpush1.msra.mxu0 0.0
        %4056 = vmatprep.subr.mxu0 0.0
        %4057 = vmatpush1.msra.mxu0 0.0
        %4058 = vmatprep.subr.mxu0 0.0
        %4059 = vmatpush1.msra.mxu0 0.0
        %4060 = vmatprep.subr.mxu0 0.0
        %4061 = vmatpush1.msra.mxu0 0.0
        %4062 = vmatprep.subr.mxu0 0.0
        %4063 = vmatpush1.msra.mxu0 0.0
        %4064 = vmatprep.subr.mxu0 0.0
        %4065 = vmatpush1.msra.mxu0 0.0
        %4066 = vmatprep.subr.mxu0 0.0
        %4067 = vmatpush1.msra.mxu0 0.0
        %4068 = vmatprep.subr.mxu0 0.0
        %4069 = vmatpush1.msra.mxu0 0.0
        %4070 = vmatprep.subr.mxu0 0.0
        %4071 = vmatpush1.msra.mxu0 0.0
        %4072 = vmatprep.subr.mxu0 0.0
        %4073 = vmatpush1.msra.mxu0 0.0
        %4074 = vmatprep.subr.mxu0 0.0
        %4075 = vmatpush1.msra.mxu0 0.0
        %4076 = vmatprep.subr.mxu0 0.0
        %4077 = vmatpush1.msra.mxu0 0.0
        %4078 = vmatprep.subr.mxu0 0.0
        %4079 = vmatpush1.msra.mxu0 0.0
        %4080 = vmatprep.subr.mxu0 0.0
        %4081 = vmatpush1.msra.mxu0 0.0
        %4082 = vmatprep.subr.mxu0 0.0
        %4083 = vmatpush1.msra.mxu0 0.0
        %4084 = vmatprep.subr.mxu0 0.0
        %4085 = vmatpush1.msra.mxu0 0.0
        %4086 = vmatprep.subr.mxu0 0.0
        %4087 = vmatpush1.msra.mxu0 0.0
        %4088 = vmatprep.subr.mxu0 0.0
        %4089 = vmatpush1.msra.mxu0 0.0
        %4090 = vmatprep.subr.mxu0 0.0
        %4091 = vmatpush1.msra.mxu0 0.0
        %4092 = vmatprep.mubr.f32.mxu0 0.0
        %4093 = vmatmul.mubr.f32.gmra.mrb[0].mxu0 %v3933
        %v4094 = vpop.f32.mrb[0].mxu0
        %v4095 = vadd.f32 0.0, %v4094
        %v4096 = vpop.f32.mrb[0].mxu0
        %4097 = vmatprep.mubr.f32.mxu0 0.0
        %4098 = vmatmul.mubr.f32.gmra.mrb[0].mxu0 %v3936
        %v4099 = vpop.f32.mrb[0].mxu0
        %v4100 = vadd.f32 0.0, %v4099
        %v4101 = vpop.f32.mrb[0].mxu0
        %4102 = vmatprep.mubr.f32.mxu0 0.0
        %4103 = vmatmul.mubr.f32.gmra.mrb[0].mxu0 %v3939
        %v4104 = vpop.f32.mrb[0].mxu0
        %v4105 = vadd.f32 0.0, %v4104
        %v4106 = vpop.f32.mrb[0].mxu0
        %4107 = vmatprep.mubr.f32.mxu0 0.0
        %4108 = vmatmul.mubr.f32.gmra.mrb[0].mxu0 %v3942
        %v4109 = vpop.f32.mrb[0].mxu0
        %v4110 = vadd.f32 0.0, %v4109
        %v4111 = vpop.f32.mrb[0].mxu0
        %4112 = vmatprep.mubr.f32.mxu0 0.0
        %4113 = vmatmul.mubr.f32.gmra.mrb[0].mxu0 %v3945
        %v4114 = vpop.f32.mrb[0].mxu0
        %v4115 = vadd.f32 0.0, %v4114
        %v4116 = vpop.f32.mrb[0].mxu0
        %4117 = vmatprep.mubr.f32.mxu0 0.0
        %4118 = vmatmul.mubr.f32.gmra.mrb[0].mxu0 %v3948
        %v4119 = vpop.f32.mrb[0].mxu0
        %v4120 = vadd.f32 0.0, %v4119
        %v4121 = vpop.f32.mrb[0].mxu0
        %4122 = vmatprep.mubr.f32.mxu0 0.0
        %4123 = vmatmul.mubr.f32.gmra.mrb[0].mxu0 %v3951
        %v4124 = vpop.f32.mrb[0].mxu0
        %v4125 = vadd.f32 0.0, %v4124
        %v4126 = vpop.f32.mrb[0].mxu0
        %4127 = vmatprep.mubr.f32.mxu0 0.0
        %4128 = vmatmul.mubr.f32.gmra.mrb[0].mxu0 %v3954
        %v4129 = vpop.f32.mrb[0].mxu0
        %v4130 = vadd.f32 0.0, %v4129
        %v4131 = vpop.f32.mrb[0].mxu0
        %4132 = vmatprep.mubr.f32.mxu0 0.0
        %4133 = vmatmul.mubr.f32.gmra.mrb[0].mxu0 %v3957
        %v4134 = vpop.f32.mrb[0].mxu0
        %v4135 = vadd.f32 0.0, %v4134
        %v4136 = vpop.f32.mrb[0].mxu0
        %4137 = vmatprep.mubr.f32.mxu0 0.0
        %4138 = vmatmul.mubr.f32.gmra.mrb[0].mxu0 %v3960
        %v4139 = vpop.f32.mrb[0].mxu0
        %v4140 = vadd.f32 0.0, %v4139
        %v4141 = vpop.f32.mrb[0].mxu0
        %4142 = vmatprep.mubr.f32.mxu0 0.0
        %4143 = vmatmul.mubr.f32.gmra.mrb[0].mxu0 %v3963
        %v4144 = vpop.f32.mrb[0].mxu0
        %v4145 = vadd.f32 0.0, %v4144
        %v4146 = vpop.f32.mrb[0].mxu0
        %4147 = vmatprep.mubr.f32.mxu0 0.0
        %4148 = vmatmul.mubr.f32.gmra.mrb[0].mxu0 %v3966
        %v4149 = vpop.f32.mrb[0].mxu0
        %v4150 = vadd.f32 0.0, %v4149
        %v4151 = vpop.f32.mrb[0].mxu0
        %4152 = vmatprep.mubr.f32.mxu0 0.0
        %4153 = vmatmul.mubr.f32.gmra.mrb[0].mxu0 %v3969
        %v4154 = vpop.f32.mrb[0].mxu0
        %v4155 = vadd.f32 0.0, %v4154
        %v4156 = vpop.f32.mrb[0].mxu0
        %4157 = vmatprep.mubr.f32.mxu0 0.0
        %4158 = vmatmul.mubr.f32.gmra.mrb[0].mxu0 %v3972
        %v4159 = vpop.f32.mrb[0].mxu0
        %v4160 = vadd.f32 0.0, %v4159
        %v4161 = vpop.f32.mrb[0].mxu0
        %4162 = vmatprep.mubr.f32.mxu0 0.0
        %4163 = vmatmul.mubr.f32.gmra.mrb[0].mxu0 %v3975
        %v4164 = vpop.f32.mrb[0].mxu0
        %v4165 = vadd.f32 0.0, %v4164
        %v4166 = vpop.f32.mrb[0].mxu0
        %4167 = vmatprep.mubr.f32.mxu0 0.0
        %4168 = vmatmul.mubr.f32.gmra.mrb[0].mxu0 %v3978
        %v4169 = vpop.f32.mrb[0].mxu0
        %v4170 = vadd.f32 0.0, %v4169
        %v4171 = vpop.f32.mrb[0].mxu0
        %4172 = vmatprep.mubr.f32.mxu0 0.0
        %4173 = vmatmul.mubr.f32.gmra.mrb[0].mxu0 %v3981
        %v4174 = vpop.f32.mrb[0].mxu0
        %v4175 = vadd.f32 0.0, %v4174
        %v4176 = vpop.f32.mrb[0].mxu0
        %4177 = vmatprep.mubr.f32.mxu0 0.0
        %4178 = vmatmul.mubr.f32.gmra.mrb[0].mxu0 %v3984
        %v4179 = vpop.f32.mrb[0].mxu0
        %v4180 = vadd.f32 0.0, %v4179
        %v4181 = vpop.f32.mrb[0].mxu0
        %4182 = vmatprep.mubr.f32.mxu0 0.0
        %4183 = vmatmul.mubr.f32.gmra.mrb[0].mxu0 %v3987
        %v4184 = vpop.f32.mrb[0].mxu0
        %v4185 = vadd.f32 0.0, %v4184
        %v4186 = vpop.f32.mrb[0].mxu0
        %4187 = vmatprep.mubr.f32.mxu0 0.0
        %4188 = vmatmul.mubr.f32.gmra.mrb[0].mxu0 %v3990
        %v4189 = vpop.f32.mrb[0].mxu0
        %v4190 = vadd.f32 0.0, %v4189
        %v4191 = vpop.f32.mrb[0].mxu0
        %4192 = vmatprep.mubr.f32.mxu0 0.0
        %4193 = vmatmul.mubr.f32.gmra.mrb[0].mxu0 %v3993
        %v4194 = vpop.f32.mrb[0].mxu0
        %v4195 = vadd.f32 0.0, %v4194
        %v4196 = vpop.f32.mrb[0].mxu0
        %4197 = vmatprep.mubr.f32.mxu0 0.0
        %4198 = vmatmul.mubr.f32.gmra.mrb[0].mxu0 %v3996
        %v4199 = vpop.f32.mrb[0].mxu0
        %v4200 = vadd.f32 0.0, %v4199
        %v4201 = vpop.f32.mrb[0].mxu0
        %4202 = vmatprep.mubr.f32.mxu0 0.0
        %4203 = vmatmul.mubr.f32.gmra.mrb[0].mxu0 %v3999
        %v4204 = vpop.f32.mrb[0].mxu0
        %v4205 = vadd.f32 0.0, %v4204
        %v4206 = vpop.f32.mrb[0].mxu0
        %4207 = vmatprep.mubr.f32.mxu0 0.0
        %4208 = vmatmul.mubr.f32.gmra.mrb[0].mxu0 %v4002
        %v4209 = vpop.f32.mrb[0].mxu0
        %v4210 = vadd.f32 0.0, %v4209
        %v4211 = vpop.f32.mrb[0].mxu0
        %4212 = vmatprep.mubr.f32.mxu0 0.0
        %4213 = vmatmul.mubr.f32.gmra.mrb[0].mxu0 %v4005
        %v4214 = vpop.f32.mrb[0].mxu0
        %v4215 = vadd.f32 0.0, %v4214
        %v4216 = vpop.f32.mrb[0].mxu0
        %4217 = vmatprep.mubr.f32.mxu0 0.0
        %4218 = vmatmul.mubr.f32.gmra.mrb[0].mxu0 %v4008
        %v4219 = vpop.f32.mrb[0].mxu0
        %v4220 = vadd.f32 0.0, %v4219
        %v4221 = vpop.f32.mrb[0].mxu0
        %4222 = vmatprep.mubr.f32.mxu0 0.0
        %4223 = vmatmul.mubr.f32.gmra.mrb[0].mxu0 %v4011
        %v4224 = vpop.f32.mrb[0].mxu0
        %v4225 = vadd.f32 0.0, %v4224
        %v4226 = vpop.f32.mrb[0].mxu0
        %4227 = vmatprep.mubr.f32.mxu0 0.0
        %4228 = vmatmul.mubr.f32.gmra.mrb[0].mxu0 %v4014
        %v4229 = vpop.f32.mrb[0].mxu0
        %v4230 = vadd.f32 0.0, %v4229
        %v4231 = vpop.f32.mrb[0].mxu0
        %4232 = vmatprep.mubr.f32.mxu0 0.0
        %4233 = vmatmul.mubr.f32.gmra.mrb[0].mxu0 %v4017
        %v4234 = vpop.f32.mrb[0].mxu0
        %v4235 = vadd.f32 0.0, %v4234
        %v4236 = vpop.f32.mrb[0].mxu0
        %4237 = vmatprep.mubr.f32.mxu0 0.0
        %4238 = vmatmul.mubr.f32.gmra.mrb[0].mxu0 %v4020
        %v4239 = vpop.f32.mrb[0].mxu0
        %v4240 = vadd.f32 0.0, %v4239
        %v4241 = vpop.f32.mrb[0].mxu0
        %4242 = vmatprep.mubr.f32.mxu0 0.0
        %4243 = vmatmul.mubr.f32.gmra.mrb[0].mxu0 %v4023
        %v4244 = vpop.f32.mrb[0].mxu0
        %v4245 = vadd.f32 0.0, %v4244
        %v4246 = vpop.f32.mrb[0].mxu0
        %4247 = vmatprep.mubr.f32.mxu0 0.0
        %4248 = vmatmul.mubr.f32.gmra.mrb[0].mxu0 %v4026
        %v4249 = vpop.f32.mrb[0].mxu0
        %v4250 = vadd.f32 0.0, %v4249
        %v4251 = vpop.f32.mrb[0].mxu0
        %4252 = vdwg.mxu0
        %v4253 = vld [vmem:[#allocation2] sm:$0xff]
        %v4254 = vld [vmem:[#allocation2 + $0x8] sm:$0xff]
        %v4255 = vld [vmem:[#allocation2 + $0x10] sm:$0xff]
        %v4256 = vld [vmem:[#allocation2 + $0x18] sm:$0xff]
        %v4257 = vld [vmem:[#allocation2 + $0x20] sm:$0xff]
        %v4258 = vld [vmem:[#allocation2 + $0x28] sm:$0xff]
        %v4259 = vld [vmem:[#allocation2 + $0x30] sm:$0xff]
        %v4260 = vld [vmem:[#allocation2 + $0x38] sm:$0xff]
        %v4261 = vld [vmem:[#allocation2 + $0x40] sm:$0xff]
        %v4262 = vld [vmem:[#allocation2 + $0x48] sm:$0xff]
        %v4263 = vld [vmem:[#allocation2 + $0x50] sm:$0xff]
        %v4264 = vld [vmem:[#allocation2 + $0x58] sm:$0xff]
        %v4265 = vld [vmem:[#allocation2 + $0x60] sm:$0xff]
        %v4266 = vld [vmem:[#allocation2 + $0x68] sm:$0xff]
        %v4267 = vld [vmem:[#allocation2 + $0x70] sm:$0xff]
        %v4268 = vld [vmem:[#allocation2 + $0x78] sm:$0xff]
        %v4269 = vld [vmem:[#allocation2 + $0x80] sm:$0xff]
        %v4270 = vld [vmem:[#allocation2 + $0x88] sm:$0xff]
        %v4271 = vld [vmem:[#allocation2 + $0x90] sm:$0xff]
        %v4272 = vld [vmem:[#allocation2 + $0x98] sm:$0xff]
        %v4273 = vld [vmem:[#allocation2 + $0xa0] sm:$0xff]
        %v4274 = vld [vmem:[#allocation2 + $0xa8] sm:$0xff]
        %v4275 = vld [vmem:[#allocation2 + $0xb0] sm:$0xff]
        %v4276 = vld [vmem:[#allocation2 + $0xb8] sm:$0xff]
        %v4277 = vld [vmem:[#allocation2 + $0xc0] sm:$0xff]
        %v4278 = vld [vmem:[#allocation2 + $0xc8] sm:$0xff]
        %v4279 = vld [vmem:[#allocation2 + $0xd0] sm:$0xff]
        %v4280 = vld [vmem:[#allocation2 + $0xd8] sm:$0xff]
        %v4281 = vld [vmem:[#allocation2 + $0xe0] sm:$0xff]
        %v4282 = vld [vmem:[#allocation2 + $0xe8] sm:$0xff]
        %v4283 = vld [vmem:[#allocation2 + $0xf0] sm:$0xff]
        %v4284 = vld [vmem:[#allocation2 + $0xf8] sm:$0xff]
        %v4285 = vadd.f32 %v4253, %v4095
        %v4286 = vadd.f32 %v4254, %v4100
        %v4287 = vadd.f32 %v4255, %v4105
        %v4288 = vadd.f32 %v4256, %v4110
        %v4289 = vadd.f32 %v4257, %v4115
        %v4290 = vadd.f32 %v4258, %v4120
        %v4291 = vadd.f32 %v4259, %v4125
        %v4292 = vadd.f32 %v4260, %v4130
        %v4293 = vadd.f32 %v4261, %v4135
        %v4294 = vadd.f32 %v4262, %v4140
        %v4295 = vadd.f32 %v4263, %v4145
        %v4296 = vadd.f32 %v4264, %v4150
        %v4297 = vadd.f32 %v4265, %v4155
        %v4298 = vadd.f32 %v4266, %v4160
        %v4299 = vadd.f32 %v4267, %v4165
        %v4300 = vadd.f32 %v4268, %v4170
        %v4301 = vadd.f32 %v4269, %v4175
        %v4302 = vadd.f32 %v4270, %v4180
        %v4303 = vadd.f32 %v4271, %v4185
        %v4304 = vadd.f32 %v4272, %v4190
        %v4305 = vadd.f32 %v4273, %v4195
        %v4306 = vadd.f32 %v4274, %v4200
        %v4307 = vadd.f32 %v4275, %v4205
        %v4308 = vadd.f32 %v4276, %v4210
        %v4309 = vadd.f32 %v4277, %v4215
        %v4310 = vadd.f32 %v4278, %v4220
        %v4311 = vadd.f32 %v4279, %v4225
        %v4312 = vadd.f32 %v4280, %v4230
        %v4313 = vadd.f32 %v4281, %v4235
        %v4314 = vadd.f32 %v4282, %v4240
        %v4315 = vadd.f32 %v4283, %v4245
        %v4316 = vadd.f32 %v4284, %v4250
        %4317 = vst [vmem:[#allocation2] sm:$0xff] %v4285
        %4318 = vst [vmem:[#allocation2 + $0x8] sm:$0xff] %v4286
        %4319 = vst [vmem:[#allocation2 + $0x10] sm:$0xff] %v4287
        %4320 = vst [vmem:[#allocation2 + $0x18] sm:$0xff] %v4288
        %4321 = vst [vmem:[#allocation2 + $0x20] sm:$0xff] %v4289
        %4322 = vst [vmem:[#allocation2 + $0x28] sm:$0xff] %v4290
        %4323 = vst [vmem:[#allocation2 + $0x30] sm:$0xff] %v4291
        %4324 = vst [vmem:[#allocation2 + $0x38] sm:$0xff] %v4292
        %4325 = vst [vmem:[#allocation2 + $0x40] sm:$0xff] %v4293
        %4326 = vst [vmem:[#allocation2 + $0x48] sm:$0xff] %v4294
        %4327 = vst [vmem:[#allocation2 + $0x50] sm:$0xff] %v4295
        %4328 = vst [vmem:[#allocation2 + $0x58] sm:$0xff] %v4296
        %4329 = vst [vmem:[#allocation2 + $0x60] sm:$0xff] %v4297
        %4330 = vst [vmem:[#allocation2 + $0x68] sm:$0xff] %v4298
        %4331 = vst [vmem:[#allocation2 + $0x70] sm:$0xff] %v4299
        %4332 = vst [vmem:[#allocation2 + $0x78] sm:$0xff] %v4300
        %4333 = vst [vmem:[#allocation2 + $0x80] sm:$0xff] %v4301
        %4334 = vst [vmem:[#allocation2 + $0x88] sm:$0xff] %v4302
        %4335 = vst [vmem:[#allocation2 + $0x90] sm:$0xff] %v4303
        %4336 = vst [vmem:[#allocation2 + $0x98] sm:$0xff] %v4304
        %4337 = vst [vmem:[#allocation2 + $0xa0] sm:$0xff] %v4305
        %4338 = vst [vmem:[#allocation2 + $0xa8] sm:$0xff] %v4306
        %4339 = vst [vmem:[#allocation2 + $0xb0] sm:$0xff] %v4307
        %4340 = vst [vmem:[#allocation2 + $0xb8] sm:$0xff] %v4308
        %4341 = vst [vmem:[#allocation2 + $0xc0] sm:$0xff] %v4309
        %4342 = vst [vmem:[#allocation2 + $0xc8] sm:$0xff] %v4310
        %4343 = vst [vmem:[#allocation2 + $0xd0] sm:$0xff] %v4311
        %4344 = vst [vmem:[#allocation2 + $0xd8] sm:$0xff] %v4312
        %4345 = vst [vmem:[#allocation2 + $0xe0] sm:$0xff] %v4313
        %4346 = vst [vmem:[#allocation2 + $0xe8] sm:$0xff] %v4314
        %4347 = vst [vmem:[#allocation2 + $0xf0] sm:$0xff] %v4315
        %4348 = vst [vmem:[#allocation2 + $0xf8] sm:$0xff] %v4316
        %v4349 = vld [vmem:[%s3440 + $0x2] sm:$0xff]
        %v4350 = vld [vmem:[%s3440 + $0xa] sm:$0xff]
        %v4351 = vld [vmem:[%s3440 + $0x1a] sm:$0xff]
        %v4352 = vld [vmem:[%s3440 + $0x22] sm:$0xff]
        %v4353 = vld [vmem:[%s3440 + $0x32] sm:$0xff]
        %v4354 = vld [vmem:[%s3440 + $0x3a] sm:$0xff]
        %v4355 = vld [vmem:[%s3440 + $0x4a] sm:$0xff]
        %v4356 = vld [vmem:[%s3440 + $0x52] sm:$0xff]
        %v4357 = vld [vmem:[%s3440 + $0x62] sm:$0xff]
        %v4358 = vld [vmem:[%s3440 + $0x6a] sm:$0xff]
        %v4359 = vld [vmem:[%s3440 + $0x7a] sm:$0xff]
        %v4360 = vld [vmem:[%s3440 + $0x82] sm:$0xff]
        %v4361 = vld [vmem:[%s3440 + $0x92] sm:$0xff]
        %v4362 = vld [vmem:[%s3440 + $0x9a] sm:$0xff]
        %v4363 = vld [vmem:[%s3440 + $0xaa] sm:$0xff]
        %v4364 = vld [vmem:[%s3440 + $0xb2] sm:$0xff]
        %v4365 = vld [vmem:[%s3440 + $0xc2] sm:$0xff]
        %v4366 = vld [vmem:[%s3440 + $0xca] sm:$0xff]
        %v4367 = vld [vmem:[%s3440 + $0xda] sm:$0xff]
        %v4368 = vld [vmem:[%s3440 + $0xe2] sm:$0xff]
        %v4369 = vld [vmem:[%s3440 + $0xf2] sm:$0xff]
        %v4370 = vld [vmem:[%s3440 + $0xfa] sm:$0xff]
        %v4371 = vld [vmem:[%s3440 + $0x10a] sm:$0xff]
        %v4372 = vld [vmem:[%s3440 + $0x112] sm:$0xff]
        %v4373 = vld [vmem:[%s3440 + $0x122] sm:$0xff]
        %v4374 = vld [vmem:[%s3440 + $0x12a] sm:$0xff]
        %v4375 = vld [vmem:[%s3440 + $0x13a] sm:$0xff]
        %v4376 = vld [vmem:[%s3440 + $0x142] sm:$0xff]
        %v4377 = vld [vmem:[%s3440 + $0x152] sm:$0xff]
        %v4378 = vld [vmem:[%s3440 + $0x15a] sm:$0xff]
        %v4379 = vld [vmem:[%s3440 + $0x16a] sm:$0xff]
        %v4380 = vld [vmem:[%s3440 + $0x172] sm:$0xff]
        %s4381 = scalar_lea.vmem %s1, 256
        %v4382 = vld [vmem:[%s4381] sm:$0xff]
        %v4383 = vld [vmem:[%s4381 + $0x8] sm:$0xff]
        %v4384 = vld [vmem:[%s4381 + $0x10] sm:$0xff]
        %v4385 = vld [vmem:[%s4381 + $0x18] sm:$0xff]
        %v4387 = vsel %vm815, %v4349, 0
        %v4390 = vsel %vm815, %v4350, 0
        %v4393 = vsel %vm815, %v4351, 0
        %v4396 = vsel %vm815, %v4352, 0
        %v4399 = vsel %vm815, %v4353, 0
        %v4402 = vsel %vm815, %v4354, 0
        %v4405 = vsel %vm815, %v4355, 0
        %v4408 = vsel %vm815, %v4356, 0
        %v4411 = vsel %vm815, %v4357, 0
        %v4414 = vsel %vm815, %v4358, 0
        %v4417 = vsel %vm815, %v4359, 0
        %v4420 = vsel %vm815, %v4360, 0
        %v4423 = vsel %vm815, %v4361, 0
        %v4426 = vsel %vm815, %v4362, 0
        %v4429 = vsel %vm815, %v4363, 0
        %v4432 = vsel %vm815, %v4364, 0
        %v4435 = vsel %vm815, %v4365, 0
        %v4438 = vsel %vm815, %v4366, 0
        %v4441 = vsel %vm815, %v4367, 0
        %v4444 = vsel %vm815, %v4368, 0
        %v4447 = vsel %vm815, %v4369, 0
        %v4450 = vsel %vm815, %v4370, 0
        %v4453 = vsel %vm815, %v4371, 0
        %v4456 = vsel %vm815, %v4372, 0
        %v4459 = vsel %vm815, %v4373, 0
        %v4462 = vsel %vm815, %v4374, 0
        %v4465 = vsel %vm815, %v4375, 0
        %v4468 = vsel %vm815, %v4376, 0
        %v4471 = vsel %vm815, %v4377, 0
        %v4474 = vsel %vm815, %v4378, 0
        %v4477 = vsel %vm815, %v4379, 0
        %v4480 = vsel %vm815, %v4380, 0
        %4482 = vmatprep.subr.mxu0 0.0
        %4483 = vmatpush1.msra.mxu0 %v4382
        %4484 = vmatprep.subr.mxu0 0.0
        %4485 = vmatpush1.msra.mxu0 %v4383
        %4486 = vmatprep.subr.mxu0 0.0
        %4487 = vmatpush1.msra.mxu0 %v4384
        %4488 = vmatprep.subr.mxu0 0.0
        %4489 = vmatpush1.msra.mxu0 %v4385
        %4490 = vmatprep.subr.mxu0 0.0
        %4491 = vmatpush1.msra.mxu0 0.0
        %4492 = vmatprep.subr.mxu0 0.0
        %4493 = vmatpush1.msra.mxu0 0.0
        %4494 = vmatprep.subr.mxu0 0.0
        %4495 = vmatpush1.msra.mxu0 0.0
        %4496 = vmatprep.subr.mxu0 0.0
        %4497 = vmatpush1.msra.mxu0 0.0
        %4498 = vmatprep.subr.mxu0 0.0
        %4499 = vmatpush1.msra.mxu0 0.0
        %4500 = vmatprep.subr.mxu0 0.0
        %4501 = vmatpush1.msra.mxu0 0.0
        %4502 = vmatprep.subr.mxu0 0.0
        %4503 = vmatpush1.msra.mxu0 0.0
        %4504 = vmatprep.subr.mxu0 0.0
        %4505 = vmatpush1.msra.mxu0 0.0
        %4506 = vmatprep.subr.mxu0 0.0
        %4507 = vmatpush1.msra.mxu0 0.0
        %4508 = vmatprep.subr.mxu0 0.0
        %4509 = vmatpush1.msra.mxu0 0.0
        %4510 = vmatprep.subr.mxu0 0.0
        %4511 = vmatpush1.msra.mxu0 0.0
        %4512 = vmatprep.subr.mxu0 0.0
        %4513 = vmatpush1.msra.mxu0 0.0
        %4514 = vmatprep.subr.mxu0 0.0
        %4515 = vmatpush1.msra.mxu0 0.0
        %4516 = vmatprep.subr.mxu0 0.0
        %4517 = vmatpush1.msra.mxu0 0.0
        %4518 = vmatprep.subr.mxu0 0.0
        %4519 = vmatpush1.msra.mxu0 0.0
        %4520 = vmatprep.subr.mxu0 0.0
        %4521 = vmatpush1.msra.mxu0 0.0
        %4522 = vmatprep.subr.mxu0 0.0
        %4523 = vmatpush1.msra.mxu0 0.0
        %4524 = vmatprep.subr.mxu0 0.0
        %4525 = vmatpush1.msra.mxu0 0.0
        %4526 = vmatprep.subr.mxu0 0.0
        %4527 = vmatpush1.msra.mxu0 0.0
        %4528 = vmatprep.subr.mxu0 0.0
        %4529 = vmatpush1.msra.mxu0 0.0
        %4530 = vmatprep.subr.mxu0 0.0
        %4531 = vmatpush1.msra.mxu0 0.0
        %4532 = vmatprep.subr.mxu0 0.0
        %4533 = vmatpush1.msra.mxu0 0.0
        %4534 = vmatprep.subr.mxu0 0.0
        %4535 = vmatpush1.msra.mxu0 0.0
        %4536 = vmatprep.subr.mxu0 0.0
        %4537 = vmatpush1.msra.mxu0 0.0
        %4538 = vmatprep.subr.mxu0 0.0
        %4539 = vmatpush1.msra.mxu0 0.0
        %4540 = vmatprep.subr.mxu0 0.0
        %4541 = vmatpush1.msra.mxu0 0.0
        %4542 = vmatprep.subr.mxu0 0.0
        %4543 = vmatpush1.msra.mxu0 0.0
        %4544 = vmatprep.subr.mxu0 0.0
        %4545 = vmatpush1.msra.mxu0 0.0
        %4546 = vmatprep.mubr.f32.mxu0 0.0
        %4547 = vmatmul.mubr.f32.gmra.mrb[0].mxu0 %v4387
        %v4548 = vpop.f32.mrb[0].mxu0
        %v4549 = vadd.f32 0.0, %v4548
        %v4550 = vpop.f32.mrb[0].mxu0
        %4551 = vmatprep.mubr.f32.mxu0 0.0
        %4552 = vmatmul.mubr.f32.gmra.mrb[0].mxu0 %v4390
        %v4553 = vpop.f32.mrb[0].mxu0
        %v4554 = vadd.f32 0.0, %v4553
        %v4555 = vpop.f32.mrb[0].mxu0
        %4556 = vmatprep.mubr.f32.mxu0 0.0
        %4557 = vmatmul.mubr.f32.gmra.mrb[0].mxu0 %v4393
        %v4558 = vpop.f32.mrb[0].mxu0
        %v4559 = vadd.f32 0.0, %v4558
        %v4560 = vpop.f32.mrb[0].mxu0
        %4561 = vmatprep.mubr.f32.mxu0 0.0
        %4562 = vmatmul.mubr.f32.gmra.mrb[0].mxu0 %v4396
        %v4563 = vpop.f32.mrb[0].mxu0
        %v4564 = vadd.f32 0.0, %v4563
        %v4565 = vpop.f32.mrb[0].mxu0
        %4566 = vmatprep.mubr.f32.mxu0 0.0
        %4567 = vmatmul.mubr.f32.gmra.mrb[0].mxu0 %v4399
        %v4568 = vpop.f32.mrb[0].mxu0
        %v4569 = vadd.f32 0.0, %v4568
        %v4570 = vpop.f32.mrb[0].mxu0
        %4571 = vmatprep.mubr.f32.mxu0 0.0
        %4572 = vmatmul.mubr.f32.gmra.mrb[0].mxu0 %v4402
        %v4573 = vpop.f32.mrb[0].mxu0
        %v4574 = vadd.f32 0.0, %v4573
        %v4575 = vpop.f32.mrb[0].mxu0
        %4576 = vmatprep.mubr.f32.mxu0 0.0
        %4577 = vmatmul.mubr.f32.gmra.mrb[0].mxu0 %v4405
        %v4578 = vpop.f32.mrb[0].mxu0
        %v4579 = vadd.f32 0.0, %v4578
        %v4580 = vpop.f32.mrb[0].mxu0
        %4581 = vmatprep.mubr.f32.mxu0 0.0
        %4582 = vmatmul.mubr.f32.gmra.mrb[0].mxu0 %v4408
        %v4583 = vpop.f32.mrb[0].mxu0
        %v4584 = vadd.f32 0.0, %v4583
        %v4585 = vpop.f32.mrb[0].mxu0
        %4586 = vmatprep.mubr.f32.mxu0 0.0
        %4587 = vmatmul.mubr.f32.gmra.mrb[0].mxu0 %v4411
        %v4588 = vpop.f32.mrb[0].mxu0
        %v4589 = vadd.f32 0.0, %v4588
        %v4590 = vpop.f32.mrb[0].mxu0
        %4591 = vmatprep.mubr.f32.mxu0 0.0
        %4592 = vmatmul.mubr.f32.gmra.mrb[0].mxu0 %v4414
        %v4593 = vpop.f32.mrb[0].mxu0
        %v4594 = vadd.f32 0.0, %v4593
        %v4595 = vpop.f32.mrb[0].mxu0
        %4596 = vmatprep.mubr.f32.mxu0 0.0
        %4597 = vmatmul.mubr.f32.gmra.mrb[0].mxu0 %v4417
        %v4598 = vpop.f32.mrb[0].mxu0
        %v4599 = vadd.f32 0.0, %v4598
        %v4600 = vpop.f32.mrb[0].mxu0
        %4601 = vmatprep.mubr.f32.mxu0 0.0
        %4602 = vmatmul.mubr.f32.gmra.mrb[0].mxu0 %v4420
        %v4603 = vpop.f32.mrb[0].mxu0
        %v4604 = vadd.f32 0.0, %v4603
        %v4605 = vpop.f32.mrb[0].mxu0
        %4606 = vmatprep.mubr.f32.mxu0 0.0
        %4607 = vmatmul.mubr.f32.gmra.mrb[0].mxu0 %v4423
        %v4608 = vpop.f32.mrb[0].mxu0
        %v4609 = vadd.f32 0.0, %v4608
        %v4610 = vpop.f32.mrb[0].mxu0
        %4611 = vmatprep.mubr.f32.mxu0 0.0
        %4612 = vmatmul.mubr.f32.gmra.mrb[0].mxu0 %v4426
        %v4613 = vpop.f32.mrb[0].mxu0
        %v4614 = vadd.f32 0.0, %v4613
        %v4615 = vpop.f32.mrb[0].mxu0
        %4616 = vmatprep.mubr.f32.mxu0 0.0
        %4617 = vmatmul.mubr.f32.gmra.mrb[0].mxu0 %v4429
        %v4618 = vpop.f32.mrb[0].mxu0
        %v4619 = vadd.f32 0.0, %v4618
        %v4620 = vpop.f32.mrb[0].mxu0
        %4621 = vmatprep.mubr.f32.mxu0 0.0
        %4622 = vmatmul.mubr.f32.gmra.mrb[0].mxu0 %v4432
        %v4623 = vpop.f32.mrb[0].mxu0
        %v4624 = vadd.f32 0.0, %v4623
        %v4625 = vpop.f32.mrb[0].mxu0
        %4626 = vmatprep.mubr.f32.mxu0 0.0
        %4627 = vmatmul.mubr.f32.gmra.mrb[0].mxu0 %v4435
        %v4628 = vpop.f32.mrb[0].mxu0
        %v4629 = vadd.f32 0.0, %v4628
        %v4630 = vpop.f32.mrb[0].mxu0
        %4631 = vmatprep.mubr.f32.mxu0 0.0
        %4632 = vmatmul.mubr.f32.gmra.mrb[0].mxu0 %v4438
        %v4633 = vpop.f32.mrb[0].mxu0
        %v4634 = vadd.f32 0.0, %v4633
        %v4635 = vpop.f32.mrb[0].mxu0
        %4636 = vmatprep.mubr.f32.mxu0 0.0
        %4637 = vmatmul.mubr.f32.gmra.mrb[0].mxu0 %v4441
        %v4638 = vpop.f32.mrb[0].mxu0
        %v4639 = vadd.f32 0.0, %v4638
        %v4640 = vpop.f32.mrb[0].mxu0
        %4641 = vmatprep.mubr.f32.mxu0 0.0
        %4642 = vmatmul.mubr.f32.gmra.mrb[0].mxu0 %v4444
        %v4643 = vpop.f32.mrb[0].mxu0
        %v4644 = vadd.f32 0.0, %v4643
        %v4645 = vpop.f32.mrb[0].mxu0
        %4646 = vmatprep.mubr.f32.mxu0 0.0
        %4647 = vmatmul.mubr.f32.gmra.mrb[0].mxu0 %v4447
        %v4648 = vpop.f32.mrb[0].mxu0
        %v4649 = vadd.f32 0.0, %v4648
        %v4650 = vpop.f32.mrb[0].mxu0
        %4651 = vmatprep.mubr.f32.mxu0 0.0
        %4652 = vmatmul.mubr.f32.gmra.mrb[0].mxu0 %v4450
        %v4653 = vpop.f32.mrb[0].mxu0
        %v4654 = vadd.f32 0.0, %v4653
        %v4655 = vpop.f32.mrb[0].mxu0
        %4656 = vmatprep.mubr.f32.mxu0 0.0
        %4657 = vmatmul.mubr.f32.gmra.mrb[0].mxu0 %v4453
        %v4658 = vpop.f32.mrb[0].mxu0
        %v4659 = vadd.f32 0.0, %v4658
        %v4660 = vpop.f32.mrb[0].mxu0
        %4661 = vmatprep.mubr.f32.mxu0 0.0
        %4662 = vmatmul.mubr.f32.gmra.mrb[0].mxu0 %v4456
        %v4663 = vpop.f32.mrb[0].mxu0
        %v4664 = vadd.f32 0.0, %v4663
        %v4665 = vpop.f32.mrb[0].mxu0
        %4666 = vmatprep.mubr.f32.mxu0 0.0
        %4667 = vmatmul.mubr.f32.gmra.mrb[0].mxu0 %v4459
        %v4668 = vpop.f32.mrb[0].mxu0
        %v4669 = vadd.f32 0.0, %v4668
        %v4670 = vpop.f32.mrb[0].mxu0
        %4671 = vmatprep.mubr.f32.mxu0 0.0
        %4672 = vmatmul.mubr.f32.gmra.mrb[0].mxu0 %v4462
        %v4673 = vpop.f32.mrb[0].mxu0
        %v4674 = vadd.f32 0.0, %v4673
        %v4675 = vpop.f32.mrb[0].mxu0
        %4676 = vmatprep.mubr.f32.mxu0 0.0
        %4677 = vmatmul.mubr.f32.gmra.mrb[0].mxu0 %v4465
        %v4678 = vpop.f32.mrb[0].mxu0
        %v4679 = vadd.f32 0.0, %v4678
        %v4680 = vpop.f32.mrb[0].mxu0
        %4681 = vmatprep.mubr.f32.mxu0 0.0
        %4682 = vmatmul.mubr.f32.gmra.mrb[0].mxu0 %v4468
        %v4683 = vpop.f32.mrb[0].mxu0
        %v4684 = vadd.f32 0.0, %v4683
        %v4685 = vpop.f32.mrb[0].mxu0
        %4686 = vmatprep.mubr.f32.mxu0 0.0
        %4687 = vmatmul.mubr.f32.gmra.mrb[0].mxu0 %v4471
        %v4688 = vpop.f32.mrb[0].mxu0
        %v4689 = vadd.f32 0.0, %v4688
        %v4690 = vpop.f32.mrb[0].mxu0
        %4691 = vmatprep.mubr.f32.mxu0 0.0
        %4692 = vmatmul.mubr.f32.gmra.mrb[0].mxu0 %v4474
        %v4693 = vpop.f32.mrb[0].mxu0
        %v4694 = vadd.f32 0.0, %v4693
        %v4695 = vpop.f32.mrb[0].mxu0
        %4696 = vmatprep.mubr.f32.mxu0 0.0
        %4697 = vmatmul.mubr.f32.gmra.mrb[0].mxu0 %v4477
        %v4698 = vpop.f32.mrb[0].mxu0
        %v4699 = vadd.f32 0.0, %v4698
        %v4700 = vpop.f32.mrb[0].mxu0
        %4701 = vmatprep.mubr.f32.mxu0 0.0
        %4702 = vmatmul.mubr.f32.gmra.mrb[0].mxu0 %v4480
        %v4703 = vpop.f32.mrb[0].mxu0
        %v4704 = vadd.f32 0.0, %v4703
        %v4705 = vpop.f32.mrb[0].mxu0
        %4706 = vdwg.mxu0
        %v4707 = vld [vmem:[#allocation2] sm:$0xff]
        %v4708 = vld [vmem:[#allocation2 + $0x8] sm:$0xff]
        %v4709 = vld [vmem:[#allocation2 + $0x10] sm:$0xff]
        %v4710 = vld [vmem:[#allocation2 + $0x18] sm:$0xff]
        %v4711 = vld [vmem:[#allocation2 + $0x20] sm:$0xff]
        %v4712 = vld [vmem:[#allocation2 + $0x28] sm:$0xff]
        %v4713 = vld [vmem:[#allocation2 + $0x30] sm:$0xff]
        %v4714 = vld [vmem:[#allocation2 + $0x38] sm:$0xff]
        %v4715 = vld [vmem:[#allocation2 + $0x40] sm:$0xff]
        %v4716 = vld [vmem:[#allocation2 + $0x48] sm:$0xff]
        %v4717 = vld [vmem:[#allocation2 + $0x50] sm:$0xff]
        %v4718 = vld [vmem:[#allocation2 + $0x58] sm:$0xff]
        %v4719 = vld [vmem:[#allocation2 + $0x60] sm:$0xff]
        %v4720 = vld [vmem:[#allocation2 + $0x68] sm:$0xff]
        %v4721 = vld [vmem:[#allocation2 + $0x70] sm:$0xff]
        %v4722 = vld [vmem:[#allocation2 + $0x78] sm:$0xff]
        %v4723 = vld [vmem:[#allocation2 + $0x80] sm:$0xff]
        %v4724 = vld [vmem:[#allocation2 + $0x88] sm:$0xff]
        %v4725 = vld [vmem:[#allocation2 + $0x90] sm:$0xff]
        %v4726 = vld [vmem:[#allocation2 + $0x98] sm:$0xff]
        %v4727 = vld [vmem:[#allocation2 + $0xa0] sm:$0xff]
        %v4728 = vld [vmem:[#allocation2 + $0xa8] sm:$0xff]
        %v4729 = vld [vmem:[#allocation2 + $0xb0] sm:$0xff]
        %v4730 = vld [vmem:[#allocation2 + $0xb8] sm:$0xff]
        %v4731 = vld [vmem:[#allocation2 + $0xc0] sm:$0xff]
        %v4732 = vld [vmem:[#allocation2 + $0xc8] sm:$0xff]
        %v4733 = vld [vmem:[#allocation2 + $0xd0] sm:$0xff]
        %v4734 = vld [vmem:[#allocation2 + $0xd8] sm:$0xff]
        %v4735 = vld [vmem:[#allocation2 + $0xe0] sm:$0xff]
        %v4736 = vld [vmem:[#allocation2 + $0xe8] sm:$0xff]
        %v4737 = vld [vmem:[#allocation2 + $0xf0] sm:$0xff]
        %v4738 = vld [vmem:[#allocation2 + $0xf8] sm:$0xff]
        %v4739 = vadd.f32 %v4707, %v4549
        %v4740 = vadd.f32 %v4708, %v4554
        %v4741 = vadd.f32 %v4709, %v4559
        %v4742 = vadd.f32 %v4710, %v4564
        %v4743 = vadd.f32 %v4711, %v4569
        %v4744 = vadd.f32 %v4712, %v4574
        %v4745 = vadd.f32 %v4713, %v4579
        %v4746 = vadd.f32 %v4714, %v4584
        %v4747 = vadd.f32 %v4715, %v4589
        %v4748 = vadd.f32 %v4716, %v4594
        %v4749 = vadd.f32 %v4717, %v4599
        %v4750 = vadd.f32 %v4718, %v4604
        %v4751 = vadd.f32 %v4719, %v4609
        %v4752 = vadd.f32 %v4720, %v4614
        %v4753 = vadd.f32 %v4721, %v4619
        %v4754 = vadd.f32 %v4722, %v4624
        %v4755 = vadd.f32 %v4723, %v4629
        %v4756 = vadd.f32 %v4724, %v4634
        %v4757 = vadd.f32 %v4725, %v4639
        %v4758 = vadd.f32 %v4726, %v4644
        %v4759 = vadd.f32 %v4727, %v4649
        %v4760 = vadd.f32 %v4728, %v4654
        %v4761 = vadd.f32 %v4729, %v4659
        %v4762 = vadd.f32 %v4730, %v4664
        %v4763 = vadd.f32 %v4731, %v4669
        %v4764 = vadd.f32 %v4732, %v4674
        %v4765 = vadd.f32 %v4733, %v4679
        %v4766 = vadd.f32 %v4734, %v4684
        %v4767 = vadd.f32 %v4735, %v4689
        %v4768 = vadd.f32 %v4736, %v4694
        %v4769 = vadd.f32 %v4737, %v4699
        %v4770 = vadd.f32 %v4738, %v4704
        %4771 = vst [vmem:[#allocation2] sm:$0xff] %v4739
        %4772 = vst [vmem:[#allocation2 + $0x8] sm:$0xff] %v4740
        %4773 = vst [vmem:[#allocation2 + $0x10] sm:$0xff] %v4741
        %4774 = vst [vmem:[#allocation2 + $0x18] sm:$0xff] %v4742
        %4775 = vst [vmem:[#allocation2 + $0x20] sm:$0xff] %v4743
        %4776 = vst [vmem:[#allocation2 + $0x28] sm:$0xff] %v4744
        %4777 = vst [vmem:[#allocation2 + $0x30] sm:$0xff] %v4745
        %4778 = vst [vmem:[#allocation2 + $0x38] sm:$0xff] %v4746
        %4779 = vst [vmem:[#allocation2 + $0x40] sm:$0xff] %v4747
        %4780 = vst [vmem:[#allocation2 + $0x48] sm:$0xff] %v4748
        %4781 = vst [vmem:[#allocation2 + $0x50] sm:$0xff] %v4749
        %4782 = vst [vmem:[#allocation2 + $0x58] sm:$0xff] %v4750
        %4783 = vst [vmem:[#allocation2 + $0x60] sm:$0xff] %v4751
        %4784 = vst [vmem:[#allocation2 + $0x68] sm:$0xff] %v4752
        %4785 = vst [vmem:[#allocation2 + $0x70] sm:$0xff] %v4753
        %4786 = vst [vmem:[#allocation2 + $0x78] sm:$0xff] %v4754
        %4787 = vst [vmem:[#allocation2 + $0x80] sm:$0xff] %v4755
        %4788 = vst [vmem:[#allocation2 + $0x88] sm:$0xff] %v4756
        %4789 = vst [vmem:[#allocation2 + $0x90] sm:$0xff] %v4757
        %4790 = vst [vmem:[#allocation2 + $0x98] sm:$0xff] %v4758
        %4791 = vst [vmem:[#allocation2 + $0xa0] sm:$0xff] %v4759
        %4792 = vst [vmem:[#allocation2 + $0xa8] sm:$0xff] %v4760
        %4793 = vst [vmem:[#allocation2 + $0xb0] sm:$0xff] %v4761
        %4794 = vst [vmem:[#allocation2 + $0xb8] sm:$0xff] %v4762
        %4795 = vst [vmem:[#allocation2 + $0xc0] sm:$0xff] %v4763
        %4796 = vst [vmem:[#allocation2 + $0xc8] sm:$0xff] %v4764
        %4797 = vst [vmem:[#allocation2 + $0xd0] sm:$0xff] %v4765
        %4798 = vst [vmem:[#allocation2 + $0xd8] sm:$0xff] %v4766
        %4799 = vst [vmem:[#allocation2 + $0xe0] sm:$0xff] %v4767
        %4800 = vst [vmem:[#allocation2 + $0xe8] sm:$0xff] %v4768
        %4801 = vst [vmem:[#allocation2 + $0xf0] sm:$0xff] %v4769
        %4802 = vst [vmem:[#allocation2 + $0xf8] sm:$0xff] %v4770
        %v4803 = vld [vmem:[#allocation2] sm:$0xff]
        %v4804 = vld [vmem:[#allocation2 + $0x8] sm:$0xff]
        %v4805 = vld [vmem:[#allocation2 + $0x10] sm:$0xff]
        %v4806 = vld [vmem:[#allocation2 + $0x18] sm:$0xff]
        %v4807 = vld [vmem:[#allocation2 + $0x20] sm:$0xff]
        %v4808 = vld [vmem:[#allocation2 + $0x28] sm:$0xff]
        %v4809 = vld [vmem:[#allocation2 + $0x30] sm:$0xff]
        %v4810 = vld [vmem:[#allocation2 + $0x38] sm:$0xff]
        %v4811 = vld [vmem:[#allocation2 + $0x40] sm:$0xff]
        %v4812 = vld [vmem:[#allocation2 + $0x48] sm:$0xff]
        %v4813 = vld [vmem:[#allocation2 + $0x50] sm:$0xff]
        %v4814 = vld [vmem:[#allocation2 + $0x58] sm:$0xff]
        %v4815 = vld [vmem:[#allocation2 + $0x60] sm:$0xff]
        %v4816 = vld [vmem:[#allocation2 + $0x68] sm:$0xff]
        %v4817 = vld [vmem:[#allocation2 + $0x70] sm:$0xff]
        %v4818 = vld [vmem:[#allocation2 + $0x78] sm:$0xff]
        %v4819 = vld [vmem:[#allocation2 + $0x80] sm:$0xff]
        %v4820 = vld [vmem:[#allocation2 + $0x88] sm:$0xff]
        %v4821 = vld [vmem:[#allocation2 + $0x90] sm:$0xff]
        %v4822 = vld [vmem:[#allocation2 + $0x98] sm:$0xff]
        %v4823 = vld [vmem:[#allocation2 + $0xa0] sm:$0xff]
        %v4824 = vld [vmem:[#allocation2 + $0xa8] sm:$0xff]
        %v4825 = vld [vmem:[#allocation2 + $0xb0] sm:$0xff]
        %v4826 = vld [vmem:[#allocation2 + $0xb8] sm:$0xff]
        %v4827 = vld [vmem:[#allocation2 + $0xc0] sm:$0xff]
        %v4828 = vld [vmem:[#allocation2 + $0xc8] sm:$0xff]
        %v4829 = vld [vmem:[#allocation2 + $0xd0] sm:$0xff]
        %v4830 = vld [vmem:[#allocation2 + $0xd8] sm:$0xff]
        %v4831 = vld [vmem:[#allocation2 + $0xe0] sm:$0xff]
        %v4832 = vld [vmem:[#allocation2 + $0xe8] sm:$0xff]
        %v4833 = vld [vmem:[#allocation2 + $0xf0] sm:$0xff]
        %v4834 = vld [vmem:[#allocation2 + $0xf8] sm:$0xff]
        %v4835 = vld [vmem:[%s2] sm:$0x1]
        %v4837 = vlaneseq
        %v4838 = vshrl.u32 %v4837, 7
        %v4839 = vsub.s32 0, %v4838
        %v4840 = vrot.slane %v4835, %v4839
        %v4842 = vadd.f32 %v4803, %v4840
        %v4843 = vadd.f32 %v4804, %v4840
        %v4844 = vadd.f32 %v4805, %v4840
        %v4845 = vadd.f32 %v4806, %v4840
        %v4846 = vadd.f32 %v4807, %v4840
        %v4847 = vadd.f32 %v4808, %v4840
        %v4848 = vadd.f32 %v4809, %v4840
        %v4849 = vadd.f32 %v4810, %v4840
        %v4850 = vadd.f32 %v4811, %v4840
        %v4851 = vadd.f32 %v4812, %v4840
        %v4852 = vadd.f32 %v4813, %v4840
        %v4853 = vadd.f32 %v4814, %v4840
        %v4854 = vadd.f32 %v4815, %v4840
        %v4855 = vadd.f32 %v4816, %v4840
        %v4856 = vadd.f32 %v4817, %v4840
        %v4857 = vadd.f32 %v4818, %v4840
        %v4858 = vadd.f32 %v4819, %v4840
        %v4859 = vadd.f32 %v4820, %v4840
        %v4860 = vadd.f32 %v4821, %v4840
        %v4861 = vadd.f32 %v4822, %v4840
        %v4862 = vadd.f32 %v4823, %v4840
        %v4863 = vadd.f32 %v4824, %v4840
        %v4864 = vadd.f32 %v4825, %v4840
        %v4865 = vadd.f32 %v4826, %v4840
        %v4866 = vadd.f32 %v4827, %v4840
        %v4867 = vadd.f32 %v4828, %v4840
        %v4868 = vadd.f32 %v4829, %v4840
        %v4869 = vadd.f32 %v4830, %v4840
        %v4870 = vadd.f32 %v4831, %v4840
        %v4871 = vadd.f32 %v4832, %v4840
        %v4872 = vadd.f32 %v4833, %v4840
        %v4873 = vadd.f32 %v4834, %v4840
        %v4874 = vmax.f32 %v4842, 0.0
        %v4875 = vmax.f32 %v4843, 0.0
        %v4876 = vmax.f32 %v4844, 0.0
        %v4877 = vmax.f32 %v4845, 0.0
        %v4878 = vmax.f32 %v4846, 0.0
        %v4879 = vmax.f32 %v4847, 0.0
        %v4880 = vmax.f32 %v4848, 0.0
        %v4881 = vmax.f32 %v4849, 0.0
        %v4882 = vmax.f32 %v4850, 0.0
        %v4883 = vmax.f32 %v4851, 0.0
        %v4884 = vmax.f32 %v4852, 0.0
        %v4885 = vmax.f32 %v4853, 0.0
        %v4886 = vmax.f32 %v4854, 0.0
        %v4887 = vmax.f32 %v4855, 0.0
        %v4888 = vmax.f32 %v4856, 0.0
        %v4889 = vmax.f32 %v4857, 0.0
        %v4890 = vmax.f32 %v4858, 0.0
        %v4891 = vmax.f32 %v4859, 0.0
        %v4892 = vmax.f32 %v4860, 0.0
        %v4893 = vmax.f32 %v4861, 0.0
        %v4894 = vmax.f32 %v4862, 0.0
        %v4895 = vmax.f32 %v4863, 0.0
        %v4896 = vmax.f32 %v4864, 0.0
        %v4897 = vmax.f32 %v4865, 0.0
        %v4898 = vmax.f32 %v4866, 0.0
        %v4899 = vmax.f32 %v4867, 0.0
        %v4900 = vmax.f32 %v4868, 0.0
        %v4901 = vmax.f32 %v4869, 0.0
        %v4902 = vmax.f32 %v4870, 0.0
        %v4903 = vmax.f32 %v4871, 0.0
        %v4904 = vmax.f32 %v4872, 0.0
        %v4905 = vmax.f32 %v4873, 0.0
        %4906 = vst [vmem:[%s776] sm:$0xff] %v4874
        %4907 = vst [vmem:[%s776 + $0x8] sm:$0xff] %v4875
        %4908 = vst [vmem:[%s776 + $0x10] sm:$0xff] %v4876
        %4909 = vst [vmem:[%s776 + $0x18] sm:$0xff] %v4877
        %4910 = vst [vmem:[%s776 + $0x20] sm:$0xff] %v4878
        %4911 = vst [vmem:[%s776 + $0x28] sm:$0xff] %v4879
        %4912 = vst [vmem:[%s776 + $0x30] sm:$0xff] %v4880
        %4913 = vst [vmem:[%s776 + $0x38] sm:$0xff] %v4881
        %4914 = vst [vmem:[%s776 + $0x40] sm:$0xff] %v4882
        %4915 = vst [vmem:[%s776 + $0x48] sm:$0xff] %v4883
        %4916 = vst [vmem:[%s776 + $0x50] sm:$0xff] %v4884
        %4917 = vst [vmem:[%s776 + $0x58] sm:$0xff] %v4885
        %4918 = vst [vmem:[%s776 + $0x60] sm:$0xff] %v4886
        %4919 = vst [vmem:[%s776 + $0x68] sm:$0xff] %v4887
        %4920 = vst [vmem:[%s776 + $0x70] sm:$0xff] %v4888
        %4921 = vst [vmem:[%s776 + $0x78] sm:$0xff] %v4889
        %4922 = vst [vmem:[%s776 + $0x80] sm:$0xff] %v4890
        %4923 = vst [vmem:[%s776 + $0x88] sm:$0xff] %v4891
        %4924 = vst [vmem:[%s776 + $0x90] sm:$0xff] %v4892
        %4925 = vst [vmem:[%s776 + $0x98] sm:$0xff] %v4893
        %4926 = vst [vmem:[%s776 + $0xa0] sm:$0xff] %v4894
        %4927 = vst [vmem:[%s776 + $0xa8] sm:$0xff] %v4895
        %4928 = vst [vmem:[%s776 + $0xb0] sm:$0xff] %v4896
        %4929 = vst [vmem:[%s776 + $0xb8] sm:$0xff] %v4897
        %4930 = vst [vmem:[%s776 + $0xc0] sm:$0xff] %v4898
        %4931 = vst [vmem:[%s776 + $0xc8] sm:$0xff] %v4899
        %4932 = vst [vmem:[%s776 + $0xd0] sm:$0xff] %v4900
        %4933 = vst [vmem:[%s776 + $0xd8] sm:$0xff] %v4901
        %4934 = vst [vmem:[%s776 + $0xe0] sm:$0xff] %v4902
        %4935 = vst [vmem:[%s776 + $0xe8] sm:$0xff] %v4903
        %4936 = vst [vmem:[%s776 + $0xf0] sm:$0xff] %v4904
        %4937 = vst [vmem:[%s776 + $0xf8] sm:$0xff] %v4905
        %s4938 = sand.u32 %s93, 1
        %s4939 = scalar_lea.sflag [#allocation5], %s4938
        %s4940 = sand.u32 %s93, 1
        %s4941 = smul.addr %s4940, 256
        %s4942 = scalar_lea.vmem [#allocation4], %s4941
        // Predicated region
        $region71: #{tpu_custom_call.1} parent=65 // pred_check
          %p4943 = pneg %p103
        $region72: #{tpu_custom_call.1} parent=65 // pred_check_branch
          %4945 = sbr.rel (%p4943) target = $region74
        $region73: #{tpu_custom_call.1} parent=65 // pred_region
          %s4946 = smul.u32 32, %s17
          %s4948 = ssub.s32 4096, 4096
          %4949 = vsyncadd %s4939, %s4948
          %s4950 = smul.addr %s4946, 128
          %s4951 = scalar_lea.hbm %s3, %s4950
          %s4952 = sshll.u32 %s4942, 4
          %s4953 = int_to_ptr.vmem [resolvable:$true] %s4952
          %4958 = dma.vmem_to_hbm [thread:$0]  %s4953, 4096, %s4951, %s4939, 128, 128, 8
        $region74: #{tpu_custom_call.1} parent=65 // pred_fallthru
          _
      $region66: #{tpu_custom_call.1} parent=5 // pred_fallthru
        _
      %p4959 = scmp.le.s32.totalorder 2, %s12
      // Predicated region
      $region75: #{tpu_custom_call.1} parent=5 // pred_check
        %p4960 = pneg %p4959
      $region76: #{tpu_custom_call.1} parent=5 // pred_check_branch
        %4962 = sbr.rel (%p4960) target = $region78
      $region77: #{tpu_custom_call.1} parent=5 // pred_region
        %s4963 = ssub.s32 %s12, 2
        // Predicated region
        $region79: #{tpu_custom_call.1} parent=77 // pred_check
          %p4964 = pneg %p109
        $region80: #{tpu_custom_call.1} parent=77 // pred_check_branch
          %4966 = sbr.rel (%p4964) target = $region82
        $region81: #{tpu_custom_call.1} parent=77 // pred_region
          %s4967 = sand.u32 %s94, 1
          %s4968 = scalar_lea.sflag [#allocation5], %s4967
          %s4969 = sand.u32 %s94, 1
          %s4970 = smul.addr %s4969, 256
          %s4971 = scalar_lea.vmem [#allocation4], %s4970
          %4972 = dma.done %s4968, 4096
        $region82: #{tpu_custom_call.1} parent=77 // pred_fallthru
          _
      $region78: #{tpu_custom_call.1} parent=5 // pred_fallthru
        _
    $region6: #{tpu_custom_call.1} parent=1 // loop_footer
      %s16 = sadd.s32 1, %s12
    $region7: #{tpu_custom_call.1} parent=1 // loop_footer_branch
      %11 = sbr.rel target = $region3
    $region8: #{tpu_custom_call.1} parent=1 // loop_exit
      _
    %4973 = vsyncpa [#allocation5], 1
    %s4974 = scalar_lea.sflag [#allocation5], 1
    %4975 = vsyncpa %s4974, 1

</llo_original>
